<compile_context>
chip_gen: v7x
topology: tpu7x:2x2x1
jax: 0.10.0
libtpu: 0.0.40
codegen_flags: <defaults>
</compile_context>

<pallas_src>
import functools

import jax
import jax.numpy as jnp
import numpy as np
from jax import lax
from jax.experimental import pallas as pl
from jax.experimental.pallas import tpu as pltpu

EPS = 1e-5          # nn.BatchNorm2d default eps
NEG_SLOPE = 0.2     # LeakyReLU slope
KSZ = 4             # conv kernel size
STRIDE = 2          # conv stride


def _out_size(n):
    return (n - KSZ) // STRIDE + 1


# ---------------------------------------------------------------------------
# Host-side weight preprocessing.
#
# Conv weight (KH, KW, Cin, Cout)  ->  banded matrix T (KH*W_in*Cin, OW*Cout)
# such that, with activation rows laid out as (H, B, W*Cin) (w-major, c-minor),
#   Y[oh*B + b, ow*Cout + co] = X_cat[oh*B + b, :] @ T
# where X_cat concatenates, along the feature axis, the KH rows {2*oh + kh}.
# ---------------------------------------------------------------------------
def _banded_weight(w, w_in, ow):
    kh_, kw_, cin, cout = w.shape
    w_idx = jnp.arange(w_in)[None, :, None]
    ow_idx = jnp.arange(ow)[None, None, :]
    kw_idx = jnp.arange(kw_)[:, None, None]
    onehot = (w_idx == STRIDE * ow_idx + kw_idx).astype(w.dtype)     # (KW, Win, OW)
    t = jnp.einsum("kwo,hkic->hwioc", onehot, w)                     # (KH,Win,Cin,OW,Cout)
    return t.reshape(kh_ * w_in * cin, ow * cout)


# ---------------------------------------------------------------------------
# Fused Pallas kernel: conv1+BN+LReLU -> conv2+BN+LReLU -> conv3+bias
# ---------------------------------------------------------------------------
def _critic_kernel(x_ref, t1_ref, b1_ref, g1_ref, bt1_ref,
                   t2_ref, b2_ref, g2_ref, bt2_ref,
                   t3_ref, b3_ref, o_ref, a1_ref, a2_ref, *, dims):
    (bsz, oh1, ow1, c1, oh2, ow2, c2, oh3, ow3) = dims

    def conv(src_ref, t_ref, oh):
        # src_ref: (H_in, B, W_in*C_in) bf16.  Gather the KH vertical taps as
        # integer row loads, concat along features, one MXU matmul (bf16 in,
        # f32 accumulate).
        groups = []
        for kh in range(KSZ):
            rows = [src_ref[kh + STRIDE * i] for i in range(oh)]     # (B, W*C) each
            groups.append(jnp.concatenate(rows, axis=0))             # (oh*B, W*C)
        xcat = jnp.concatenate(groups, axis=1)                       # (oh*B, KH*W*C)
        return jnp.dot(xcat, t_ref[...], preferred_element_type=jnp.float32)

    def bn_lrelu(y, bias_cols, gamma, beta, ow, c):
        # y: (oh*B, ow*c) f32, column order (ow, c).  Training-mode BatchNorm
        # with one-pass statistics, then LeakyReLU(0.2).
        y = y + bias_cols
        n = jnp.float32(y.shape[0] * ow)                 # elements per channel
        s1 = jnp.sum(y, axis=0, keepdims=True)           # (1, ow*c)
        s2 = jnp.sum(y * y, axis=0, keepdims=True)
        s1c = s1[:, 0:c]
        s2c = s2[:, 0:c]
        for i in range(1, ow):                           # collapse ow groups
            s1c = s1c + s1[:, i * c:(i + 1) * c]
            s2c = s2c + s2[:, i * c:(i + 1) * c]
        mean = s1c / n
        var = s2c / n - mean * mean                      # biased variance
        scale = gamma * lax.rsqrt(var + EPS)             # (1, c)
        shift = beta - mean * scale
        scale_cols = jnp.concatenate([scale] * ow, axis=1)   # (1, ow*c)
        shift_cols = jnp.concatenate([shift] * ow, axis=1)
        yn = y * scale_cols + shift_cols
        return jnp.where(yn >= 0, yn, NEG_SLOPE * yn)

    def store_act(dst_ref, y, oh):
        # y: (oh*B, ow*c) f32 -> bf16 scratch laid out (oh, B, ow*c)
        for i in range(oh):
            dst_ref[i] = y[i * bsz:(i + 1) * bsz].astype(dst_ref.dtype)

    # ---- block 1: conv + BatchNorm + LeakyReLU ----
    y1 = conv(x_ref, t1_ref, oh1)
    y1 = bn_lrelu(y1, b1_ref[...], g1_ref[...], bt1_ref[...], ow1, c1)
    store_act(a1_ref, y1, oh1)

    # ---- block 2: conv + BatchNorm + LeakyReLU ----
    y2 = conv(a1_ref, t2_ref, oh2)
    y2 = bn_lrelu(y2, b2_ref[...], g2_ref[...], bt2_ref[...], ow2, c2)
    store_act(a2_ref, y2, oh2)

    # ---- block 3: conv + bias only ----
    y3 = conv(a2_ref, t3_ref, oh3) + b3_ref[...]          # (oh3*B, ow3)
    # write PyTorch .view(B, -1) order: out[b, oh*ow3 + ow]
    for i in range(oh3):
        o_ref[:, i * ow3:(i + 1) * ow3] = y3[i * bsz:(i + 1) * bsz]


# ---------------------------------------------------------------------------
# Wrapper: layout prep (NCHW -> (H, B, W*C)), banded-weight build, one call.
# ---------------------------------------------------------------------------
@jax.jit
def critic_forward(img_nchw, params):
    """img_nchw: (B, image_channel, H, W) -> (B, M) like Critic.forward."""
    B, C0, H0, W0 = img_nchw.shape
    w1, b1, g1, be1 = params["block1"]
    w2, b2, g2, be2 = params["block2"]
    w3, b3 = params["block3"]
    C1, C2 = w1.shape[-1], w2.shape[-1]
    OH1, OW1 = _out_size(H0), _out_size(W0)
    OH2, OW2 = _out_size(OH1), _out_size(OW1)
    OH3, OW3 = _out_size(OH2), _out_size(OW2)

    # NCHW -> (H, B, W*C) rows (w-major, c-minor), bf16 for the MXU.
    x = jnp.transpose(img_nchw, (2, 0, 3, 1)).reshape(H0, B, W0 * C0)
    x = x.astype(jnp.bfloat16)

    # Banded conv weights (in practice these would be cached per-parameter-set).
    t1 = _banded_weight(w1, W0, OW1).astype(jnp.bfloat16)     # (KH*W0*C0,  OW1*C1)
    t2 = _banded_weight(w2, OW1, OW2).astype(jnp.bfloat16)    # (KH*OW1*C1, OW2*C2)
    t3 = _banded_weight(w3, OW2, OW3).astype(jnp.bfloat16)    # (KH*OW2*C2, OW3*1)

    # Biases pre-expanded to the (ow, c) column layout; gamma/beta per channel.
    b1c = jnp.tile(b1.reshape(1, C1), (1, OW1)).astype(jnp.float32)
    b2c = jnp.tile(b2.reshape(1, C2), (1, OW2)).astype(jnp.float32)
    b3c = jnp.tile(b3.reshape(1, 1), (1, OW3)).astype(jnp.float32)
    g1r, be1r = g1.reshape(1, C1).astype(jnp.float32), be1.reshape(1, C1).astype(jnp.float32)
    g2r, be2r = g2.reshape(1, C2).astype(jnp.float32), be2.reshape(1, C2).astype(jnp.float32)

    dims = (B, OH1, OW1, C1, OH2, OW2, C2, OH3, OW3)
    kernel = functools.partial(_critic_kernel, dims=dims)
    vmem = pl.BlockSpec(memory_space=pltpu.MemorySpace.VMEM)

    out = pl.pallas_call(
        kernel,
        out_shape=jax.ShapeDtypeStruct((B, OH3 * OW3), jnp.float32),
        in_specs=[vmem] * 11,
        out_specs=vmem,
        scratch_shapes=[
            pltpu.VMEM((OH1, B, OW1 * C1), jnp.bfloat16),   # block1 activations
            pltpu.VMEM((OH2, B, OW2 * C2), jnp.bfloat16),   # block2 activations
        ],
    )(x, t1, b1c, g1r, be1r, t2, b2c, g2r, be2r, t3, b3c)
    return out


# ---------------------------------------------------------------------------
# Deterministic parameter init (PyTorch-like uniform fan-in bounds)
# ---------------------------------------------------------------------------
def init_params(key, image_channel, features):
    def conv_init(k, cin, cout):
        k1, k2 = jax.random.split(k)
        fan_in = cin * KSZ * KSZ
        bound = 1.0 / np.sqrt(fan_in)
        w = jax.random.uniform(k1, (KSZ, KSZ, cin, cout), jnp.float32, -bound, bound)
        b = jax.random.uniform(k2, (cout,), jnp.float32, -bound, bound)
        return w, b

    k1, k2, k3 = jax.random.split(key, 3)
    w1, b1 = conv_init(k1, image_channel, features)
    w2, b2 = conv_init(k2, features, features * 2)
    w3, b3 = conv_init(k3, features * 2, 1)
    return {
        "block1": (w1, b1, jnp.ones(features, jnp.float32), jnp.zeros(features, jnp.float32)),
        "block2": (w2, b2, jnp.ones(features * 2, jnp.float32), jnp.zeros(features * 2, jnp.float32)),
        "block3": (w3, b3),
    }


# ---------------------------------------------------------------------------
# Pure-JAX / XLA reference (full f32, standard conv) for correctness check
# ---------------------------------------------------------------------------
def _ref_forward(img, params):
    def conv(x, w, b):
        y = lax.conv_general_dilated(
            x, w, window_strides=(STRIDE, STRIDE), padding="VALID",
            dimension_numbers=("NCHW", "HWIO", "NCHW"))
        return y + b.reshape(1, -1, 1, 1)

    def bn_lrelu(y, gamma, beta):
        mean = jnp.mean(y, axis=(0, 2, 3), keepdims=True)
        var = jnp.mean(jnp.square(y - mean), axis=(0, 2, 3), keepdims=True)
        yn = gamma.reshape(1, -1, 1, 1) * (y - mean) * lax.rsqrt(var + EPS) \
            + beta.reshape(1, -1, 1, 1)
        return jnp.where(yn >= 0, yn, NEG_SLOPE * yn)

    w1, b1, g1, be1 = params["block1"]
    w2, b2, g2, be2 = params["block2"]
    w3, b3 = params["block3"]
    x = bn_lrelu(conv(img, w1, b1), g1, be1)
    x = bn_lrelu(conv(x, w2, b2), g2, be2)
    x = conv(x, w3, b3)
    return x.reshape(x.shape[0], -1)


if __name__ == "__main__":
    key = jax.random.PRNGKey(0)
    k_img, k_par = jax.random.split(key)

    # spatial 32 so it survives three stride-2 4x4 valid convs: 32 -> 15 -> 6 -> 2
    B, image_channel, H, W = 2, 4, 32, 32
    features = 8

    img = jax.random.normal(k_img, (B, image_channel, H, W), jnp.float32)
    params = init_params(k_par, image_channel, features)

    out = jax.block_until_ready(critic_forward(img, params))
    assert out.shape == (B, 4), out.shape
    assert bool(jnp.all(jnp.isfinite(out)))

    ref = jax.block_until_ready(_ref_forward(img, params))
    # bf16 matmul operands (f32 accumulation) -> slightly looser tolerance.
    np.testing.assert_allclose(np.asarray(out), np.asarray(ref), rtol=2e-2, atol=2e-2)

    print("KERNEL_OK")
</pallas_src>

<mosaic_0001>
module attributes {stable_mosaic.version = 11 : i64} {
  func.func @_critic_kernel(%arg0: memref<32x2x128xbf16, #tpu.memory_space<vmem>>, %arg1: memref<512x120xbf16, #tpu.memory_space<vmem>>, %arg2: memref<1x120xf32, #tpu.memory_space<vmem>>, %arg3: memref<1x8xf32, #tpu.memory_space<vmem>>, %arg4: memref<1x8xf32, #tpu.memory_space<vmem>>, %arg5: memref<480x96xbf16, #tpu.memory_space<vmem>>, %arg6: memref<1x96xf32, #tpu.memory_space<vmem>>, %arg7: memref<1x16xf32, #tpu.memory_space<vmem>>, %arg8: memref<1x16xf32, #tpu.memory_space<vmem>>, %arg9: memref<384x2xbf16, #tpu.memory_space<vmem>>, %arg10: memref<1x2xf32, #tpu.memory_space<vmem>>, %arg11: memref<2x4xf32, #tpu.memory_space<vmem>>, %arg12: memref<15x2x120xbf16, #tpu.memory_space<vmem>>, %arg13: memref<6x2x96xbf16, #tpu.memory_space<vmem>>) attributes {dimension_semantics = [], scalar_prefetch = 0 : i64, scratch_operands = 2 : i64, tpu.core_type = #tpu.core_type<tc>} {
    %c0 = arith.constant 0 : index
    %c0_0 = arith.constant 0 : index
    %c0_1 = arith.constant 0 : index
    %0 = vector.load %arg0[%c0, %c0_0, %c0_1] : memref<32x2x128xbf16, #tpu.memory_space<vmem>>, vector<1x2x128xbf16>
    %1 = vector.shape_cast %0 : vector<1x2x128xbf16> to vector<2x128xbf16>
    %c2 = arith.constant 2 : index
    %c0_2 = arith.constant 0 : index
    %c0_3 = arith.constant 0 : index
    %2 = vector.load %arg0[%c2, %c0_2, %c0_3] : memref<32x2x128xbf16, #tpu.memory_space<vmem>>, vector<1x2x128xbf16>
    %3 = vector.shape_cast %2 : vector<1x2x128xbf16> to vector<2x128xbf16>
    %c4 = arith.constant 4 : index
    %c0_4 = arith.constant 0 : index
    %c0_5 = arith.constant 0 : index
    %4 = vector.load %arg0[%c4, %c0_4, %c0_5] : memref<32x2x128xbf16, #tpu.memory_space<vmem>>, vector<1x2x128xbf16>
    %5 = vector.shape_cast %4 : vector<1x2x128xbf16> to vector<2x128xbf16>
    %c6 = arith.constant 6 : index
    %c0_6 = arith.constant 0 : index
    %c0_7 = arith.constant 0 : index
    %6 = vector.load %arg0[%c6, %c0_6, %c0_7] : memref<32x2x128xbf16, #tpu.memory_space<vmem>>, vector<1x2x128xbf16>
    %7 = vector.shape_cast %6 : vector<1x2x128xbf16> to vector<2x128xbf16>
    %c8 = arith.constant 8 : index
    %c0_8 = arith.constant 0 : index
    %c0_9 = arith.constant 0 : index
    %8 = vector.load %arg0[%c8, %c0_8, %c0_9] : memref<32x2x128xbf16, #tpu.memory_space<vmem>>, vector<1x2x128xbf16>
    %9 = vector.shape_cast %8 : vector<1x2x128xbf16> to vector<2x128xbf16>
    %c10 = arith.constant 10 : index
    %c0_10 = arith.constant 0 : index
    %c0_11 = arith.constant 0 : index
    %10 = vector.load %arg0[%c10, %c0_10, %c0_11] : memref<32x2x128xbf16, #tpu.memory_space<vmem>>, vector<1x2x128xbf16>
    %11 = vector.shape_cast %10 : vector<1x2x128xbf16> to vector<2x128xbf16>
    %c12 = arith.constant 12 : index
    %c0_12 = arith.constant 0 : index
    %c0_13 = arith.constant 0 : index
    %12 = vector.load %arg0[%c12, %c0_12, %c0_13] : memref<32x2x128xbf16, #tpu.memory_space<vmem>>, vector<1x2x128xbf16>
    %13 = vector.shape_cast %12 : vector<1x2x128xbf16> to vector<2x128xbf16>
    %c14 = arith.constant 14 : index
    %c0_14 = arith.constant 0 : index
    %c0_15 = arith.constant 0 : index
    %14 = vector.load %arg0[%c14, %c0_14, %c0_15] : memref<32x2x128xbf16, #tpu.memory_space<vmem>>, vector<1x2x128xbf16>
    %15 = vector.shape_cast %14 : vector<1x2x128xbf16> to vector<2x128xbf16>
    %c16 = arith.constant 16 : index
    %c0_16 = arith.constant 0 : index
    %c0_17 = arith.constant 0 : index
    %16 = vector.load %arg0[%c16, %c0_16, %c0_17] : memref<32x2x128xbf16, #tpu.memory_space<vmem>>, vector<1x2x128xbf16>
    %17 = vector.shape_cast %16 : vector<1x2x128xbf16> to vector<2x128xbf16>
    %c18 = arith.constant 18 : index
    %c0_18 = arith.constant 0 : index
    %c0_19 = arith.constant 0 : index
    %18 = vector.load %arg0[%c18, %c0_18, %c0_19] : memref<32x2x128xbf16, #tpu.memory_space<vmem>>, vector<1x2x128xbf16>
    %19 = vector.shape_cast %18 : vector<1x2x128xbf16> to vector<2x128xbf16>
    %c20 = arith.constant 20 : index
    %c0_20 = arith.constant 0 : index
    %c0_21 = arith.constant 0 : index
    %20 = vector.load %arg0[%c20, %c0_20, %c0_21] : memref<32x2x128xbf16, #tpu.memory_space<vmem>>, vector<1x2x128xbf16>
    %21 = vector.shape_cast %20 : vector<1x2x128xbf16> to vector<2x128xbf16>
    %c22 = arith.constant 22 : index
    %c0_22 = arith.constant 0 : index
    %c0_23 = arith.constant 0 : index
    %22 = vector.load %arg0[%c22, %c0_22, %c0_23] : memref<32x2x128xbf16, #tpu.memory_space<vmem>>, vector<1x2x128xbf16>
    %23 = vector.shape_cast %22 : vector<1x2x128xbf16> to vector<2x128xbf16>
    %c24 = arith.constant 24 : index
    %c0_24 = arith.constant 0 : index
    %c0_25 = arith.constant 0 : index
    %24 = vector.load %arg0[%c24, %c0_24, %c0_25] : memref<32x2x128xbf16, #tpu.memory_space<vmem>>, vector<1x2x128xbf16>
    %25 = vector.shape_cast %24 : vector<1x2x128xbf16> to vector<2x128xbf16>
    %c26 = arith.constant 26 : index
    %c0_26 = arith.constant 0 : index
    %c0_27 = arith.constant 0 : index
    %26 = vector.load %arg0[%c26, %c0_26, %c0_27] : memref<32x2x128xbf16, #tpu.memory_space<vmem>>, vector<1x2x128xbf16>
    %27 = vector.shape_cast %26 : vector<1x2x128xbf16> to vector<2x128xbf16>
    %c28 = arith.constant 28 : index
    %c0_28 = arith.constant 0 : index
    %c0_29 = arith.constant 0 : index
    %28 = vector.load %arg0[%c28, %c0_28, %c0_29] : memref<32x2x128xbf16, #tpu.memory_space<vmem>>, vector<1x2x128xbf16>
    %29 = vector.shape_cast %28 : vector<1x2x128xbf16> to vector<2x128xbf16>
    %30 = tpu.concatenate %1, %3, %5, %7, %9, %11, %13, %15, %17, %19, %21, %23, %25, %27, %29 in 0 : vector<2x128xbf16>, vector<2x128xbf16>, vector<2x128xbf16>, vector<2x128xbf16>, vector<2x128xbf16>, vector<2x128xbf16>, vector<2x128xbf16>, vector<2x128xbf16>, vector<2x128xbf16>, vector<2x128xbf16>, vector<2x128xbf16>, vector<2x128xbf16>, vector<2x128xbf16>, vector<2x128xbf16>, vector<2x128xbf16> -> vector<30x128xbf16>
    %c1 = arith.constant 1 : index
    %c0_30 = arith.constant 0 : index
    %c0_31 = arith.constant 0 : index
    %31 = vector.load %arg0[%c1, %c0_30, %c0_31] : memref<32x2x128xbf16, #tpu.memory_space<vmem>>, vector<1x2x128xbf16>
    %32 = vector.shape_cast %31 : vector<1x2x128xbf16> to vector<2x128xbf16>
    %c3 = arith.constant 3 : index
    %c0_32 = arith.constant 0 : index
    %c0_33 = arith.constant 0 : index
    %33 = vector.load %arg0[%c3, %c0_32, %c0_33] : memref<32x2x128xbf16, #tpu.memory_space<vmem>>, vector<1x2x128xbf16>
    %34 = vector.shape_cast %33 : vector<1x2x128xbf16> to vector<2x128xbf16>
    %c5 = arith.constant 5 : index
    %c0_34 = arith.constant 0 : index
    %c0_35 = arith.constant 0 : index
    %35 = vector.load %arg0[%c5, %c0_34, %c0_35] : memref<32x2x128xbf16, #tpu.memory_space<vmem>>, vector<1x2x128xbf16>
    %36 = vector.shape_cast %35 : vector<1x2x128xbf16> to vector<2x128xbf16>
    %c7 = arith.constant 7 : index
    %c0_36 = arith.constant 0 : index
    %c0_37 = arith.constant 0 : index
    %37 = vector.load %arg0[%c7, %c0_36, %c0_37] : memref<32x2x128xbf16, #tpu.memory_space<vmem>>, vector<1x2x128xbf16>
    %38 = vector.shape_cast %37 : vector<1x2x128xbf16> to vector<2x128xbf16>
    %c9 = arith.constant 9 : index
    %c0_38 = arith.constant 0 : index
    %c0_39 = arith.constant 0 : index
    %39 = vector.load %arg0[%c9, %c0_38, %c0_39] : memref<32x2x128xbf16, #tpu.memory_space<vmem>>, vector<1x2x128xbf16>
    %40 = vector.shape_cast %39 : vector<1x2x128xbf16> to vector<2x128xbf16>
    %c11 = arith.constant 11 : index
    %c0_40 = arith.constant 0 : index
    %c0_41 = arith.constant 0 : index
    %41 = vector.load %arg0[%c11, %c0_40, %c0_41] : memref<32x2x128xbf16, #tpu.memory_space<vmem>>, vector<1x2x128xbf16>
    %42 = vector.shape_cast %41 : vector<1x2x128xbf16> to vector<2x128xbf16>
    %c13 = arith.constant 13 : index
    %c0_42 = arith.constant 0 : index
    %c0_43 = arith.constant 0 : index
    %43 = vector.load %arg0[%c13, %c0_42, %c0_43] : memref<32x2x128xbf16, #tpu.memory_space<vmem>>, vector<1x2x128xbf16>
    %44 = vector.shape_cast %43 : vector<1x2x128xbf16> to vector<2x128xbf16>
    %c15 = arith.constant 15 : index
    %c0_44 = arith.constant 0 : index
    %c0_45 = arith.constant 0 : index
    %45 = vector.load %arg0[%c15, %c0_44, %c0_45] : memref<32x2x128xbf16, #tpu.memory_space<vmem>>, vector<1x2x128xbf16>
    %46 = vector.shape_cast %45 : vector<1x2x128xbf16> to vector<2x128xbf16>
    %c17 = arith.constant 17 : index
    %c0_46 = arith.constant 0 : index
    %c0_47 = arith.constant 0 : index
    %47 = vector.load %arg0[%c17, %c0_46, %c0_47] : memref<32x2x128xbf16, #tpu.memory_space<vmem>>, vector<1x2x128xbf16>
    %48 = vector.shape_cast %47 : vector<1x2x128xbf16> to vector<2x128xbf16>
    %c19 = arith.constant 19 : index
    %c0_48 = arith.constant 0 : index
    %c0_49 = arith.constant 0 : index
    %49 = vector.load %arg0[%c19, %c0_48, %c0_49] : memref<32x2x128xbf16, #tpu.memory_space<vmem>>, vector<1x2x128xbf16>
    %50 = vector.shape_cast %49 : vector<1x2x128xbf16> to vector<2x128xbf16>
    %c21 = arith.constant 21 : index
    %c0_50 = arith.constant 0 : index
    %c0_51 = arith.constant 0 : index
    %51 = vector.load %arg0[%c21, %c0_50, %c0_51] : memref<32x2x128xbf16, #tpu.memory_space<vmem>>, vector<1x2x128xbf16>
    %52 = vector.shape_cast %51 : vector<1x2x128xbf16> to vector<2x128xbf16>
    %c23 = arith.constant 23 : index
    %c0_52 = arith.constant 0 : index
    %c0_53 = arith.constant 0 : index
    %53 = vector.load %arg0[%c23, %c0_52, %c0_53] : memref<32x2x128xbf16, #tpu.memory_space<vmem>>, vector<1x2x128xbf16>
    %54 = vector.shape_cast %53 : vector<1x2x128xbf16> to vector<2x128xbf16>
    %c25 = arith.constant 25 : index
    %c0_54 = arith.constant 0 : index
    %c0_55 = arith.constant 0 : index
    %55 = vector.load %arg0[%c25, %c0_54, %c0_55] : memref<32x2x128xbf16, #tpu.memory_space<vmem>>, vector<1x2x128xbf16>
    %56 = vector.shape_cast %55 : vector<1x2x128xbf16> to vector<2x128xbf16>
    %c27 = arith.constant 27 : index
    %c0_56 = arith.constant 0 : index
    %c0_57 = arith.constant 0 : index
    %57 = vector.load %arg0[%c27, %c0_56, %c0_57] : memref<32x2x128xbf16, #tpu.memory_space<vmem>>, vector<1x2x128xbf16>
    %58 = vector.shape_cast %57 : vector<1x2x128xbf16> to vector<2x128xbf16>
    %c29 = arith.constant 29 : index
    %c0_58 = arith.constant 0 : index
    %c0_59 = arith.constant 0 : index
    %59 = vector.load %arg0[%c29, %c0_58, %c0_59] : memref<32x2x128xbf16, #tpu.memory_space<vmem>>, vector<1x2x128xbf16>
    %60 = vector.shape_cast %59 : vector<1x2x128xbf16> to vector<2x128xbf16>
    %61 = tpu.concatenate %32, %34, %36, %38, %40, %42, %44, %46, %48, %50, %52, %54, %56, %58, %60 in 0 : vector<2x128xbf16>, vector<2x128xbf16>, vector<2x128xbf16>, vector<2x128xbf16>, vector<2x128xbf16>, vector<2x128xbf16>, vector<2x128xbf16>, vector<2x128xbf16>, vector<2x128xbf16>, vector<2x128xbf16>, vector<2x128xbf16>, vector<2x128xbf16>, vector<2x128xbf16>, vector<2x128xbf16>, vector<2x128xbf16> -> vector<30x128xbf16>
    %c2_60 = arith.constant 2 : index
    %c0_61 = arith.constant 0 : index
    %c0_62 = arith.constant 0 : index
    %62 = vector.load %arg0[%c2_60, %c0_61, %c0_62] : memref<32x2x128xbf16, #tpu.memory_space<vmem>>, vector<1x2x128xbf16>
    %63 = vector.shape_cast %62 : vector<1x2x128xbf16> to vector<2x128xbf16>
    %c4_63 = arith.constant 4 : index
    %c0_64 = arith.constant 0 : index
    %c0_65 = arith.constant 0 : index
    %64 = vector.load %arg0[%c4_63, %c0_64, %c0_65] : memref<32x2x128xbf16, #tpu.memory_space<vmem>>, vector<1x2x128xbf16>
    %65 = vector.shape_cast %64 : vector<1x2x128xbf16> to vector<2x128xbf16>
    %c6_66 = arith.constant 6 : index
    %c0_67 = arith.constant 0 : index
    %c0_68 = arith.constant 0 : index
    %66 = vector.load %arg0[%c6_66, %c0_67, %c0_68] : memref<32x2x128xbf16, #tpu.memory_space<vmem>>, vector<1x2x128xbf16>
    %67 = vector.shape_cast %66 : vector<1x2x128xbf16> to vector<2x128xbf16>
    %c8_69 = arith.constant 8 : index
    %c0_70 = arith.constant 0 : index
    %c0_71 = arith.constant 0 : index
    %68 = vector.load %arg0[%c8_69, %c0_70, %c0_71] : memref<32x2x128xbf16, #tpu.memory_space<vmem>>, vector<1x2x128xbf16>
    %69 = vector.shape_cast %68 : vector<1x2x128xbf16> to vector<2x128xbf16>
    %c10_72 = arith.constant 10 : index
    %c0_73 = arith.constant 0 : index
    %c0_74 = arith.constant 0 : index
    %70 = vector.load %arg0[%c10_72, %c0_73, %c0_74] : memref<32x2x128xbf16, #tpu.memory_space<vmem>>, vector<1x2x128xbf16>
    %71 = vector.shape_cast %70 : vector<1x2x128xbf16> to vector<2x128xbf16>
    %c12_75 = arith.constant 12 : index
    %c0_76 = arith.constant 0 : index
    %c0_77 = arith.constant 0 : index
    %72 = vector.load %arg0[%c12_75, %c0_76, %c0_77] : memref<32x2x128xbf16, #tpu.memory_space<vmem>>, vector<1x2x128xbf16>
    %73 = vector.shape_cast %72 : vector<1x2x128xbf16> to vector<2x128xbf16>
    %c14_78 = arith.constant 14 : index
    %c0_79 = arith.constant 0 : index
    %c0_80 = arith.constant 0 : index
    %74 = vector.load %arg0[%c14_78, %c0_79, %c0_80] : memref<32x2x128xbf16, #tpu.memory_space<vmem>>, vector<1x2x128xbf16>
    %75 = vector.shape_cast %74 : vector<1x2x128xbf16> to vector<2x128xbf16>
    %c16_81 = arith.constant 16 : index
    %c0_82 = arith.constant 0 : index
    %c0_83 = arith.constant 0 : index
    %76 = vector.load %arg0[%c16_81, %c0_82, %c0_83] : memref<32x2x128xbf16, #tpu.memory_space<vmem>>, vector<1x2x128xbf16>
    %77 = vector.shape_cast %76 : vector<1x2x128xbf16> to vector<2x128xbf16>
    %c18_84 = arith.constant 18 : index
    %c0_85 = arith.constant 0 : index
    %c0_86 = arith.constant 0 : index
    %78 = vector.load %arg0[%c18_84, %c0_85, %c0_86] : memref<32x2x128xbf16, #tpu.memory_space<vmem>>, vector<1x2x128xbf16>
    %79 = vector.shape_cast %78 : vector<1x2x128xbf16> to vector<2x128xbf16>
    %c20_87 = arith.constant 20 : index
    %c0_88 = arith.constant 0 : index
    %c0_89 = arith.constant 0 : index
    %80 = vector.load %arg0[%c20_87, %c0_88, %c0_89] : memref<32x2x128xbf16, #tpu.memory_space<vmem>>, vector<1x2x128xbf16>
    %81 = vector.shape_cast %80 : vector<1x2x128xbf16> to vector<2x128xbf16>
    %c22_90 = arith.constant 22 : index
    %c0_91 = arith.constant 0 : index
    %c0_92 = arith.constant 0 : index
    %82 = vector.load %arg0[%c22_90, %c0_91, %c0_92] : memref<32x2x128xbf16, #tpu.memory_space<vmem>>, vector<1x2x128xbf16>
    %83 = vector.shape_cast %82 : vector<1x2x128xbf16> to vector<2x128xbf16>
    %c24_93 = arith.constant 24 : index
    %c0_94 = arith.constant 0 : index
    %c0_95 = arith.constant 0 : index
    %84 = vector.load %arg0[%c24_93, %c0_94, %c0_95] : memref<32x2x128xbf16, #tpu.memory_space<vmem>>, vector<1x2x128xbf16>
    %85 = vector.shape_cast %84 : vector<1x2x128xbf16> to vector<2x128xbf16>
    %c26_96 = arith.constant 26 : index
    %c0_97 = arith.constant 0 : index
    %c0_98 = arith.constant 0 : index
    %86 = vector.load %arg0[%c26_96, %c0_97, %c0_98] : memref<32x2x128xbf16, #tpu.memory_space<vmem>>, vector<1x2x128xbf16>
    %87 = vector.shape_cast %86 : vector<1x2x128xbf16> to vector<2x128xbf16>
    %c28_99 = arith.constant 28 : index
    %c0_100 = arith.constant 0 : index
    %c0_101 = arith.constant 0 : index
    %88 = vector.load %arg0[%c28_99, %c0_100, %c0_101] : memref<32x2x128xbf16, #tpu.memory_space<vmem>>, vector<1x2x128xbf16>
    %89 = vector.shape_cast %88 : vector<1x2x128xbf16> to vector<2x128xbf16>
    %c30 = arith.constant 30 : index
    %c0_102 = arith.constant 0 : index
    %c0_103 = arith.constant 0 : index
    %90 = vector.load %arg0[%c30, %c0_102, %c0_103] : memref<32x2x128xbf16, #tpu.memory_space<vmem>>, vector<1x2x128xbf16>
    %91 = vector.shape_cast %90 : vector<1x2x128xbf16> to vector<2x128xbf16>
    %92 = tpu.concatenate %63, %65, %67, %69, %71, %73, %75, %77, %79, %81, %83, %85, %87, %89, %91 in 0 : vector<2x128xbf16>, vector<2x128xbf16>, vector<2x128xbf16>, vector<2x128xbf16>, vector<2x128xbf16>, vector<2x128xbf16>, vector<2x128xbf16>, vector<2x128xbf16>, vector<2x128xbf16>, vector<2x128xbf16>, vector<2x128xbf16>, vector<2x128xbf16>, vector<2x128xbf16>, vector<2x128xbf16>, vector<2x128xbf16> -> vector<30x128xbf16>
    %c3_104 = arith.constant 3 : index
    %c0_105 = arith.constant 0 : index
    %c0_106 = arith.constant 0 : index
    %93 = vector.load %arg0[%c3_104, %c0_105, %c0_106] : memref<32x2x128xbf16, #tpu.memory_space<vmem>>, vector<1x2x128xbf16>
    %94 = vector.shape_cast %93 : vector<1x2x128xbf16> to vector<2x128xbf16>
    %c5_107 = arith.constant 5 : index
    %c0_108 = arith.constant 0 : index
    %c0_109 = arith.constant 0 : index
    %95 = vector.load %arg0[%c5_107, %c0_108, %c0_109] : memref<32x2x128xbf16, #tpu.memory_space<vmem>>, vector<1x2x128xbf16>
    %96 = vector.shape_cast %95 : vector<1x2x128xbf16> to vector<2x128xbf16>
    %c7_110 = arith.constant 7 : index
    %c0_111 = arith.constant 0 : index
    %c0_112 = arith.constant 0 : index
    %97 = vector.load %arg0[%c7_110, %c0_111, %c0_112] : memref<32x2x128xbf16, #tpu.memory_space<vmem>>, vector<1x2x128xbf16>
    %98 = vector.shape_cast %97 : vector<1x2x128xbf16> to vector<2x128xbf16>
    %c9_113 = arith.constant 9 : index
    %c0_114 = arith.constant 0 : index
    %c0_115 = arith.constant 0 : index
    %99 = vector.load %arg0[%c9_113, %c0_114, %c0_115] : memref<32x2x128xbf16, #tpu.memory_space<vmem>>, vector<1x2x128xbf16>
    %100 = vector.shape_cast %99 : vector<1x2x128xbf16> to vector<2x128xbf16>
    %c11_116 = arith.constant 11 : index
    %c0_117 = arith.constant 0 : index
    %c0_118 = arith.constant 0 : index
    %101 = vector.load %arg0[%c11_116, %c0_117, %c0_118] : memref<32x2x128xbf16, #tpu.memory_space<vmem>>, vector<1x2x128xbf16>
    %102 = vector.shape_cast %101 : vector<1x2x128xbf16> to vector<2x128xbf16>
    %c13_119 = arith.constant 13 : index
    %c0_120 = arith.constant 0 : index
    %c0_121 = arith.constant 0 : index
    %103 = vector.load %arg0[%c13_119, %c0_120, %c0_121] : memref<32x2x128xbf16, #tpu.memory_space<vmem>>, vector<1x2x128xbf16>
    %104 = vector.shape_cast %103 : vector<1x2x128xbf16> to vector<2x128xbf16>
    %c15_122 = arith.constant 15 : index
    %c0_123 = arith.constant 0 : index
    %c0_124 = arith.constant 0 : index
    %105 = vector.load %arg0[%c15_122, %c0_123, %c0_124] : memref<32x2x128xbf16, #tpu.memory_space<vmem>>, vector<1x2x128xbf16>
    %106 = vector.shape_cast %105 : vector<1x2x128xbf16> to vector<2x128xbf16>
    %c17_125 = arith.constant 17 : index
    %c0_126 = arith.constant 0 : index
    %c0_127 = arith.constant 0 : index
    %107 = vector.load %arg0[%c17_125, %c0_126, %c0_127] : memref<32x2x128xbf16, #tpu.memory_space<vmem>>, vector<1x2x128xbf16>
    %108 = vector.shape_cast %107 : vector<1x2x128xbf16> to vector<2x128xbf16>
    %c19_128 = arith.constant 19 : index
    %c0_129 = arith.constant 0 : index
    %c0_130 = arith.constant 0 : index
    %109 = vector.load %arg0[%c19_128, %c0_129, %c0_130] : memref<32x2x128xbf16, #tpu.memory_space<vmem>>, vector<1x2x128xbf16>
    %110 = vector.shape_cast %109 : vector<1x2x128xbf16> to vector<2x128xbf16>
    %c21_131 = arith.constant 21 : index
    %c0_132 = arith.constant 0 : index
    %c0_133 = arith.constant 0 : index
    %111 = vector.load %arg0[%c21_131, %c0_132, %c0_133] : memref<32x2x128xbf16, #tpu.memory_space<vmem>>, vector<1x2x128xbf16>
    %112 = vector.shape_cast %111 : vector<1x2x128xbf16> to vector<2x128xbf16>
    %c23_134 = arith.constant 23 : index
    %c0_135 = arith.constant 0 : index
    %c0_136 = arith.constant 0 : index
    %113 = vector.load %arg0[%c23_134, %c0_135, %c0_136] : memref<32x2x128xbf16, #tpu.memory_space<vmem>>, vector<1x2x128xbf16>
    %114 = vector.shape_cast %113 : vector<1x2x128xbf16> to vector<2x128xbf16>
    %c25_137 = arith.constant 25 : index
    %c0_138 = arith.constant 0 : index
    %c0_139 = arith.constant 0 : index
    %115 = vector.load %arg0[%c25_137, %c0_138, %c0_139] : memref<32x2x128xbf16, #tpu.memory_space<vmem>>, vector<1x2x128xbf16>
    %116 = vector.shape_cast %115 : vector<1x2x128xbf16> to vector<2x128xbf16>
    %c27_140 = arith.constant 27 : index
    %c0_141 = arith.constant 0 : index
    %c0_142 = arith.constant 0 : index
    %117 = vector.load %arg0[%c27_140, %c0_141, %c0_142] : memref<32x2x128xbf16, #tpu.memory_space<vmem>>, vector<1x2x128xbf16>
    %118 = vector.shape_cast %117 : vector<1x2x128xbf16> to vector<2x128xbf16>
    %c29_143 = arith.constant 29 : index
    %c0_144 = arith.constant 0 : index
    %c0_145 = arith.constant 0 : index
    %119 = vector.load %arg0[%c29_143, %c0_144, %c0_145] : memref<32x2x128xbf16, #tpu.memory_space<vmem>>, vector<1x2x128xbf16>
    %120 = vector.shape_cast %119 : vector<1x2x128xbf16> to vector<2x128xbf16>
    %c31 = arith.constant 31 : index
    %c0_146 = arith.constant 0 : index
    %c0_147 = arith.constant 0 : index
    %121 = vector.load %arg0[%c31, %c0_146, %c0_147] : memref<32x2x128xbf16, #tpu.memory_space<vmem>>, vector<1x2x128xbf16>
    %122 = vector.shape_cast %121 : vector<1x2x128xbf16> to vector<2x128xbf16>
    %123 = tpu.concatenate %94, %96, %98, %100, %102, %104, %106, %108, %110, %112, %114, %116, %118, %120, %122 in 0 : vector<2x128xbf16>, vector<2x128xbf16>, vector<2x128xbf16>, vector<2x128xbf16>, vector<2x128xbf16>, vector<2x128xbf16>, vector<2x128xbf16>, vector<2x128xbf16>, vector<2x128xbf16>, vector<2x128xbf16>, vector<2x128xbf16>, vector<2x128xbf16>, vector<2x128xbf16>, vector<2x128xbf16>, vector<2x128xbf16> -> vector<30x128xbf16>
    %124 = tpu.concatenate %30, %61, %92, %123 in 1 : vector<30x128xbf16>, vector<30x128xbf16>, vector<30x128xbf16>, vector<30x128xbf16> -> vector<30x512xbf16>
    %c0_148 = arith.constant 0 : index
    %c0_149 = arith.constant 0 : index
    %125 = vector.load %arg1[%c0_148, %c0_149] : memref<512x120xbf16, #tpu.memory_space<vmem>>, vector<512x120xbf16>
    %cst = arith.constant dense<0.000000e+00> : vector<30x120xf32>
    %126 = tpu.matmul %124, %125, %cst {dimension_numbers = #tpu.dot_dimension_numbers<[1], [0], [0], [1], [0, 0, 1, 1], [], []>} : vector<30x512xbf16>, vector<512x120xbf16>, vector<30x120xf32> -> vector<30x120xf32>
    %c0_150 = arith.constant 0 : index
    %c0_151 = arith.constant 0 : index
    %127 = vector.load %arg2[%c0_150, %c0_151] : memref<1x120xf32, #tpu.memory_space<vmem>>, vector<1x120xf32>
    %c0_152 = arith.constant 0 : index
    %c0_153 = arith.constant 0 : index
    %128 = vector.load %arg3[%c0_152, %c0_153] : memref<1x8xf32, #tpu.memory_space<vmem>>, vector<1x8xf32>
    %c0_154 = arith.constant 0 : index
    %c0_155 = arith.constant 0 : index
    %129 = vector.load %arg4[%c0_154, %c0_155] : memref<1x8xf32, #tpu.memory_space<vmem>>, vector<1x8xf32>
    %130 = vector.broadcast %127 : vector<1x120xf32> to vector<30x120xf32>
    %131 = arith.addf %126, %130 : vector<30x120xf32>
    %cst_156 = arith.constant dense<0.000000e+00> : vector<120xf32>
    %132 = vector.multi_reduction <add>, %131, %cst_156 [0] : vector<30x120xf32> to vector<120xf32>
    %133 = vector.shape_cast %132 : vector<120xf32> to vector<1x120xf32>
    %134 = arith.mulf %131, %131 : vector<30x120xf32>
    %cst_157 = arith.constant dense<0.000000e+00> : vector<120xf32>
    %135 = vector.multi_reduction <add>, %134, %cst_157 [0] : vector<30x120xf32> to vector<120xf32>
    %136 = vector.shape_cast %135 : vector<120xf32> to vector<1x120xf32>
    %137 = vector.extract_strided_slice %133 {offsets = [0, 0], sizes = [1, 8], strides = [1, 1]} : vector<1x120xf32> to vector<1x8xf32>
    %138 = vector.extract_strided_slice %136 {offsets = [0, 0], sizes = [1, 8], strides = [1, 1]} : vector<1x120xf32> to vector<1x8xf32>
    %139 = vector.extract_strided_slice %133 {offsets = [0, 8], sizes = [1, 8], strides = [1, 1]} : vector<1x120xf32> to vector<1x8xf32>
    %140 = arith.addf %137, %139 : vector<1x8xf32>
    %141 = vector.extract_strided_slice %136 {offsets = [0, 8], sizes = [1, 8], strides = [1, 1]} : vector<1x120xf32> to vector<1x8xf32>
    %142 = arith.addf %138, %141 : vector<1x8xf32>
    %143 = vector.extract_strided_slice %133 {offsets = [0, 16], sizes = [1, 8], strides = [1, 1]} : vector<1x120xf32> to vector<1x8xf32>
    %144 = arith.addf %140, %143 : vector<1x8xf32>
    %145 = vector.extract_strided_slice %136 {offsets = [0, 16], sizes = [1, 8], strides = [1, 1]} : vector<1x120xf32> to vector<1x8xf32>
    %146 = arith.addf %142, %145 : vector<1x8xf32>
    %147 = vector.extract_strided_slice %133 {offsets = [0, 24], sizes = [1, 8], strides = [1, 1]} : vector<1x120xf32> to vector<1x8xf32>
    %148 = arith.addf %144, %147 : vector<1x8xf32>
    %149 = vector.extract_strided_slice %136 {offsets = [0, 24], sizes = [1, 8], strides = [1, 1]} : vector<1x120xf32> to vector<1x8xf32>
    %150 = arith.addf %146, %149 : vector<1x8xf32>
    %151 = vector.extract_strided_slice %133 {offsets = [0, 32], sizes = [1, 8], strides = [1, 1]} : vector<1x120xf32> to vector<1x8xf32>
    %152 = arith.addf %148, %151 : vector<1x8xf32>
    %153 = vector.extract_strided_slice %136 {offsets = [0, 32], sizes = [1, 8], strides = [1, 1]} : vector<1x120xf32> to vector<1x8xf32>
    %154 = arith.addf %150, %153 : vector<1x8xf32>
    %155 = vector.extract_strided_slice %133 {offsets = [0, 40], sizes = [1, 8], strides = [1, 1]} : vector<1x120xf32> to vector<1x8xf32>
    %156 = arith.addf %152, %155 : vector<1x8xf32>
    %157 = vector.extract_strided_slice %136 {offsets = [0, 40], sizes = [1, 8], strides = [1, 1]} : vector<1x120xf32> to vector<1x8xf32>
    %158 = arith.addf %154, %157 : vector<1x8xf32>
    %159 = vector.extract_strided_slice %133 {offsets = [0, 48], sizes = [1, 8], strides = [1, 1]} : vector<1x120xf32> to vector<1x8xf32>
    %160 = arith.addf %156, %159 : vector<1x8xf32>
    %161 = vector.extract_strided_slice %136 {offsets = [0, 48], sizes = [1, 8], strides = [1, 1]} : vector<1x120xf32> to vector<1x8xf32>
    %162 = arith.addf %158, %161 : vector<1x8xf32>
    %163 = vector.extract_strided_slice %133 {offsets = [0, 56], sizes = [1, 8], strides = [1, 1]} : vector<1x120xf32> to vector<1x8xf32>
    %164 = arith.addf %160, %163 : vector<1x8xf32>
    %165 = vector.extract_strided_slice %136 {offsets = [0, 56], sizes = [1, 8], strides = [1, 1]} : vector<1x120xf32> to vector<1x8xf32>
    %166 = arith.addf %162, %165 : vector<1x8xf32>
    %167 = vector.extract_strided_slice %133 {offsets = [0, 64], sizes = [1, 8], strides = [1, 1]} : vector<1x120xf32> to vector<1x8xf32>
    %168 = arith.addf %164, %167 : vector<1x8xf32>
    %169 = vector.extract_strided_slice %136 {offsets = [0, 64], sizes = [1, 8], strides = [1, 1]} : vector<1x120xf32> to vector<1x8xf32>
    %170 = arith.addf %166, %169 : vector<1x8xf32>
    %171 = vector.extract_strided_slice %133 {offsets = [0, 72], sizes = [1, 8], strides = [1, 1]} : vector<1x120xf32> to vector<1x8xf32>
    %172 = arith.addf %168, %171 : vector<1x8xf32>
    %173 = vector.extract_strided_slice %136 {offsets = [0, 72], sizes = [1, 8], strides = [1, 1]} : vector<1x120xf32> to vector<1x8xf32>
    %174 = arith.addf %170, %173 : vector<1x8xf32>
    %175 = vector.extract_strided_slice %133 {offsets = [0, 80], sizes = [1, 8], strides = [1, 1]} : vector<1x120xf32> to vector<1x8xf32>
    %176 = arith.addf %172, %175 : vector<1x8xf32>
    %177 = vector.extract_strided_slice %136 {offsets = [0, 80], sizes = [1, 8], strides = [1, 1]} : vector<1x120xf32> to vector<1x8xf32>
    %178 = arith.addf %174, %177 : vector<1x8xf32>
    %179 = vector.extract_strided_slice %133 {offsets = [0, 88], sizes = [1, 8], strides = [1, 1]} : vector<1x120xf32> to vector<1x8xf32>
    %180 = arith.addf %176, %179 : vector<1x8xf32>
    %181 = vector.extract_strided_slice %136 {offsets = [0, 88], sizes = [1, 8], strides = [1, 1]} : vector<1x120xf32> to vector<1x8xf32>
    %182 = arith.addf %178, %181 : vector<1x8xf32>
    %183 = vector.extract_strided_slice %133 {offsets = [0, 96], sizes = [1, 8], strides = [1, 1]} : vector<1x120xf32> to vector<1x8xf32>
    %184 = arith.addf %180, %183 : vector<1x8xf32>
    %185 = vector.extract_strided_slice %136 {offsets = [0, 96], sizes = [1, 8], strides = [1, 1]} : vector<1x120xf32> to vector<1x8xf32>
    %186 = arith.addf %182, %185 : vector<1x8xf32>
    %187 = vector.extract_strided_slice %133 {offsets = [0, 104], sizes = [1, 8], strides = [1, 1]} : vector<1x120xf32> to vector<1x8xf32>
    %188 = arith.addf %184, %187 : vector<1x8xf32>
    %189 = vector.extract_strided_slice %136 {offsets = [0, 104], sizes = [1, 8], strides = [1, 1]} : vector<1x120xf32> to vector<1x8xf32>
    %190 = arith.addf %186, %189 : vector<1x8xf32>
    %191 = vector.extract_strided_slice %133 {offsets = [0, 112], sizes = [1, 8], strides = [1, 1]} : vector<1x120xf32> to vector<1x8xf32>
    %192 = arith.addf %188, %191 : vector<1x8xf32>
    %193 = vector.extract_strided_slice %136 {offsets = [0, 112], sizes = [1, 8], strides = [1, 1]} : vector<1x120xf32> to vector<1x8xf32>
    %194 = arith.addf %190, %193 : vector<1x8xf32>
    %cst_158 = arith.constant 4.500000e+02 : f32
    %195 = vector.broadcast %cst_158 : f32 to vector<1x8xf32>
    %196 = arith.divf %192, %195 : vector<1x8xf32>
    %cst_159 = arith.constant 4.500000e+02 : f32
    %197 = vector.broadcast %cst_159 : f32 to vector<1x8xf32>
    %198 = arith.divf %194, %197 : vector<1x8xf32>
    %199 = arith.mulf %196, %196 : vector<1x8xf32>
    %200 = arith.subf %198, %199 : vector<1x8xf32>
    %cst_160 = arith.constant 9.99999974E-6 : f32
    %201 = vector.broadcast %cst_160 : f32 to vector<1x8xf32>
    %202 = arith.addf %200, %201 : vector<1x8xf32>
    %203 = math.rsqrt %202 : vector<1x8xf32>
    %204 = arith.mulf %128, %203 : vector<1x8xf32>
    %205 = arith.mulf %196, %204 : vector<1x8xf32>
    %206 = arith.subf %129, %205 : vector<1x8xf32>
    %207 = tpu.concatenate %204, %204, %204, %204, %204, %204, %204, %204, %204, %204, %204, %204, %204, %204, %204 in 1 : vector<1x8xf32>, vector<1x8xf32>, vector<1x8xf32>, vector<1x8xf32>, vector<1x8xf32>, vector<1x8xf32>, vector<1x8xf32>, vector<1x8xf32>, vector<1x8xf32>, vector<1x8xf32>, vector<1x8xf32>, vector<1x8xf32>, vector<1x8xf32>, vector<1x8xf32>, vector<1x8xf32> -> vector<1x120xf32>
    %208 = tpu.concatenate %206, %206, %206, %206, %206, %206, %206, %206, %206, %206, %206, %206, %206, %206, %206 in 1 : vector<1x8xf32>, vector<1x8xf32>, vector<1x8xf32>, vector<1x8xf32>, vector<1x8xf32>, vector<1x8xf32>, vector<1x8xf32>, vector<1x8xf32>, vector<1x8xf32>, vector<1x8xf32>, vector<1x8xf32>, vector<1x8xf32>, vector<1x8xf32>, vector<1x8xf32>, vector<1x8xf32> -> vector<1x120xf32>
    %209 = vector.broadcast %207 : vector<1x120xf32> to vector<30x120xf32>
    %210 = arith.mulf %131, %209 : vector<30x120xf32>
    %211 = vector.broadcast %208 : vector<1x120xf32> to vector<30x120xf32>
    %212 = arith.addf %210, %211 : vector<30x120xf32>
    %cst_161 = arith.constant 0.000000e+00 : f32
    %213 = vector.broadcast %cst_161 : f32 to vector<30x120xf32>
    %214 = arith.cmpf oge, %212, %213 : vector<30x120xf32>
    %cst_162 = arith.constant 2.000000e-01 : f32
    %215 = vector.broadcast %cst_162 : f32 to vector<30x120xf32>
    %216 = arith.mulf %215, %212 : vector<30x120xf32>
    %217 = arith.select %214, %212, %216 : vector<30x120xi1>, vector<30x120xf32>
    %218 = vector.extract_strided_slice %217 {offsets = [0, 0], sizes = [2, 120], strides = [1, 1]} : vector<30x120xf32> to vector<2x120xf32>
    %219 = arith.truncf %218 : vector<2x120xf32> to vector<2x120xbf16>
    %c0_163 = arith.constant 0 : index
    %c0_164 = arith.constant 0 : index
    %c0_165 = arith.constant 0 : index
    %220 = vector.load %arg12[%c0_163, %c0_164, %c0_165] : memref<15x2x120xbf16, #tpu.memory_space<vmem>>, vector<1x2x120xbf16>
    %221 = vector.shape_cast %220 : vector<1x2x120xbf16> to vector<2x120xbf16>
    %222 = vector.shape_cast %219 : vector<2x120xbf16> to vector<1x2x120xbf16>
    tpu.vector_store %arg12[%c0_163, %c0_164, %c0_165], %222 {strides = array<i32>} : memref<15x2x120xbf16, #tpu.memory_space<vmem>>, vector<1x2x120xbf16>,
    %223 = vector.extract_strided_slice %217 {offsets = [2, 0], sizes = [2, 120], strides = [1, 1]} : vector<30x120xf32> to vector<2x120xf32>
    %224 = arith.truncf %223 : vector<2x120xf32> to vector<2x120xbf16>
    %c1_166 = arith.constant 1 : index
    %c0_167 = arith.constant 0 : index
    %c0_168 = arith.constant 0 : index
    %225 = vector.load %arg12[%c1_166, %c0_167, %c0_168] : memref<15x2x120xbf16, #tpu.memory_space<vmem>>, vector<1x2x120xbf16>
    %226 = vector.shape_cast %225 : vector<1x2x120xbf16> to vector<2x120xbf16>
    %227 = vector.shape_cast %224 : vector<2x120xbf16> to vector<1x2x120xbf16>
    tpu.vector_store %arg12[%c1_166, %c0_167, %c0_168], %227 {strides = array<i32>} : memref<15x2x120xbf16, #tpu.memory_space<vmem>>, vector<1x2x120xbf16>,
    %228 = vector.extract_strided_slice %217 {offsets = [4, 0], sizes = [2, 120], strides = [1, 1]} : vector<30x120xf32> to vector<2x120xf32>
    %229 = arith.truncf %228 : vector<2x120xf32> to vector<2x120xbf16>
    %c2_169 = arith.constant 2 : index
    %c0_170 = arith.constant 0 : index
    %c0_171 = arith.constant 0 : index
    %230 = vector.load %arg12[%c2_169, %c0_170, %c0_171] : memref<15x2x120xbf16, #tpu.memory_space<vmem>>, vector<1x2x120xbf16>
    %231 = vector.shape_cast %230 : vector<1x2x120xbf16> to vector<2x120xbf16>
    %232 = vector.shape_cast %229 : vector<2x120xbf16> to vector<1x2x120xbf16>
    tpu.vector_store %arg12[%c2_169, %c0_170, %c0_171], %232 {strides = array<i32>} : memref<15x2x120xbf16, #tpu.memory_space<vmem>>, vector<1x2x120xbf16>,
    %233 = vector.extract_strided_slice %217 {offsets = [6, 0], sizes = [2, 120], strides = [1, 1]} : vector<30x120xf32> to vector<2x120xf32>
    %234 = arith.truncf %233 : vector<2x120xf32> to vector<2x120xbf16>
    %c3_172 = arith.constant 3 : index
    %c0_173 = arith.constant 0 : index
    %c0_174 = arith.constant 0 : index
    %235 = vector.load %arg12[%c3_172, %c0_173, %c0_174] : memref<15x2x120xbf16, #tpu.memory_space<vmem>>, vector<1x2x120xbf16>
    %236 = vector.shape_cast %235 : vector<1x2x120xbf16> to vector<2x120xbf16>
    %237 = vector.shape_cast %234 : vector<2x120xbf16> to vector<1x2x120xbf16>
    tpu.vector_store %arg12[%c3_172, %c0_173, %c0_174], %237 {strides = array<i32>} : memref<15x2x120xbf16, #tpu.memory_space<vmem>>, vector<1x2x120xbf16>,
    %238 = vector.extract_strided_slice %217 {offsets = [8, 0], sizes = [2, 120], strides = [1, 1]} : vector<30x120xf32> to vector<2x120xf32>
    %239 = arith.truncf %238 : vector<2x120xf32> to vector<2x120xbf16>
    %c4_175 = arith.constant 4 : index
    %c0_176 = arith.constant 0 : index
    %c0_177 = arith.constant 0 : index
    %240 = vector.load %arg12[%c4_175, %c0_176, %c0_177] : memref<15x2x120xbf16, #tpu.memory_space<vmem>>, vector<1x2x120xbf16>
    %241 = vector.shape_cast %240 : vector<1x2x120xbf16> to vector<2x120xbf16>
    %242 = vector.shape_cast %239 : vector<2x120xbf16> to vector<1x2x120xbf16>
    tpu.vector_store %arg12[%c4_175, %c0_176, %c0_177], %242 {strides = array<i32>} : memref<15x2x120xbf16, #tpu.memory_space<vmem>>, vector<1x2x120xbf16>,
    %243 = vector.extract_strided_slice %217 {offsets = [10, 0], sizes = [2, 120], strides = [1, 1]} : vector<30x120xf32> to vector<2x120xf32>
    %244 = arith.truncf %243 : vector<2x120xf32> to vector<2x120xbf16>
    %c5_178 = arith.constant 5 : index
    %c0_179 = arith.constant 0 : index
    %c0_180 = arith.constant 0 : index
    %245 = vector.load %arg12[%c5_178, %c0_179, %c0_180] : memref<15x2x120xbf16, #tpu.memory_space<vmem>>, vector<1x2x120xbf16>
    %246 = vector.shape_cast %245 : vector<1x2x120xbf16> to vector<2x120xbf16>
    %247 = vector.shape_cast %244 : vector<2x120xbf16> to vector<1x2x120xbf16>
    tpu.vector_store %arg12[%c5_178, %c0_179, %c0_180], %247 {strides = array<i32>} : memref<15x2x120xbf16, #tpu.memory_space<vmem>>, vector<1x2x120xbf16>,
    %248 = vector.extract_strided_slice %217 {offsets = [12, 0], sizes = [2, 120], strides = [1, 1]} : vector<30x120xf32> to vector<2x120xf32>
    %249 = arith.truncf %248 : vector<2x120xf32> to vector<2x120xbf16>
    %c6_181 = arith.constant 6 : index
    %c0_182 = arith.constant 0 : index
    %c0_183 = arith.constant 0 : index
    %250 = vector.load %arg12[%c6_181, %c0_182, %c0_183] : memref<15x2x120xbf16, #tpu.memory_space<vmem>>, vector<1x2x120xbf16>
    %251 = vector.shape_cast %250 : vector<1x2x120xbf16> to vector<2x120xbf16>
    %252 = vector.shape_cast %249 : vector<2x120xbf16> to vector<1x2x120xbf16>
    tpu.vector_store %arg12[%c6_181, %c0_182, %c0_183], %252 {strides = array<i32>} : memref<15x2x120xbf16, #tpu.memory_space<vmem>>, vector<1x2x120xbf16>,
    %253 = vector.extract_strided_slice %217 {offsets = [14, 0], sizes = [2, 120], strides = [1, 1]} : vector<30x120xf32> to vector<2x120xf32>
    %254 = arith.truncf %253 : vector<2x120xf32> to vector<2x120xbf16>
    %c7_184 = arith.constant 7 : index
    %c0_185 = arith.constant 0 : index
    %c0_186 = arith.constant 0 : index
    %255 = vector.load %arg12[%c7_184, %c0_185, %c0_186] : memref<15x2x120xbf16, #tpu.memory_space<vmem>>, vector<1x2x120xbf16>
    %256 = vector.shape_cast %255 : vector<1x2x120xbf16> to vector<2x120xbf16>
    %257 = vector.shape_cast %254 : vector<2x120xbf16> to vector<1x2x120xbf16>
    tpu.vector_store %arg12[%c7_184, %c0_185, %c0_186], %257 {strides = array<i32>} : memref<15x2x120xbf16, #tpu.memory_space<vmem>>, vector<1x2x120xbf16>,
    %258 = vector.extract_strided_slice %217 {offsets = [16, 0], sizes = [2, 120], strides = [1, 1]} : vector<30x120xf32> to vector<2x120xf32>
    %259 = arith.truncf %258 : vector<2x120xf32> to vector<2x120xbf16>
    %c8_187 = arith.constant 8 : index
    %c0_188 = arith.constant 0 : index
    %c0_189 = arith.constant 0 : index
    %260 = vector.load %arg12[%c8_187, %c0_188, %c0_189] : memref<15x2x120xbf16, #tpu.memory_space<vmem>>, vector<1x2x120xbf16>
    %261 = vector.shape_cast %260 : vector<1x2x120xbf16> to vector<2x120xbf16>
    %262 = vector.shape_cast %259 : vector<2x120xbf16> to vector<1x2x120xbf16>
    tpu.vector_store %arg12[%c8_187, %c0_188, %c0_189], %262 {strides = array<i32>} : memref<15x2x120xbf16, #tpu.memory_space<vmem>>, vector<1x2x120xbf16>,
    %263 = vector.extract_strided_slice %217 {offsets = [18, 0], sizes = [2, 120], strides = [1, 1]} : vector<30x120xf32> to vector<2x120xf32>
    %264 = arith.truncf %263 : vector<2x120xf32> to vector<2x120xbf16>
    %c9_190 = arith.constant 9 : index
    %c0_191 = arith.constant 0 : index
    %c0_192 = arith.constant 0 : index
    %265 = vector.load %arg12[%c9_190, %c0_191, %c0_192] : memref<15x2x120xbf16, #tpu.memory_space<vmem>>, vector<1x2x120xbf16>
    %266 = vector.shape_cast %265 : vector<1x2x120xbf16> to vector<2x120xbf16>
    %267 = vector.shape_cast %264 : vector<2x120xbf16> to vector<1x2x120xbf16>
    tpu.vector_store %arg12[%c9_190, %c0_191, %c0_192], %267 {strides = array<i32>} : memref<15x2x120xbf16, #tpu.memory_space<vmem>>, vector<1x2x120xbf16>,
    %268 = vector.extract_strided_slice %217 {offsets = [20, 0], sizes = [2, 120], strides = [1, 1]} : vector<30x120xf32> to vector<2x120xf32>
    %269 = arith.truncf %268 : vector<2x120xf32> to vector<2x120xbf16>
    %c10_193 = arith.constant 10 : index
    %c0_194 = arith.constant 0 : index
    %c0_195 = arith.constant 0 : index
    %270 = vector.load %arg12[%c10_193, %c0_194, %c0_195] : memref<15x2x120xbf16, #tpu.memory_space<vmem>>, vector<1x2x120xbf16>
    %271 = vector.shape_cast %270 : vector<1x2x120xbf16> to vector<2x120xbf16>
    %272 = vector.shape_cast %269 : vector<2x120xbf16> to vector<1x2x120xbf16>
    tpu.vector_store %arg12[%c10_193, %c0_194, %c0_195], %272 {strides = array<i32>} : memref<15x2x120xbf16, #tpu.memory_space<vmem>>, vector<1x2x120xbf16>,
    %273 = vector.extract_strided_slice %217 {offsets = [22, 0], sizes = [2, 120], strides = [1, 1]} : vector<30x120xf32> to vector<2x120xf32>
    %274 = arith.truncf %273 : vector<2x120xf32> to vector<2x120xbf16>
    %c11_196 = arith.constant 11 : index
    %c0_197 = arith.constant 0 : index
    %c0_198 = arith.constant 0 : index
    %275 = vector.load %arg12[%c11_196, %c0_197, %c0_198] : memref<15x2x120xbf16, #tpu.memory_space<vmem>>, vector<1x2x120xbf16>
    %276 = vector.shape_cast %275 : vector<1x2x120xbf16> to vector<2x120xbf16>
    %277 = vector.shape_cast %274 : vector<2x120xbf16> to vector<1x2x120xbf16>
    tpu.vector_store %arg12[%c11_196, %c0_197, %c0_198], %277 {strides = array<i32>} : memref<15x2x120xbf16, #tpu.memory_space<vmem>>, vector<1x2x120xbf16>,
    %278 = vector.extract_strided_slice %217 {offsets = [24, 0], sizes = [2, 120], strides = [1, 1]} : vector<30x120xf32> to vector<2x120xf32>
    %279 = arith.truncf %278 : vector<2x120xf32> to vector<2x120xbf16>
    %c12_199 = arith.constant 12 : index
    %c0_200 = arith.constant 0 : index
    %c0_201 = arith.constant 0 : index
    %280 = vector.load %arg12[%c12_199, %c0_200, %c0_201] : memref<15x2x120xbf16, #tpu.memory_space<vmem>>, vector<1x2x120xbf16>
    %281 = vector.shape_cast %280 : vector<1x2x120xbf16> to vector<2x120xbf16>
    %282 = vector.shape_cast %279 : vector<2x120xbf16> to vector<1x2x120xbf16>
    tpu.vector_store %arg12[%c12_199, %c0_200, %c0_201], %282 {strides = array<i32>} : memref<15x2x120xbf16, #tpu.memory_space<vmem>>, vector<1x2x120xbf16>,
    %283 = vector.extract_strided_slice %217 {offsets = [26, 0], sizes = [2, 120], strides = [1, 1]} : vector<30x120xf32> to vector<2x120xf32>
    %284 = arith.truncf %283 : vector<2x120xf32> to vector<2x120xbf16>
    %c13_202 = arith.constant 13 : index
    %c0_203 = arith.constant 0 : index
    %c0_204 = arith.constant 0 : index
    %285 = vector.load %arg12[%c13_202, %c0_203, %c0_204] : memref<15x2x120xbf16, #tpu.memory_space<vmem>>, vector<1x2x120xbf16>
    %286 = vector.shape_cast %285 : vector<1x2x120xbf16> to vector<2x120xbf16>
    %287 = vector.shape_cast %284 : vector<2x120xbf16> to vector<1x2x120xbf16>
    tpu.vector_store %arg12[%c13_202, %c0_203, %c0_204], %287 {strides = array<i32>} : memref<15x2x120xbf16, #tpu.memory_space<vmem>>, vector<1x2x120xbf16>,
    %288 = vector.extract_strided_slice %217 {offsets = [28, 0], sizes = [2, 120], strides = [1, 1]} : vector<30x120xf32> to vector<2x120xf32>
    %289 = arith.truncf %288 : vector<2x120xf32> to vector<2x120xbf16>
    %c14_205 = arith.constant 14 : index
    %c0_206 = arith.constant 0 : index
    %c0_207 = arith.constant 0 : index
    %290 = vector.load %arg12[%c14_205, %c0_206, %c0_207] : memref<15x2x120xbf16, #tpu.memory_space<vmem>>, vector<1x2x120xbf16>
    %291 = vector.shape_cast %290 : vector<1x2x120xbf16> to vector<2x120xbf16>
    %292 = vector.shape_cast %289 : vector<2x120xbf16> to vector<1x2x120xbf16>
    tpu.vector_store %arg12[%c14_205, %c0_206, %c0_207], %292 {strides = array<i32>} : memref<15x2x120xbf16, #tpu.memory_space<vmem>>, vector<1x2x120xbf16>,
    %c0_208 = arith.constant 0 : index
    %c0_209 = arith.constant 0 : index
    %c0_210 = arith.constant 0 : index
    %293 = vector.load %arg12[%c0_208, %c0_209, %c0_210] : memref<15x2x120xbf16, #tpu.memory_space<vmem>>, vector<1x2x120xbf16>
    %294 = vector.shape_cast %293 : vector<1x2x120xbf16> to vector<2x120xbf16>
    %c2_211 = arith.constant 2 : index
    %c0_212 = arith.constant 0 : index
    %c0_213 = arith.constant 0 : index
    %295 = vector.load %arg12[%c2_211, %c0_212, %c0_213] : memref<15x2x120xbf16, #tpu.memory_space<vmem>>, vector<1x2x120xbf16>
    %296 = vector.shape_cast %295 : vector<1x2x120xbf16> to vector<2x120xbf16>
    %c4_214 = arith.constant 4 : index
    %c0_215 = arith.constant 0 : index
    %c0_216 = arith.constant 0 : index
    %297 = vector.load %arg12[%c4_214, %c0_215, %c0_216] : memref<15x2x120xbf16, #tpu.memory_space<vmem>>, vector<1x2x120xbf16>
    %298 = vector.shape_cast %297 : vector<1x2x120xbf16> to vector<2x120xbf16>
    %c6_217 = arith.constant 6 : index
    %c0_218 = arith.constant 0 : index
    %c0_219 = arith.constant 0 : index
    %299 = vector.load %arg12[%c6_217, %c0_218, %c0_219] : memref<15x2x120xbf16, #tpu.memory_space<vmem>>, vector<1x2x120xbf16>
    %300 = vector.shape_cast %299 : vector<1x2x120xbf16> to vector<2x120xbf16>
    %c8_220 = arith.constant 8 : index
    %c0_221 = arith.constant 0 : index
    %c0_222 = arith.constant 0 : index
    %301 = vector.load %arg12[%c8_220, %c0_221, %c0_222] : memref<15x2x120xbf16, #tpu.memory_space<vmem>>, vector<1x2x120xbf16>
    %302 = vector.shape_cast %301 : vector<1x2x120xbf16> to vector<2x120xbf16>
    %c10_223 = arith.constant 10 : index
    %c0_224 = arith.constant 0 : index
    %c0_225 = arith.constant 0 : index
    %303 = vector.load %arg12[%c10_223, %c0_224, %c0_225] : memref<15x2x120xbf16, #tpu.memory_space<vmem>>, vector<1x2x120xbf16>
    %304 = vector.shape_cast %303 : vector<1x2x120xbf16> to vector<2x120xbf16>
    %305 = tpu.concatenate %294, %296, %298, %300, %302, %304 in 0 : vector<2x120xbf16>, vector<2x120xbf16>, vector<2x120xbf16>, vector<2x120xbf16>, vector<2x120xbf16>, vector<2x120xbf16> -> vector<12x120xbf16>
    %c1_226 = arith.constant 1 : index
    %c0_227 = arith.constant 0 : index
    %c0_228 = arith.constant 0 : index
    %306 = vector.load %arg12[%c1_226, %c0_227, %c0_228] : memref<15x2x120xbf16, #tpu.memory_space<vmem>>, vector<1x2x120xbf16>
    %307 = vector.shape_cast %306 : vector<1x2x120xbf16> to vector<2x120xbf16>
    %c3_229 = arith.constant 3 : index
    %c0_230 = arith.constant 0 : index
    %c0_231 = arith.constant 0 : index
    %308 = vector.load %arg12[%c3_229, %c0_230, %c0_231] : memref<15x2x120xbf16, #tpu.memory_space<vmem>>, vector<1x2x120xbf16>
    %309 = vector.shape_cast %308 : vector<1x2x120xbf16> to vector<2x120xbf16>
    %c5_232 = arith.constant 5 : index
    %c0_233 = arith.constant 0 : index
    %c0_234 = arith.constant 0 : index
    %310 = vector.load %arg12[%c5_232, %c0_233, %c0_234] : memref<15x2x120xbf16, #tpu.memory_space<vmem>>, vector<1x2x120xbf16>
    %311 = vector.shape_cast %310 : vector<1x2x120xbf16> to vector<2x120xbf16>
    %c7_235 = arith.constant 7 : index
    %c0_236 = arith.constant 0 : index
    %c0_237 = arith.constant 0 : index
    %312 = vector.load %arg12[%c7_235, %c0_236, %c0_237] : memref<15x2x120xbf16, #tpu.memory_space<vmem>>, vector<1x2x120xbf16>
    %313 = vector.shape_cast %312 : vector<1x2x120xbf16> to vector<2x120xbf16>
    %c9_238 = arith.constant 9 : index
    %c0_239 = arith.constant 0 : index
    %c0_240 = arith.constant 0 : index
    %314 = vector.load %arg12[%c9_238, %c0_239, %c0_240] : memref<15x2x120xbf16, #tpu.memory_space<vmem>>, vector<1x2x120xbf16>
    %315 = vector.shape_cast %314 : vector<1x2x120xbf16> to vector<2x120xbf16>
    %c11_241 = arith.constant 11 : index
    %c0_242 = arith.constant 0 : index
    %c0_243 = arith.constant 0 : index
    %316 = vector.load %arg12[%c11_241, %c0_242, %c0_243] : memref<15x2x120xbf16, #tpu.memory_space<vmem>>, vector<1x2x120xbf16>
    %317 = vector.shape_cast %316 : vector<1x2x120xbf16> to vector<2x120xbf16>
    %318 = tpu.concatenate %307, %309, %311, %313, %315, %317 in 0 : vector<2x120xbf16>, vector<2x120xbf16>, vector<2x120xbf16>, vector<2x120xbf16>, vector<2x120xbf16>, vector<2x120xbf16> -> vector<12x120xbf16>
    %c2_244 = arith.constant 2 : index
    %c0_245 = arith.constant 0 : index
    %c0_246 = arith.constant 0 : index
    %319 = vector.load %arg12[%c2_244, %c0_245, %c0_246] : memref<15x2x120xbf16, #tpu.memory_space<vmem>>, vector<1x2x120xbf16>
    %320 = vector.shape_cast %319 : vector<1x2x120xbf16> to vector<2x120xbf16>
    %c4_247 = arith.constant 4 : index
    %c0_248 = arith.constant 0 : index
    %c0_249 = arith.constant 0 : index
    %321 = vector.load %arg12[%c4_247, %c0_248, %c0_249] : memref<15x2x120xbf16, #tpu.memory_space<vmem>>, vector<1x2x120xbf16>
    %322 = vector.shape_cast %321 : vector<1x2x120xbf16> to vector<2x120xbf16>
    %c6_250 = arith.constant 6 : index
    %c0_251 = arith.constant 0 : index
    %c0_252 = arith.constant 0 : index
    %323 = vector.load %arg12[%c6_250, %c0_251, %c0_252] : memref<15x2x120xbf16, #tpu.memory_space<vmem>>, vector<1x2x120xbf16>
    %324 = vector.shape_cast %323 : vector<1x2x120xbf16> to vector<2x120xbf16>
    %c8_253 = arith.constant 8 : index
    %c0_254 = arith.constant 0 : index
    %c0_255 = arith.constant 0 : index
    %325 = vector.load %arg12[%c8_253, %c0_254, %c0_255] : memref<15x2x120xbf16, #tpu.memory_space<vmem>>, vector<1x2x120xbf16>
    %326 = vector.shape_cast %325 : vector<1x2x120xbf16> to vector<2x120xbf16>
    %c10_256 = arith.constant 10 : index
    %c0_257 = arith.constant 0 : index
    %c0_258 = arith.constant 0 : index
    %327 = vector.load %arg12[%c10_256, %c0_257, %c0_258] : memref<15x2x120xbf16, #tpu.memory_space<vmem>>, vector<1x2x120xbf16>
    %328 = vector.shape_cast %327 : vector<1x2x120xbf16> to vector<2x120xbf16>
    %c12_259 = arith.constant 12 : index
    %c0_260 = arith.constant 0 : index
    %c0_261 = arith.constant 0 : index
    %329 = vector.load %arg12[%c12_259, %c0_260, %c0_261] : memref<15x2x120xbf16, #tpu.memory_space<vmem>>, vector<1x2x120xbf16>
    %330 = vector.shape_cast %329 : vector<1x2x120xbf16> to vector<2x120xbf16>
    %331 = tpu.concatenate %320, %322, %324, %326, %328, %330 in 0 : vector<2x120xbf16>, vector<2x120xbf16>, vector<2x120xbf16>, vector<2x120xbf16>, vector<2x120xbf16>, vector<2x120xbf16> -> vector<12x120xbf16>
    %c3_262 = arith.constant 3 : index
    %c0_263 = arith.constant 0 : index
    %c0_264 = arith.constant 0 : index
    %332 = vector.load %arg12[%c3_262, %c0_263, %c0_264] : memref<15x2x120xbf16, #tpu.memory_space<vmem>>, vector<1x2x120xbf16>
    %333 = vector.shape_cast %332 : vector<1x2x120xbf16> to vector<2x120xbf16>
    %c5_265 = arith.constant 5 : index
    %c0_266 = arith.constant 0 : index
    %c0_267 = arith.constant 0 : index
    %334 = vector.load %arg12[%c5_265, %c0_266, %c0_267] : memref<15x2x120xbf16, #tpu.memory_space<vmem>>, vector<1x2x120xbf16>
    %335 = vector.shape_cast %334 : vector<1x2x120xbf16> to vector<2x120xbf16>
    %c7_268 = arith.constant 7 : index
    %c0_269 = arith.constant 0 : index
    %c0_270 = arith.constant 0 : index
    %336 = vector.load %arg12[%c7_268, %c0_269, %c0_270] : memref<15x2x120xbf16, #tpu.memory_space<vmem>>, vector<1x2x120xbf16>
    %337 = vector.shape_cast %336 : vector<1x2x120xbf16> to vector<2x120xbf16>
    %c9_271 = arith.constant 9 : index
    %c0_272 = arith.constant 0 : index
    %c0_273 = arith.constant 0 : index
    %338 = vector.load %arg12[%c9_271, %c0_272, %c0_273] : memref<15x2x120xbf16, #tpu.memory_space<vmem>>, vector<1x2x120xbf16>
    %339 = vector.shape_cast %338 : vector<1x2x120xbf16> to vector<2x120xbf16>
    %c11_274 = arith.constant 11 : index
    %c0_275 = arith.constant 0 : index
    %c0_276 = arith.constant 0 : index
    %340 = vector.load %arg12[%c11_274, %c0_275, %c0_276] : memref<15x2x120xbf16, #tpu.memory_space<vmem>>, vector<1x2x120xbf16>
    %341 = vector.shape_cast %340 : vector<1x2x120xbf16> to vector<2x120xbf16>
    %c13_277 = arith.constant 13 : index
    %c0_278 = arith.constant 0 : index
    %c0_279 = arith.constant 0 : index
    %342 = vector.load %arg12[%c13_277, %c0_278, %c0_279] : memref<15x2x120xbf16, #tpu.memory_space<vmem>>, vector<1x2x120xbf16>
    %343 = vector.shape_cast %342 : vector<1x2x120xbf16> to vector<2x120xbf16>
    %344 = tpu.concatenate %333, %335, %337, %339, %341, %343 in 0 : vector<2x120xbf16>, vector<2x120xbf16>, vector<2x120xbf16>, vector<2x120xbf16>, vector<2x120xbf16>, vector<2x120xbf16> -> vector<12x120xbf16>
    %345 = tpu.concatenate %305, %318, %331, %344 in 1 : vector<12x120xbf16>, vector<12x120xbf16>, vector<12x120xbf16>, vector<12x120xbf16> -> vector<12x480xbf16>
    %c0_280 = arith.constant 0 : index
    %c0_281 = arith.constant 0 : index
    %346 = vector.load %arg5[%c0_280, %c0_281] : memref<480x96xbf16, #tpu.memory_space<vmem>>, vector<480x96xbf16>
    %cst_282 = arith.constant dense<0.000000e+00> : vector<12x96xf32>
    %347 = tpu.matmul %345, %346, %cst_282 {dimension_numbers = #tpu.dot_dimension_numbers<[1], [0], [0], [1], [0, 0, 1, 1], [], []>} : vector<12x480xbf16>, vector<480x96xbf16>, vector<12x96xf32> -> vector<12x96xf32>
    %c0_283 = arith.constant 0 : index
    %c0_284 = arith.constant 0 : index
    %348 = vector.load %arg6[%c0_283, %c0_284] : memref<1x96xf32, #tpu.memory_space<vmem>>, vector<1x96xf32>
    %c0_285 = arith.constant 0 : index
    %c0_286 = arith.constant 0 : index
    %349 = vector.load %arg7[%c0_285, %c0_286] : memref<1x16xf32, #tpu.memory_space<vmem>>, vector<1x16xf32>
    %c0_287 = arith.constant 0 : index
    %c0_288 = arith.constant 0 : index
    %350 = vector.load %arg8[%c0_287, %c0_288] : memref<1x16xf32, #tpu.memory_space<vmem>>, vector<1x16xf32>
    %351 = vector.broadcast %348 : vector<1x96xf32> to vector<12x96xf32>
    %352 = arith.addf %347, %351 : vector<12x96xf32>
    %cst_289 = arith.constant dense<0.000000e+00> : vector<96xf32>
    %353 = vector.multi_reduction <add>, %352, %cst_289 [0] : vector<12x96xf32> to vector<96xf32>
    %354 = vector.shape_cast %353 : vector<96xf32> to vector<1x96xf32>
    %355 = arith.mulf %352, %352 : vector<12x96xf32>
    %cst_290 = arith.constant dense<0.000000e+00> : vector<96xf32>
    %356 = vector.multi_reduction <add>, %355, %cst_290 [0] : vector<12x96xf32> to vector<96xf32>
    %357 = vector.shape_cast %356 : vector<96xf32> to vector<1x96xf32>
    %358 = vector.extract_strided_slice %354 {offsets = [0, 0], sizes = [1, 16], strides = [1, 1]} : vector<1x96xf32> to vector<1x16xf32>
    %359 = vector.extract_strided_slice %357 {offsets = [0, 0], sizes = [1, 16], strides = [1, 1]} : vector<1x96xf32> to vector<1x16xf32>
    %360 = vector.extract_strided_slice %354 {offsets = [0, 16], sizes = [1, 16], strides = [1, 1]} : vector<1x96xf32> to vector<1x16xf32>
    %361 = arith.addf %358, %360 : vector<1x16xf32>
    %362 = vector.extract_strided_slice %357 {offsets = [0, 16], sizes = [1, 16], strides = [1, 1]} : vector<1x96xf32> to vector<1x16xf32>
    %363 = arith.addf %359, %362 : vector<1x16xf32>
    %364 = vector.extract_strided_slice %354 {offsets = [0, 32], sizes = [1, 16], strides = [1, 1]} : vector<1x96xf32> to vector<1x16xf32>
    %365 = arith.addf %361, %364 : vector<1x16xf32>
    %366 = vector.extract_strided_slice %357 {offsets = [0, 32], sizes = [1, 16], strides = [1, 1]} : vector<1x96xf32> to vector<1x16xf32>
    %367 = arith.addf %363, %366 : vector<1x16xf32>
    %368 = vector.extract_strided_slice %354 {offsets = [0, 48], sizes = [1, 16], strides = [1, 1]} : vector<1x96xf32> to vector<1x16xf32>
    %369 = arith.addf %365, %368 : vector<1x16xf32>
    %370 = vector.extract_strided_slice %357 {offsets = [0, 48], sizes = [1, 16], strides = [1, 1]} : vector<1x96xf32> to vector<1x16xf32>
    %371 = arith.addf %367, %370 : vector<1x16xf32>
    %372 = vector.extract_strided_slice %354 {offsets = [0, 64], sizes = [1, 16], strides = [1, 1]} : vector<1x96xf32> to vector<1x16xf32>
    %373 = arith.addf %369, %372 : vector<1x16xf32>
    %374 = vector.extract_strided_slice %357 {offsets = [0, 64], sizes = [1, 16], strides = [1, 1]} : vector<1x96xf32> to vector<1x16xf32>
    %375 = arith.addf %371, %374 : vector<1x16xf32>
    %376 = vector.extract_strided_slice %354 {offsets = [0, 80], sizes = [1, 16], strides = [1, 1]} : vector<1x96xf32> to vector<1x16xf32>
    %377 = arith.addf %373, %376 : vector<1x16xf32>
    %378 = vector.extract_strided_slice %357 {offsets = [0, 80], sizes = [1, 16], strides = [1, 1]} : vector<1x96xf32> to vector<1x16xf32>
    %379 = arith.addf %375, %378 : vector<1x16xf32>
    %cst_291 = arith.constant 7.200000e+01 : f32
    %380 = vector.broadcast %cst_291 : f32 to vector<1x16xf32>
    %381 = arith.divf %377, %380 : vector<1x16xf32>
    %cst_292 = arith.constant 7.200000e+01 : f32
    %382 = vector.broadcast %cst_292 : f32 to vector<1x16xf32>
    %383 = arith.divf %379, %382 : vector<1x16xf32>
    %384 = arith.mulf %381, %381 : vector<1x16xf32>
    %385 = arith.subf %383, %384 : vector<1x16xf32>
    %cst_293 = arith.constant 9.99999974E-6 : f32
    %386 = vector.broadcast %cst_293 : f32 to vector<1x16xf32>
    %387 = arith.addf %385, %386 : vector<1x16xf32>
    %388 = math.rsqrt %387 : vector<1x16xf32>
    %389 = arith.mulf %349, %388 : vector<1x16xf32>
    %390 = arith.mulf %381, %389 : vector<1x16xf32>
    %391 = arith.subf %350, %390 : vector<1x16xf32>
    %392 = tpu.concatenate %389, %389, %389, %389, %389, %389 in 1 : vector<1x16xf32>, vector<1x16xf32>, vector<1x16xf32>, vector<1x16xf32>, vector<1x16xf32>, vector<1x16xf32> -> vector<1x96xf32>
    %393 = tpu.concatenate %391, %391, %391, %391, %391, %391 in 1 : vector<1x16xf32>, vector<1x16xf32>, vector<1x16xf32>, vector<1x16xf32>, vector<1x16xf32>, vector<1x16xf32> -> vector<1x96xf32>
    %394 = vector.broadcast %392 : vector<1x96xf32> to vector<12x96xf32>
    %395 = arith.mulf %352, %394 : vector<12x96xf32>
    %396 = vector.broadcast %393 : vector<1x96xf32> to vector<12x96xf32>
    %397 = arith.addf %395, %396 : vector<12x96xf32>
    %cst_294 = arith.constant 0.000000e+00 : f32
    %398 = vector.broadcast %cst_294 : f32 to vector<12x96xf32>
    %399 = arith.cmpf oge, %397, %398 : vector<12x96xf32>
    %cst_295 = arith.constant 2.000000e-01 : f32
    %400 = vector.broadcast %cst_295 : f32 to vector<12x96xf32>
    %401 = arith.mulf %400, %397 : vector<12x96xf32>
    %402 = arith.select %399, %397, %401 : vector<12x96xi1>, vector<12x96xf32>
    %403 = vector.extract_strided_slice %402 {offsets = [0, 0], sizes = [2, 96], strides = [1, 1]} : vector<12x96xf32> to vector<2x96xf32>
    %404 = arith.truncf %403 : vector<2x96xf32> to vector<2x96xbf16>
    %c0_296 = arith.constant 0 : index
    %c0_297 = arith.constant 0 : index
    %c0_298 = arith.constant 0 : index
    %405 = vector.load %arg13[%c0_296, %c0_297, %c0_298] : memref<6x2x96xbf16, #tpu.memory_space<vmem>>, vector<1x2x96xbf16>
    %406 = vector.shape_cast %405 : vector<1x2x96xbf16> to vector<2x96xbf16>
    %407 = vector.shape_cast %404 : vector<2x96xbf16> to vector<1x2x96xbf16>
    tpu.vector_store %arg13[%c0_296, %c0_297, %c0_298], %407 {strides = array<i32>} : memref<6x2x96xbf16, #tpu.memory_space<vmem>>, vector<1x2x96xbf16>,
    %408 = vector.extract_strided_slice %402 {offsets = [2, 0], sizes = [2, 96], strides = [1, 1]} : vector<12x96xf32> to vector<2x96xf32>
    %409 = arith.truncf %408 : vector<2x96xf32> to vector<2x96xbf16>
    %c1_299 = arith.constant 1 : index
    %c0_300 = arith.constant 0 : index
    %c0_301 = arith.constant 0 : index
    %410 = vector.load %arg13[%c1_299, %c0_300, %c0_301] : memref<6x2x96xbf16, #tpu.memory_space<vmem>>, vector<1x2x96xbf16>
    %411 = vector.shape_cast %410 : vector<1x2x96xbf16> to vector<2x96xbf16>
    %412 = vector.shape_cast %409 : vector<2x96xbf16> to vector<1x2x96xbf16>
    tpu.vector_store %arg13[%c1_299, %c0_300, %c0_301], %412 {strides = array<i32>} : memref<6x2x96xbf16, #tpu.memory_space<vmem>>, vector<1x2x96xbf16>,
    %413 = vector.extract_strided_slice %402 {offsets = [4, 0], sizes = [2, 96], strides = [1, 1]} : vector<12x96xf32> to vector<2x96xf32>
    %414 = arith.truncf %413 : vector<2x96xf32> to vector<2x96xbf16>
    %c2_302 = arith.constant 2 : index
    %c0_303 = arith.constant 0 : index
    %c0_304 = arith.constant 0 : index
    %415 = vector.load %arg13[%c2_302, %c0_303, %c0_304] : memref<6x2x96xbf16, #tpu.memory_space<vmem>>, vector<1x2x96xbf16>
    %416 = vector.shape_cast %415 : vector<1x2x96xbf16> to vector<2x96xbf16>
    %417 = vector.shape_cast %414 : vector<2x96xbf16> to vector<1x2x96xbf16>
    tpu.vector_store %arg13[%c2_302, %c0_303, %c0_304], %417 {strides = array<i32>} : memref<6x2x96xbf16, #tpu.memory_space<vmem>>, vector<1x2x96xbf16>,
    %418 = vector.extract_strided_slice %402 {offsets = [6, 0], sizes = [2, 96], strides = [1, 1]} : vector<12x96xf32> to vector<2x96xf32>
    %419 = arith.truncf %418 : vector<2x96xf32> to vector<2x96xbf16>
    %c3_305 = arith.constant 3 : index
    %c0_306 = arith.constant 0 : index
    %c0_307 = arith.constant 0 : index
    %420 = vector.load %arg13[%c3_305, %c0_306, %c0_307] : memref<6x2x96xbf16, #tpu.memory_space<vmem>>, vector<1x2x96xbf16>
    %421 = vector.shape_cast %420 : vector<1x2x96xbf16> to vector<2x96xbf16>
    %422 = vector.shape_cast %419 : vector<2x96xbf16> to vector<1x2x96xbf16>
    tpu.vector_store %arg13[%c3_305, %c0_306, %c0_307], %422 {strides = array<i32>} : memref<6x2x96xbf16, #tpu.memory_space<vmem>>, vector<1x2x96xbf16>,
    %423 = vector.extract_strided_slice %402 {offsets = [8, 0], sizes = [2, 96], strides = [1, 1]} : vector<12x96xf32> to vector<2x96xf32>
    %424 = arith.truncf %423 : vector<2x96xf32> to vector<2x96xbf16>
    %c4_308 = arith.constant 4 : index
    %c0_309 = arith.constant 0 : index
    %c0_310 = arith.constant 0 : index
    %425 = vector.load %arg13[%c4_308, %c0_309, %c0_310] : memref<6x2x96xbf16, #tpu.memory_space<vmem>>, vector<1x2x96xbf16>
    %426 = vector.shape_cast %425 : vector<1x2x96xbf16> to vector<2x96xbf16>
    %427 = vector.shape_cast %424 : vector<2x96xbf16> to vector<1x2x96xbf16>
    tpu.vector_store %arg13[%c4_308, %c0_309, %c0_310], %427 {strides = array<i32>} : memref<6x2x96xbf16, #tpu.memory_space<vmem>>, vector<1x2x96xbf16>,
    %428 = vector.extract_strided_slice %402 {offsets = [10, 0], sizes = [2, 96], strides = [1, 1]} : vector<12x96xf32> to vector<2x96xf32>
    %429 = arith.truncf %428 : vector<2x96xf32> to vector<2x96xbf16>
    %c5_311 = arith.constant 5 : index
    %c0_312 = arith.constant 0 : index
    %c0_313 = arith.constant 0 : index
    %430 = vector.load %arg13[%c5_311, %c0_312, %c0_313] : memref<6x2x96xbf16, #tpu.memory_space<vmem>>, vector<1x2x96xbf16>
    %431 = vector.shape_cast %430 : vector<1x2x96xbf16> to vector<2x96xbf16>
    %432 = vector.shape_cast %429 : vector<2x96xbf16> to vector<1x2x96xbf16>
    tpu.vector_store %arg13[%c5_311, %c0_312, %c0_313], %432 {strides = array<i32>} : memref<6x2x96xbf16, #tpu.memory_space<vmem>>, vector<1x2x96xbf16>,
    %c0_314 = arith.constant 0 : index
    %c0_315 = arith.constant 0 : index
    %c0_316 = arith.constant 0 : index
    %433 = vector.load %arg13[%c0_314, %c0_315, %c0_316] : memref<6x2x96xbf16, #tpu.memory_space<vmem>>, vector<1x2x96xbf16>
    %434 = vector.shape_cast %433 : vector<1x2x96xbf16> to vector<2x96xbf16>
    %c2_317 = arith.constant 2 : index
    %c0_318 = arith.constant 0 : index
    %c0_319 = arith.constant 0 : index
    %435 = vector.load %arg13[%c2_317, %c0_318, %c0_319] : memref<6x2x96xbf16, #tpu.memory_space<vmem>>, vector<1x2x96xbf16>
    %436 = vector.shape_cast %435 : vector<1x2x96xbf16> to vector<2x96xbf16>
    %437 = tpu.concatenate %434, %436 in 0 : vector<2x96xbf16>, vector<2x96xbf16> -> vector<4x96xbf16>
    %c1_320 = arith.constant 1 : index
    %c0_321 = arith.constant 0 : index
    %c0_322 = arith.constant 0 : index
    %438 = vector.load %arg13[%c1_320, %c0_321, %c0_322] : memref<6x2x96xbf16, #tpu.memory_space<vmem>>, vector<1x2x96xbf16>
    %439 = vector.shape_cast %438 : vector<1x2x96xbf16> to vector<2x96xbf16>
    %c3_323 = arith.constant 3 : index
    %c0_324 = arith.constant 0 : index
    %c0_325 = arith.constant 0 : index
    %440 = vector.load %arg13[%c3_323, %c0_324, %c0_325] : memref<6x2x96xbf16, #tpu.memory_space<vmem>>, vector<1x2x96xbf16>
    %441 = vector.shape_cast %440 : vector<1x2x96xbf16> to vector<2x96xbf16>
    %442 = tpu.concatenate %439, %441 in 0 : vector<2x96xbf16>, vector<2x96xbf16> -> vector<4x96xbf16>
    %c2_326 = arith.constant 2 : index
    %c0_327 = arith.constant 0 : index
    %c0_328 = arith.constant 0 : index
    %443 = vector.load %arg13[%c2_326, %c0_327, %c0_328] : memref<6x2x96xbf16, #tpu.memory_space<vmem>>, vector<1x2x96xbf16>
    %444 = vector.shape_cast %443 : vector<1x2x96xbf16> to vector<2x96xbf16>
    %c4_329 = arith.constant 4 : index
    %c0_330 = arith.constant 0 : index
    %c0_331 = arith.constant 0 : index
    %445 = vector.load %arg13[%c4_329, %c0_330, %c0_331] : memref<6x2x96xbf16, #tpu.memory_space<vmem>>, vector<1x2x96xbf16>
    %446 = vector.shape_cast %445 : vector<1x2x96xbf16> to vector<2x96xbf16>
    %447 = tpu.concatenate %444, %446 in 0 : vector<2x96xbf16>, vector<2x96xbf16> -> vector<4x96xbf16>
    %c3_332 = arith.constant 3 : index
    %c0_333 = arith.constant 0 : index
    %c0_334 = arith.constant 0 : index
    %448 = vector.load %arg13[%c3_332, %c0_333, %c0_334] : memref<6x2x96xbf16, #tpu.memory_space<vmem>>, vector<1x2x96xbf16>
    %449 = vector.shape_cast %448 : vector<1x2x96xbf16> to vector<2x96xbf16>
    %c5_335 = arith.constant 5 : index
    %c0_336 = arith.constant 0 : index
    %c0_337 = arith.constant 0 : index
    %450 = vector.load %arg13[%c5_335, %c0_336, %c0_337] : memref<6x2x96xbf16, #tpu.memory_space<vmem>>, vector<1x2x96xbf16>
    %451 = vector.shape_cast %450 : vector<1x2x96xbf16> to vector<2x96xbf16>
    %452 = tpu.concatenate %449, %451 in 0 : vector<2x96xbf16>, vector<2x96xbf16> -> vector<4x96xbf16>
    %453 = tpu.concatenate %437, %442, %447, %452 in 1 : vector<4x96xbf16>, vector<4x96xbf16>, vector<4x96xbf16>, vector<4x96xbf16> -> vector<4x384xbf16>
    %c0_338 = arith.constant 0 : index
    %c0_339 = arith.constant 0 : index
    %454 = vector.load %arg9[%c0_338, %c0_339] : memref<384x2xbf16, #tpu.memory_space<vmem>>, vector<384x2xbf16>
    %cst_340 = arith.constant dense<0.000000e+00> : vector<4x2xf32>
    %455 = tpu.matmul %453, %454, %cst_340 {dimension_numbers = #tpu.dot_dimension_numbers<[1], [0], [0], [1], [0, 0, 1, 1], [], []>} : vector<4x384xbf16>, vector<384x2xbf16>, vector<4x2xf32> -> vector<4x2xf32>
    %c0_341 = arith.constant 0 : index
    %c0_342 = arith.constant 0 : index
    %456 = vector.load %arg10[%c0_341, %c0_342] : memref<1x2xf32, #tpu.memory_space<vmem>>, vector<1x2xf32>
    %457 = vector.broadcast %456 : vector<1x2xf32> to vector<4x2xf32>
    %458 = arith.addf %455, %457 : vector<4x2xf32>
    %459 = vector.extract_strided_slice %458 {offsets = [0, 0], sizes = [2, 2], strides = [1, 1]} : vector<4x2xf32> to vector<2x2xf32>
    %c0_343 = arith.constant 0 : index
    %c0_344 = arith.constant 0 : index
    %460 = vector.load %arg11[%c0_343, %c0_344] : memref<2x4xf32, #tpu.memory_space<vmem>>, vector<2x2xf32>
    tpu.vector_store %arg11[%c0_343, %c0_344], %459 {strides = array<i32>} : memref<2x4xf32, #tpu.memory_space<vmem>>, vector<2x2xf32>,
    %461 = vector.extract_strided_slice %458 {offsets = [2, 0], sizes = [2, 2], strides = [1, 1]} : vector<4x2xf32> to vector<2x2xf32>
    %c0_345 = arith.constant 0 : index
    %c2_346 = arith.constant 2 : index
    %462 = vector.load %arg11[%c0_345, %c2_346] : memref<2x4xf32, #tpu.memory_space<vmem>>, vector<2x2xf32>
    tpu.vector_store %arg11[%c0_345, %c2_346], %461 {strides = array<i32>} : memref<2x4xf32, #tpu.memory_space<vmem>>, vector<2x2xf32>,
    return
  }
}

</mosaic_0001>

<llo_original>
// kernel: critic_forward.1
$region0: #{critic_forward.1}
  #allocation0 [shape = 'u32[]', space=smem, size = 0x4, offset = 0x4, fixed_abs, tag = 'smem constant byte address 0x4 - core index']
  #allocation1 [shape = 'u32[144,128]{1,0:T(1,128)}', space=vmem, size = 0x12000, scoped, tag = 'internal scratch']
  #allocation2 [shape = 'bf16[15,2,120]{2,1,0:T(2,128)(2,1)}', space=vmem, size = 0x1e00, scoped, tag = 'scratch operand']
  #allocation3 [shape = 'bf16[6,2,96]{2,1,0:T(2,128)(2,1)}', space=vmem, size = 0xc00, scoped, tag = 'scratch operand']
  %s0 = inlined_call_operand.vmem [shape: bf16[32,2,128], index: 0, kind: input, shape index: {}]
  %s1 = inlined_call_operand.vmem [shape: bf16[512,120], index: 1, kind: input, shape index: {}]
  %s2 = inlined_call_operand.vmem [shape: f32[1,120], index: 2, kind: input, shape index: {}]
  %s3 = inlined_call_operand.vmem [shape: f32[1,8], index: 3, kind: input, shape index: {}]
  %s4 = inlined_call_operand.vmem [shape: f32[1,8], index: 4, kind: input, shape index: {}]
  %s5 = inlined_call_operand.vmem [shape: bf16[480,96], index: 5, kind: input, shape index: {}]
  %s6 = inlined_call_operand.vmem [shape: f32[1,96], index: 6, kind: input, shape index: {}]
  %s7 = inlined_call_operand.vmem [shape: f32[1,16], index: 7, kind: input, shape index: {}]
  %s8 = inlined_call_operand.vmem [shape: f32[1,16], index: 8, kind: input, shape index: {}]
  %s9 = inlined_call_operand.vmem [shape: bf16[384,2], index: 9, kind: input, shape index: {}]
  %s10 = inlined_call_operand.vmem [shape: f32[1,2], index: 10, kind: input, shape index: {}]
  %s11 = inlined_call_operand.hbm [shape: f32[2,4], index: 11, kind: output, shape index: {}]
  %s12 = sld [smem:[#allocation0]]
  $region54: #{critic_forward.1} parent=0
    _
  %s14 = ssub.s32 1, %s12
  %s15 = scalar_select 0, %s14, %s12
  $region1: #{critic_forward.1} parent=0
    #allocation4 [shape = 'u8[1024]{0}', space=vmem, size = 0x400, scoped, tag = 'output window, operand 0, single buffered']
    #allocation5 [shape = 's32[1]{0}', space=sflag, size = 0x4, scoped, tag = 'scoped memory for critic_forward.1']
    %16 = vsyncpa [#allocation5], 0
    // Predicated region
    $region2: #{critic_forward.1} parent=1 // pred_check
      _
    $region3: #{critic_forward.1} parent=1 // pred_check_branch
      %18 = sbr.rel (0) target = $region5
    $region4: #{critic_forward.1} parent=1 // pred_region
      _
    $region5: #{critic_forward.1} parent=1 // pred_fallthru
      _
    // Predicated region
    $region6: #{critic_forward.1} parent=1 // pred_check
      _
    $region7: #{critic_forward.1} parent=1 // pred_check_branch
      %20 = sbr.rel (0) target = $region9
    $region8: #{critic_forward.1} parent=1 // pred_region
      _
    $region9: #{critic_forward.1} parent=1 // pred_fallthru
      _
    // Predicated region
    $region10: #{critic_forward.1} parent=1 // pred_check
      _
    $region11: #{critic_forward.1} parent=1 // pred_check_branch
      %22 = sbr.rel (0) target = $region13
    $region12: #{critic_forward.1} parent=1 // pred_region
      _
    $region13: #{critic_forward.1} parent=1 // pred_fallthru
      _
    // Predicated region
    $region14: #{critic_forward.1} parent=1 // pred_check
      _
    $region15: #{critic_forward.1} parent=1 // pred_check_branch
      %24 = sbr.rel (0) target = $region17
    $region16: #{critic_forward.1} parent=1 // pred_region
      _
    $region17: #{critic_forward.1} parent=1 // pred_fallthru
      _
    // Predicated region
    $region18: #{critic_forward.1} parent=1 // pred_check
      _
    $region19: #{critic_forward.1} parent=1 // pred_check_branch
      %26 = sbr.rel (0) target = $region21
    $region20: #{critic_forward.1} parent=1 // pred_region
      _
    $region21: #{critic_forward.1} parent=1 // pred_fallthru
      _
    // Predicated region
    $region22: #{critic_forward.1} parent=1 // pred_check
      _
    $region23: #{critic_forward.1} parent=1 // pred_check_branch
      %28 = sbr.rel (0) target = $region25
    $region24: #{critic_forward.1} parent=1 // pred_region
      _
    $region25: #{critic_forward.1} parent=1 // pred_fallthru
      _
    // Predicated region
    $region26: #{critic_forward.1} parent=1 // pred_check
      _
    $region27: #{critic_forward.1} parent=1 // pred_check_branch
      %30 = sbr.rel (0) target = $region29
    $region28: #{critic_forward.1} parent=1 // pred_region
      _
    $region29: #{critic_forward.1} parent=1 // pred_fallthru
      _
    // Predicated region
    $region30: #{critic_forward.1} parent=1 // pred_check
      _
    $region31: #{critic_forward.1} parent=1 // pred_check_branch
      %32 = sbr.rel (0) target = $region33
    $region32: #{critic_forward.1} parent=1 // pred_region
      _
    $region33: #{critic_forward.1} parent=1 // pred_fallthru
      _
    // Predicated region
    $region34: #{critic_forward.1} parent=1 // pred_check
      _
    $region35: #{critic_forward.1} parent=1 // pred_check_branch
      %34 = sbr.rel (0) target = $region37
    $region36: #{critic_forward.1} parent=1 // pred_region
      _
    $region37: #{critic_forward.1} parent=1 // pred_fallthru
      _
    // Predicated region
    $region38: #{critic_forward.1} parent=1 // pred_check
      _
    $region39: #{critic_forward.1} parent=1 // pred_check_branch
      %36 = sbr.rel (0) target = $region41
    $region40: #{critic_forward.1} parent=1 // pred_region
      _
    $region41: #{critic_forward.1} parent=1 // pred_fallthru
      _
    // Predicated region
    $region42: #{critic_forward.1} parent=1 // pred_check
      _
    $region43: #{critic_forward.1} parent=1 // pred_check_branch
      %38 = sbr.rel (0) target = $region45
    $region44: #{critic_forward.1} parent=1 // pred_region
      _
    $region45: #{critic_forward.1} parent=1 // pred_fallthru
      _
    %v40 = vld [vmem:[%s0] sm:$0x1]
    %s41 = scalar_lea.vmem %s0, 2
    %v42 = vld [vmem:[%s41] sm:$0x1]
    %s43 = scalar_lea.vmem %s0, 4
    %v44 = vld [vmem:[%s43] sm:$0x1]
    %s45 = scalar_lea.vmem %s0, 6
    %v46 = vld [vmem:[%s45] sm:$0x1]
    %s47 = scalar_lea.vmem %s0, 8
    %v48 = vld [vmem:[%s47] sm:$0x1]
    %s49 = scalar_lea.vmem %s0, 10
    %v50 = vld [vmem:[%s49] sm:$0x1]
    %s51 = scalar_lea.vmem %s0, 12
    %v52 = vld [vmem:[%s51] sm:$0x1]
    %s53 = scalar_lea.vmem %s0, 14
    %v54 = vld [vmem:[%s53] sm:$0x1]
    %s55 = scalar_lea.vmem %s0, 16
    %v56 = vld [vmem:[%s55] sm:$0x1]
    %s57 = scalar_lea.vmem %s0, 18
    %v58 = vld [vmem:[%s57] sm:$0x1]
    %s59 = scalar_lea.vmem %s0, 20
    %v60 = vld [vmem:[%s59] sm:$0x1]
    %s61 = scalar_lea.vmem %s0, 22
    %v62 = vld [vmem:[%s61] sm:$0x1]
    %s63 = scalar_lea.vmem %s0, 24
    %v64 = vld [vmem:[%s63] sm:$0x1]
    %s65 = scalar_lea.vmem %s0, 26
    %v66 = vld [vmem:[%s65] sm:$0x1]
    %s67 = scalar_lea.vmem %s0, 28
    %v68 = vld [vmem:[%s67] sm:$0x1]
    %v70 = vcombine.low %v42, %v42
    %v72 = vunpack.c.l.s4 1966171168
    %v73 = vunpack.c.0.s8 %v72
    %v74 = vlaneseq
    %v75 = vshrl.u32 %v74, 7
    %v76 = vsub.s32 %v73, %v75
    %v77 = vrot.slane %v70, %v76
    %v79 = vunpack.c.l.s4 1966171168
    %v80 = vunpack.c.0.s8 %v79
    %v81 = vlaneseq
    %v82 = vshrl.u32 %v81, 7
    %v83 = vsub.s32 %v80, %v82
    %v84 = vrot.slane %v77, %v83
    %v87 = vunpack.c.l.s4 1966171168
    %v88 = vunpack.c.0.s8 %v87
    %v89 = vlaneseq
    %v90 = vshrl.u32 %v89, 7
    %v91 = vsub.s32 %v88, %v90
    %v92 = vrot.slane %v44, %v91
    %v93 = vcombine.low %v92, %v92
    %v95 = vunpack.c.l.s4 1966171168
    %v96 = vunpack.c.0.s8 %v95
    %v97 = vlaneseq
    %v98 = vshrl.u32 %v97, 7
    %v99 = vsub.s32 %v96, %v98
    %v100 = vrot.slane %v93, %v99
    %v102 = vcombine.low %v46, %v46
    %v104 = vunpack.c.l.s4 1966171168
    %v105 = vunpack.c.0.s8 %v104
    %v106 = vlaneseq
    %v107 = vshrl.u32 %v106, 7
    %v108 = vsub.s32 %v105, %v107
    %v109 = vrot.slane %v102, %v108
    %v111 = vunpack.c.l.s4 1966171168
    %v112 = vunpack.c.0.s8 %v111
    %v113 = vlaneseq
    %v114 = vshrl.u32 %v113, 7
    %v115 = vsub.s32 %v112, %v114
    %v116 = vrot.slane %v46, %v115
    %v117 = vcombine.low %v109, %v109
    %v119 = vunpack.c.l.s4 1966171168
    %v120 = vunpack.c.0.s8 %v119
    %v121 = vlaneseq
    %v122 = vshrl.u32 %v121, 7
    %v123 = vsub.s32 %v120, %v122
    %v124 = vrot.slane %v117, %v123
    %v127 = vunpack.c.l.s4 1966171168
    %v128 = vunpack.c.0.s8 %v127
    %v129 = vlaneseq
    %v130 = vshrl.u32 %v129, 7
    %v131 = vsub.s32 %v128, %v130
    %v132 = vrot.slane %v48, %v131
    %v134 = vunpack.c.l.s4 1966171168
    %v135 = vunpack.c.0.s8 %v134
    %v136 = vlaneseq
    %v137 = vshrl.u32 %v136, 7
    %v138 = vsub.s32 %v135, %v137
    %v139 = vrot.slane %v132, %v138
    %v140 = vcombine.low %v139, %v139
    %v142 = vcombine.low %v50, %v50
    %v144 = vunpack.c.l.s4 1966171168
    %v145 = vunpack.c.0.s8 %v144
    %v146 = vlaneseq
    %v147 = vshrl.u32 %v146, 7
    %v148 = vsub.s32 %v145, %v147
    %v149 = vrot.slane %v142, %v148
    %v151 = vunpack.c.l.s4 1966171168
    %v152 = vunpack.c.0.s8 %v151
    %v153 = vlaneseq
    %v154 = vshrl.u32 %v153, 7
    %v155 = vsub.s32 %v152, %v154
    %v156 = vrot.slane %v50, %v155
    %v158 = vunpack.c.l.s4 1966171168
    %v159 = vunpack.c.0.s8 %v158
    %v160 = vlaneseq
    %v161 = vshrl.u32 %v160, 7
    %v162 = vsub.s32 %v159, %v161
    %v163 = vrot.slane %v149, %v162
    %v165 = vunpack.c.l.s4 1966171168
    %v166 = vunpack.c.0.s8 %v165
    %v167 = vlaneseq
    %v168 = vshrl.u32 %v167, 7
    %v169 = vsub.s32 %v166, %v168
    %v170 = vrot.slane %v156, %v169
    %v171 = vcombine.low %v163, %v163
    %v174 = vunpack.c.l.s4 1966171168
    %v175 = vunpack.c.0.s8 %v174
    %v176 = vlaneseq
    %v177 = vshrl.u32 %v176, 7
    %v178 = vsub.s32 %v175, %v177
    %v179 = vrot.slane %v52, %v178
    %v180 = vcombine.low %v179, %v179
    %v182 = vunpack.c.l.s4 1966171168
    %v183 = vunpack.c.0.s8 %v182
    %v184 = vlaneseq
    %v185 = vshrl.u32 %v184, 7
    %v186 = vsub.s32 %v183, %v185
    %v187 = vrot.slane %v180, %v186
    %v188 = vcombine.low %v187, %v187
    %v190 = vcombine.low %v54, %v54
    %v192 = vunpack.c.l.s4 1966171168
    %v193 = vunpack.c.0.s8 %v192
    %v194 = vlaneseq
    %v195 = vshrl.u32 %v194, 7
    %v196 = vsub.s32 %v193, %v195
    %v197 = vrot.slane %v190, %v196
    %v199 = vunpack.c.l.s4 1966171168
    %v200 = vunpack.c.0.s8 %v199
    %v201 = vlaneseq
    %v202 = vshrl.u32 %v201, 7
    %v203 = vsub.s32 %v200, %v202
    %v204 = vrot.slane %v54, %v203
    %v205 = vcombine.low %v197, %v197
    %v207 = vunpack.c.l.s4 1966171168
    %v208 = vunpack.c.0.s8 %v207
    %v209 = vlaneseq
    %v210 = vshrl.u32 %v209, 7
    %v211 = vsub.s32 %v208, %v210
    %v212 = vrot.slane %v205, %v211
    %v213 = vcombine.low %v212, %v212
    %v215 = vcombine.low %v58, %v58
    %v217 = vunpack.c.l.s4 1966171168
    %v218 = vunpack.c.0.s8 %v217
    %v219 = vlaneseq
    %v220 = vshrl.u32 %v219, 7
    %v221 = vsub.s32 %v218, %v220
    %v222 = vrot.slane %v215, %v221
    %v224 = vunpack.c.l.s4 1966171168
    %v225 = vunpack.c.0.s8 %v224
    %v226 = vlaneseq
    %v227 = vshrl.u32 %v226, 7
    %v228 = vsub.s32 %v225, %v227
    %v229 = vrot.slane %v222, %v228
    %v232 = vunpack.c.l.s4 1966171168
    %v233 = vunpack.c.0.s8 %v232
    %v234 = vlaneseq
    %v235 = vshrl.u32 %v234, 7
    %v236 = vsub.s32 %v233, %v235
    %v237 = vrot.slane %v60, %v236
    %v238 = vcombine.low %v237, %v237
    %v240 = vunpack.c.l.s4 1966171168
    %v241 = vunpack.c.0.s8 %v240
    %v242 = vlaneseq
    %v243 = vshrl.u32 %v242, 7
    %v244 = vsub.s32 %v241, %v243
    %v245 = vrot.slane %v238, %v244
    %v247 = vcombine.low %v62, %v62
    %v249 = vunpack.c.l.s4 1966171168
    %v250 = vunpack.c.0.s8 %v249
    %v251 = vlaneseq
    %v252 = vshrl.u32 %v251, 7
    %v253 = vsub.s32 %v250, %v252
    %v254 = vrot.slane %v247, %v253
    %v256 = vunpack.c.l.s4 1966171168
    %v257 = vunpack.c.0.s8 %v256
    %v258 = vlaneseq
    %v259 = vshrl.u32 %v258, 7
    %v260 = vsub.s32 %v257, %v259
    %v261 = vrot.slane %v62, %v260
    %v262 = vcombine.low %v254, %v254
    %v264 = vunpack.c.l.s4 1966171168
    %v265 = vunpack.c.0.s8 %v264
    %v266 = vlaneseq
    %v267 = vshrl.u32 %v266, 7
    %v268 = vsub.s32 %v265, %v267
    %v269 = vrot.slane %v262, %v268
    %v272 = vunpack.c.l.s4 1966171168
    %v273 = vunpack.c.0.s8 %v272
    %v274 = vlaneseq
    %v275 = vshrl.u32 %v274, 7
    %v276 = vsub.s32 %v273, %v275
    %v277 = vrot.slane %v64, %v276
    %v279 = vunpack.c.l.s4 1966171168
    %v280 = vunpack.c.0.s8 %v279
    %v281 = vlaneseq
    %v282 = vshrl.u32 %v281, 7
    %v283 = vsub.s32 %v280, %v282
    %v284 = vrot.slane %v277, %v283
    %v285 = vcombine.low %v284, %v284
    %v287 = vcombine.low %v66, %v66
    %v289 = vunpack.c.l.s4 1966171168
    %v290 = vunpack.c.0.s8 %v289
    %v291 = vlaneseq
    %v292 = vshrl.u32 %v291, 7
    %v293 = vsub.s32 %v290, %v292
    %v294 = vrot.slane %v287, %v293
    %v296 = vunpack.c.l.s4 1966171168
    %v297 = vunpack.c.0.s8 %v296
    %v298 = vlaneseq
    %v299 = vshrl.u32 %v298, 7
    %v300 = vsub.s32 %v297, %v299
    %v301 = vrot.slane %v66, %v300
    %v303 = vunpack.c.l.s4 1966171168
    %v304 = vunpack.c.0.s8 %v303
    %v305 = vlaneseq
    %v306 = vshrl.u32 %v305, 7
    %v307 = vsub.s32 %v304, %v306
    %v308 = vrot.slane %v294, %v307
    %v310 = vunpack.c.l.s4 1966171168
    %v311 = vunpack.c.0.s8 %v310
    %v312 = vlaneseq
    %v313 = vshrl.u32 %v312, 7
    %v314 = vsub.s32 %v311, %v313
    %v315 = vrot.slane %v301, %v314
    %v316 = vcombine.low %v308, %v308
    %v319 = vunpack.c.l.s4 1966171168
    %v320 = vunpack.c.0.s8 %v319
    %v321 = vlaneseq
    %v322 = vshrl.u32 %v321, 7
    %v323 = vsub.s32 %v320, %v322
    %v324 = vrot.slane %v68, %v323
    %v325 = vcombine.low %v324, %v324
    %v327 = vunpack.c.l.s4 1966171168
    %v328 = vunpack.c.0.s8 %v327
    %v329 = vlaneseq
    %v330 = vshrl.u32 %v329, 7
    %v331 = vsub.s32 %v328, %v330
    %v332 = vrot.slane %v325, %v331
    %v333 = vcombine.low %v332, %v332
    %vm334 = vcmask 1040384
    %v337 = vsel %vm334, %v40, %v84
    %vm338 = vcmask 1041408
    %v340 = vsel %vm338, %v337, %v100
    %vm341 = vcmask 1042432
    %v343 = vsel %vm341, %v340, %v124
    %vm344 = vcmask 1043456
    %v346 = vsel %vm344, %v343, %v140
    %vm347 = vcmask 1044480
    %v349 = vsel %vm347, %v346, %v171
    %vm350 = vcmask 1045504
    %v352 = vsel %vm350, %v349, %v188
    %vm353 = vcmask 1046528
    %v355 = vsel %vm353, %v352, %v213
    %v359 = vsel %vm334, %v56, %v229
    %v361 = vsel %vm338, %v359, %v245
    %v363 = vsel %vm341, %v361, %v269
    %v365 = vsel %vm344, %v363, %v285
    %v367 = vsel %vm347, %v365, %v316
    %v369 = vsel %vm350, %v367, %v333
    %s371 = scalar_lea.vmem %s0, 1
    %v372 = vld [vmem:[%s371] sm:$0x1]
    %s373 = scalar_lea.vmem %s0, 3
    %v374 = vld [vmem:[%s373] sm:$0x1]
    %s375 = scalar_lea.vmem %s0, 5
    %v376 = vld [vmem:[%s375] sm:$0x1]
    %s377 = scalar_lea.vmem %s0, 7
    %v378 = vld [vmem:[%s377] sm:$0x1]
    %s379 = scalar_lea.vmem %s0, 9
    %v380 = vld [vmem:[%s379] sm:$0x1]
    %s381 = scalar_lea.vmem %s0, 11
    %v382 = vld [vmem:[%s381] sm:$0x1]
    %s383 = scalar_lea.vmem %s0, 13
    %v384 = vld [vmem:[%s383] sm:$0x1]
    %s385 = scalar_lea.vmem %s0, 15
    %v386 = vld [vmem:[%s385] sm:$0x1]
    %s387 = scalar_lea.vmem %s0, 17
    %v388 = vld [vmem:[%s387] sm:$0x1]
    %s389 = scalar_lea.vmem %s0, 19
    %v390 = vld [vmem:[%s389] sm:$0x1]
    %s391 = scalar_lea.vmem %s0, 21
    %v392 = vld [vmem:[%s391] sm:$0x1]
    %s393 = scalar_lea.vmem %s0, 23
    %v394 = vld [vmem:[%s393] sm:$0x1]
    %s395 = scalar_lea.vmem %s0, 25
    %v396 = vld [vmem:[%s395] sm:$0x1]
    %s397 = scalar_lea.vmem %s0, 27
    %v398 = vld [vmem:[%s397] sm:$0x1]
    %s399 = scalar_lea.vmem %s0, 29
    %v400 = vld [vmem:[%s399] sm:$0x1]
    %v402 = vcombine.low %v374, %v374
    %v404 = vunpack.c.l.s4 1966171168
    %v405 = vunpack.c.0.s8 %v404
    %v406 = vlaneseq
    %v407 = vshrl.u32 %v406, 7
    %v408 = vsub.s32 %v405, %v407
    %v409 = vrot.slane %v402, %v408
    %v411 = vunpack.c.l.s4 1966171168
    %v412 = vunpack.c.0.s8 %v411
    %v413 = vlaneseq
    %v414 = vshrl.u32 %v413, 7
    %v415 = vsub.s32 %v412, %v414
    %v416 = vrot.slane %v409, %v415
    %v419 = vunpack.c.l.s4 1966171168
    %v420 = vunpack.c.0.s8 %v419
    %v421 = vlaneseq
    %v422 = vshrl.u32 %v421, 7
    %v423 = vsub.s32 %v420, %v422
    %v424 = vrot.slane %v376, %v423
    %v425 = vcombine.low %v424, %v424
    %v427 = vunpack.c.l.s4 1966171168
    %v428 = vunpack.c.0.s8 %v427
    %v429 = vlaneseq
    %v430 = vshrl.u32 %v429, 7
    %v431 = vsub.s32 %v428, %v430
    %v432 = vrot.slane %v425, %v431
    %v434 = vcombine.low %v378, %v378
    %v436 = vunpack.c.l.s4 1966171168
    %v437 = vunpack.c.0.s8 %v436
    %v438 = vlaneseq
    %v439 = vshrl.u32 %v438, 7
    %v440 = vsub.s32 %v437, %v439
    %v441 = vrot.slane %v434, %v440
    %v443 = vunpack.c.l.s4 1966171168
    %v444 = vunpack.c.0.s8 %v443
    %v445 = vlaneseq
    %v446 = vshrl.u32 %v445, 7
    %v447 = vsub.s32 %v444, %v446
    %v448 = vrot.slane %v378, %v447
    %v449 = vcombine.low %v441, %v441
    %v451 = vunpack.c.l.s4 1966171168
    %v452 = vunpack.c.0.s8 %v451
    %v453 = vlaneseq
    %v454 = vshrl.u32 %v453, 7
    %v455 = vsub.s32 %v452, %v454
    %v456 = vrot.slane %v449, %v455
    %v459 = vunpack.c.l.s4 1966171168
    %v460 = vunpack.c.0.s8 %v459
    %v461 = vlaneseq
    %v462 = vshrl.u32 %v461, 7
    %v463 = vsub.s32 %v460, %v462
    %v464 = vrot.slane %v380, %v463
    %v466 = vunpack.c.l.s4 1966171168
    %v467 = vunpack.c.0.s8 %v466
    %v468 = vlaneseq
    %v469 = vshrl.u32 %v468, 7
    %v470 = vsub.s32 %v467, %v469
    %v471 = vrot.slane %v464, %v470
    %v472 = vcombine.low %v471, %v471
    %v474 = vcombine.low %v382, %v382
    %v476 = vunpack.c.l.s4 1966171168
    %v477 = vunpack.c.0.s8 %v476
    %v478 = vlaneseq
    %v479 = vshrl.u32 %v478, 7
    %v480 = vsub.s32 %v477, %v479
    %v481 = vrot.slane %v474, %v480
    %v483 = vunpack.c.l.s4 1966171168
    %v484 = vunpack.c.0.s8 %v483
    %v485 = vlaneseq
    %v486 = vshrl.u32 %v485, 7
    %v487 = vsub.s32 %v484, %v486
    %v488 = vrot.slane %v382, %v487
    %v490 = vunpack.c.l.s4 1966171168
    %v491 = vunpack.c.0.s8 %v490
    %v492 = vlaneseq
    %v493 = vshrl.u32 %v492, 7
    %v494 = vsub.s32 %v491, %v493
    %v495 = vrot.slane %v481, %v494
    %v497 = vunpack.c.l.s4 1966171168
    %v498 = vunpack.c.0.s8 %v497
    %v499 = vlaneseq
    %v500 = vshrl.u32 %v499, 7
    %v501 = vsub.s32 %v498, %v500
    %v502 = vrot.slane %v488, %v501
    %v503 = vcombine.low %v495, %v495
    %v506 = vunpack.c.l.s4 1966171168
    %v507 = vunpack.c.0.s8 %v506
    %v508 = vlaneseq
    %v509 = vshrl.u32 %v508, 7
    %v510 = vsub.s32 %v507, %v509
    %v511 = vrot.slane %v384, %v510
    %v512 = vcombine.low %v511, %v511
    %v514 = vunpack.c.l.s4 1966171168
    %v515 = vunpack.c.0.s8 %v514
    %v516 = vlaneseq
    %v517 = vshrl.u32 %v516, 7
    %v518 = vsub.s32 %v515, %v517
    %v519 = vrot.slane %v512, %v518
    %v520 = vcombine.low %v519, %v519
    %v522 = vcombine.low %v386, %v386
    %v524 = vunpack.c.l.s4 1966171168
    %v525 = vunpack.c.0.s8 %v524
    %v526 = vlaneseq
    %v527 = vshrl.u32 %v526, 7
    %v528 = vsub.s32 %v525, %v527
    %v529 = vrot.slane %v522, %v528
    %v531 = vunpack.c.l.s4 1966171168
    %v532 = vunpack.c.0.s8 %v531
    %v533 = vlaneseq
    %v534 = vshrl.u32 %v533, 7
    %v535 = vsub.s32 %v532, %v534
    %v536 = vrot.slane %v386, %v535
    %v537 = vcombine.low %v529, %v529
    %v539 = vunpack.c.l.s4 1966171168
    %v540 = vunpack.c.0.s8 %v539
    %v541 = vlaneseq
    %v542 = vshrl.u32 %v541, 7
    %v543 = vsub.s32 %v540, %v542
    %v544 = vrot.slane %v537, %v543
    %v545 = vcombine.low %v544, %v544
    %v547 = vcombine.low %v390, %v390
    %v549 = vunpack.c.l.s4 1966171168
    %v550 = vunpack.c.0.s8 %v549
    %v551 = vlaneseq
    %v552 = vshrl.u32 %v551, 7
    %v553 = vsub.s32 %v550, %v552
    %v554 = vrot.slane %v547, %v553
    %v556 = vunpack.c.l.s4 1966171168
    %v557 = vunpack.c.0.s8 %v556
    %v558 = vlaneseq
    %v559 = vshrl.u32 %v558, 7
    %v560 = vsub.s32 %v557, %v559
    %v561 = vrot.slane %v554, %v560
    %v564 = vunpack.c.l.s4 1966171168
    %v565 = vunpack.c.0.s8 %v564
    %v566 = vlaneseq
    %v567 = vshrl.u32 %v566, 7
    %v568 = vsub.s32 %v565, %v567
    %v569 = vrot.slane %v392, %v568
    %v570 = vcombine.low %v569, %v569
    %v572 = vunpack.c.l.s4 1966171168
    %v573 = vunpack.c.0.s8 %v572
    %v574 = vlaneseq
    %v575 = vshrl.u32 %v574, 7
    %v576 = vsub.s32 %v573, %v575
    %v577 = vrot.slane %v570, %v576
    %v579 = vcombine.low %v394, %v394
    %v581 = vunpack.c.l.s4 1966171168
    %v582 = vunpack.c.0.s8 %v581
    %v583 = vlaneseq
    %v584 = vshrl.u32 %v583, 7
    %v585 = vsub.s32 %v582, %v584
    %v586 = vrot.slane %v579, %v585
    %v588 = vunpack.c.l.s4 1966171168
    %v589 = vunpack.c.0.s8 %v588
    %v590 = vlaneseq
    %v591 = vshrl.u32 %v590, 7
    %v592 = vsub.s32 %v589, %v591
    %v593 = vrot.slane %v394, %v592
    %v594 = vcombine.low %v586, %v586
    %v596 = vunpack.c.l.s4 1966171168
    %v597 = vunpack.c.0.s8 %v596
    %v598 = vlaneseq
    %v599 = vshrl.u32 %v598, 7
    %v600 = vsub.s32 %v597, %v599
    %v601 = vrot.slane %v594, %v600
    %v604 = vunpack.c.l.s4 1966171168
    %v605 = vunpack.c.0.s8 %v604
    %v606 = vlaneseq
    %v607 = vshrl.u32 %v606, 7
    %v608 = vsub.s32 %v605, %v607
    %v609 = vrot.slane %v396, %v608
    %v611 = vunpack.c.l.s4 1966171168
    %v612 = vunpack.c.0.s8 %v611
    %v613 = vlaneseq
    %v614 = vshrl.u32 %v613, 7
    %v615 = vsub.s32 %v612, %v614
    %v616 = vrot.slane %v609, %v615
    %v617 = vcombine.low %v616, %v616
    %v619 = vcombine.low %v398, %v398
    %v621 = vunpack.c.l.s4 1966171168
    %v622 = vunpack.c.0.s8 %v621
    %v623 = vlaneseq
    %v624 = vshrl.u32 %v623, 7
    %v625 = vsub.s32 %v622, %v624
    %v626 = vrot.slane %v619, %v625
    %v628 = vunpack.c.l.s4 1966171168
    %v629 = vunpack.c.0.s8 %v628
    %v630 = vlaneseq
    %v631 = vshrl.u32 %v630, 7
    %v632 = vsub.s32 %v629, %v631
    %v633 = vrot.slane %v398, %v632
    %v635 = vunpack.c.l.s4 1966171168
    %v636 = vunpack.c.0.s8 %v635
    %v637 = vlaneseq
    %v638 = vshrl.u32 %v637, 7
    %v639 = vsub.s32 %v636, %v638
    %v640 = vrot.slane %v626, %v639
    %v642 = vunpack.c.l.s4 1966171168
    %v643 = vunpack.c.0.s8 %v642
    %v644 = vlaneseq
    %v645 = vshrl.u32 %v644, 7
    %v646 = vsub.s32 %v643, %v645
    %v647 = vrot.slane %v633, %v646
    %v648 = vcombine.low %v640, %v640
    %v651 = vunpack.c.l.s4 1966171168
    %v652 = vunpack.c.0.s8 %v651
    %v653 = vlaneseq
    %v654 = vshrl.u32 %v653, 7
    %v655 = vsub.s32 %v652, %v654
    %v656 = vrot.slane %v400, %v655
    %v657 = vcombine.low %v656, %v656
    %v659 = vunpack.c.l.s4 1966171168
    %v660 = vunpack.c.0.s8 %v659
    %v661 = vlaneseq
    %v662 = vshrl.u32 %v661, 7
    %v663 = vsub.s32 %v660, %v662
    %v664 = vrot.slane %v657, %v663
    %v665 = vcombine.low %v664, %v664
    %v668 = vsel %vm334, %v372, %v416
    %v670 = vsel %vm338, %v668, %v432
    %v672 = vsel %vm341, %v670, %v456
    %v674 = vsel %vm344, %v672, %v472
    %v676 = vsel %vm347, %v674, %v503
    %v678 = vsel %vm350, %v676, %v520
    %v680 = vsel %vm353, %v678, %v545
    %v684 = vsel %vm334, %v388, %v561
    %v686 = vsel %vm338, %v684, %v577
    %v688 = vsel %vm341, %v686, %v601
    %v690 = vsel %vm344, %v688, %v617
    %v692 = vsel %vm347, %v690, %v648
    %v694 = vsel %vm350, %v692, %v665
    %s696 = scalar_lea.vmem %s0, 30
    %v697 = vld [vmem:[%s696] sm:$0x1]
    %v698 = vcombine.low %v44, %v44
    %v700 = vunpack.c.l.s4 1966171168
    %v701 = vunpack.c.0.s8 %v700
    %v702 = vlaneseq
    %v703 = vshrl.u32 %v702, 7
    %v704 = vsub.s32 %v701, %v703
    %v705 = vrot.slane %v698, %v704
    %v707 = vunpack.c.l.s4 1966171168
    %v708 = vunpack.c.0.s8 %v707
    %v709 = vlaneseq
    %v710 = vshrl.u32 %v709, 7
    %v711 = vsub.s32 %v708, %v710
    %v712 = vrot.slane %v705, %v711
    %v713 = vcombine.low %v116, %v116
    %v715 = vunpack.c.l.s4 1966171168
    %v716 = vunpack.c.0.s8 %v715
    %v717 = vlaneseq
    %v718 = vshrl.u32 %v717, 7
    %v719 = vsub.s32 %v716, %v718
    %v720 = vrot.slane %v713, %v719
    %v721 = vcombine.low %v48, %v48
    %v723 = vunpack.c.l.s4 1966171168
    %v724 = vunpack.c.0.s8 %v723
    %v725 = vlaneseq
    %v726 = vshrl.u32 %v725, 7
    %v727 = vsub.s32 %v724, %v726
    %v728 = vrot.slane %v721, %v727
    %v729 = vcombine.low %v728, %v728
    %v731 = vunpack.c.l.s4 1966171168
    %v732 = vunpack.c.0.s8 %v731
    %v733 = vlaneseq
    %v734 = vshrl.u32 %v733, 7
    %v735 = vsub.s32 %v732, %v734
    %v736 = vrot.slane %v729, %v735
    %v737 = vcombine.low %v170, %v170
    %v738 = vcombine.low %v52, %v52
    %v740 = vunpack.c.l.s4 1966171168
    %v741 = vunpack.c.0.s8 %v740
    %v742 = vlaneseq
    %v743 = vshrl.u32 %v742, 7
    %v744 = vsub.s32 %v741, %v743
    %v745 = vrot.slane %v738, %v744
    %v747 = vunpack.c.l.s4 1966171168
    %v748 = vunpack.c.0.s8 %v747
    %v749 = vlaneseq
    %v750 = vshrl.u32 %v749, 7
    %v751 = vsub.s32 %v748, %v750
    %v752 = vrot.slane %v745, %v751
    %v753 = vcombine.low %v752, %v752
    %v754 = vcombine.low %v204, %v204
    %v756 = vunpack.c.l.s4 1966171168
    %v757 = vunpack.c.0.s8 %v756
    %v758 = vlaneseq
    %v759 = vshrl.u32 %v758, 7
    %v760 = vsub.s32 %v757, %v759
    %v761 = vrot.slane %v754, %v760
    %v762 = vcombine.low %v761, %v761
    %v764 = vcombine.low %v56, %v56
    %v766 = vunpack.c.l.s4 1966171168
    %v767 = vunpack.c.0.s8 %v766
    %v768 = vlaneseq
    %v769 = vshrl.u32 %v768, 7
    %v770 = vsub.s32 %v767, %v769
    %v771 = vrot.slane %v764, %v770
    %v772 = vcombine.low %v771, %v771
    %v774 = vunpack.c.l.s4 1966171168
    %v775 = vunpack.c.0.s8 %v774
    %v776 = vlaneseq
    %v777 = vshrl.u32 %v776, 7
    %v778 = vsub.s32 %v775, %v777
    %v779 = vrot.slane %v772, %v778
    %v780 = vcombine.low %v779, %v779
    %v781 = vcombine.low %v60, %v60
    %v783 = vunpack.c.l.s4 1966171168
    %v784 = vunpack.c.0.s8 %v783
    %v785 = vlaneseq
    %v786 = vshrl.u32 %v785, 7
    %v787 = vsub.s32 %v784, %v786
    %v788 = vrot.slane %v781, %v787
    %v790 = vunpack.c.l.s4 1966171168
    %v791 = vunpack.c.0.s8 %v790
    %v792 = vlaneseq
    %v793 = vshrl.u32 %v792, 7
    %v794 = vsub.s32 %v791, %v793
    %v795 = vrot.slane %v788, %v794
    %v796 = vcombine.low %v261, %v261
    %v798 = vunpack.c.l.s4 1966171168
    %v799 = vunpack.c.0.s8 %v798
    %v800 = vlaneseq
    %v801 = vshrl.u32 %v800, 7
    %v802 = vsub.s32 %v799, %v801
    %v803 = vrot.slane %v796, %v802
    %v804 = vcombine.low %v64, %v64
    %v806 = vunpack.c.l.s4 1966171168
    %v807 = vunpack.c.0.s8 %v806
    %v808 = vlaneseq
    %v809 = vshrl.u32 %v808, 7
    %v810 = vsub.s32 %v807, %v809
    %v811 = vrot.slane %v804, %v810
    %v812 = vcombine.low %v811, %v811
    %v814 = vunpack.c.l.s4 1966171168
    %v815 = vunpack.c.0.s8 %v814
    %v816 = vlaneseq
    %v817 = vshrl.u32 %v816, 7
    %v818 = vsub.s32 %v815, %v817
    %v819 = vrot.slane %v812, %v818
    %v820 = vcombine.low %v315, %v315
    %v821 = vcombine.low %v68, %v68
    %v823 = vunpack.c.l.s4 1966171168
    %v824 = vunpack.c.0.s8 %v823
    %v825 = vlaneseq
    %v826 = vshrl.u32 %v825, 7
    %v827 = vsub.s32 %v824, %v826
    %v828 = vrot.slane %v821, %v827
    %v830 = vunpack.c.l.s4 1966171168
    %v831 = vunpack.c.0.s8 %v830
    %v832 = vlaneseq
    %v833 = vshrl.u32 %v832, 7
    %v834 = vsub.s32 %v831, %v833
    %v835 = vrot.slane %v828, %v834
    %v836 = vcombine.low %v835, %v835
    %v839 = vunpack.c.l.s4 1966171168
    %v840 = vunpack.c.0.s8 %v839
    %v841 = vlaneseq
    %v842 = vshrl.u32 %v841, 7
    %v843 = vsub.s32 %v840, %v842
    %v844 = vrot.slane %v697, %v843
    %v845 = vcombine.low %v844, %v844
    %v847 = vunpack.c.l.s4 1966171168
    %v848 = vunpack.c.0.s8 %v847
    %v849 = vlaneseq
    %v850 = vshrl.u32 %v849, 7
    %v851 = vsub.s32 %v848, %v850
    %v852 = vrot.slane %v845, %v851
    %v853 = vcombine.low %v852, %v852
    %v856 = vsel %vm334, %v42, %v712
    %v858 = vsel %vm338, %v856, %v720
    %v860 = vsel %vm341, %v858, %v736
    %v862 = vsel %vm344, %v860, %v737
    %v864 = vsel %vm347, %v862, %v753
    %v866 = vsel %vm350, %v864, %v762
    %v868 = vsel %vm353, %v866, %v780
    %v872 = vsel %vm334, %v58, %v795
    %v874 = vsel %vm338, %v872, %v803
    %v876 = vsel %vm341, %v874, %v819
    %v878 = vsel %vm344, %v876, %v820
    %v880 = vsel %vm347, %v878, %v836
    %v882 = vsel %vm350, %v880, %v853
    %s884 = scalar_lea.vmem %s0, 31
    %v885 = vld [vmem:[%s884] sm:$0x1]
    %v886 = vcombine.low %v376, %v376
    %v888 = vunpack.c.l.s4 1966171168
    %v889 = vunpack.c.0.s8 %v888
    %v890 = vlaneseq
    %v891 = vshrl.u32 %v890, 7
    %v892 = vsub.s32 %v889, %v891
    %v893 = vrot.slane %v886, %v892
    %v895 = vunpack.c.l.s4 1966171168
    %v896 = vunpack.c.0.s8 %v895
    %v897 = vlaneseq
    %v898 = vshrl.u32 %v897, 7
    %v899 = vsub.s32 %v896, %v898
    %v900 = vrot.slane %v893, %v899
    %v901 = vcombine.low %v448, %v448
    %v903 = vunpack.c.l.s4 1966171168
    %v904 = vunpack.c.0.s8 %v903
    %v905 = vlaneseq
    %v906 = vshrl.u32 %v905, 7
    %v907 = vsub.s32 %v904, %v906
    %v908 = vrot.slane %v901, %v907
    %v909 = vcombine.low %v380, %v380
    %v911 = vunpack.c.l.s4 1966171168
    %v912 = vunpack.c.0.s8 %v911
    %v913 = vlaneseq
    %v914 = vshrl.u32 %v913, 7
    %v915 = vsub.s32 %v912, %v914
    %v916 = vrot.slane %v909, %v915
    %v917 = vcombine.low %v916, %v916
    %v919 = vunpack.c.l.s4 1966171168
    %v920 = vunpack.c.0.s8 %v919
    %v921 = vlaneseq
    %v922 = vshrl.u32 %v921, 7
    %v923 = vsub.s32 %v920, %v922
    %v924 = vrot.slane %v917, %v923
    %v925 = vcombine.low %v502, %v502
    %v926 = vcombine.low %v384, %v384
    %v928 = vunpack.c.l.s4 1966171168
    %v929 = vunpack.c.0.s8 %v928
    %v930 = vlaneseq
    %v931 = vshrl.u32 %v930, 7
    %v932 = vsub.s32 %v929, %v931
    %v933 = vrot.slane %v926, %v932
    %v935 = vunpack.c.l.s4 1966171168
    %v936 = vunpack.c.0.s8 %v935
    %v937 = vlaneseq
    %v938 = vshrl.u32 %v937, 7
    %v939 = vsub.s32 %v936, %v938
    %v940 = vrot.slane %v933, %v939
    %v941 = vcombine.low %v940, %v940
    %v942 = vcombine.low %v536, %v536
    %v944 = vunpack.c.l.s4 1966171168
    %v945 = vunpack.c.0.s8 %v944
    %v946 = vlaneseq
    %v947 = vshrl.u32 %v946, 7
    %v948 = vsub.s32 %v945, %v947
    %v949 = vrot.slane %v942, %v948
    %v950 = vcombine.low %v949, %v949
    %v952 = vcombine.low %v388, %v388
    %v954 = vunpack.c.l.s4 1966171168
    %v955 = vunpack.c.0.s8 %v954
    %v956 = vlaneseq
    %v957 = vshrl.u32 %v956, 7
    %v958 = vsub.s32 %v955, %v957
    %v959 = vrot.slane %v952, %v958
    %v960 = vcombine.low %v959, %v959
    %v962 = vunpack.c.l.s4 1966171168
    %v963 = vunpack.c.0.s8 %v962
    %v964 = vlaneseq
    %v965 = vshrl.u32 %v964, 7
    %v966 = vsub.s32 %v963, %v965
    %v967 = vrot.slane %v960, %v966
    %v968 = vcombine.low %v967, %v967
    %v969 = vcombine.low %v392, %v392
    %v971 = vunpack.c.l.s4 1966171168
    %v972 = vunpack.c.0.s8 %v971
    %v973 = vlaneseq
    %v974 = vshrl.u32 %v973, 7
    %v975 = vsub.s32 %v972, %v974
    %v976 = vrot.slane %v969, %v975
    %v978 = vunpack.c.l.s4 1966171168
    %v979 = vunpack.c.0.s8 %v978
    %v980 = vlaneseq
    %v981 = vshrl.u32 %v980, 7
    %v982 = vsub.s32 %v979, %v981
    %v983 = vrot.slane %v976, %v982
    %v984 = vcombine.low %v593, %v593
    %v986 = vunpack.c.l.s4 1966171168
    %v987 = vunpack.c.0.s8 %v986
    %v988 = vlaneseq
    %v989 = vshrl.u32 %v988, 7
    %v990 = vsub.s32 %v987, %v989
    %v991 = vrot.slane %v984, %v990
    %v992 = vcombine.low %v396, %v396
    %v994 = vunpack.c.l.s4 1966171168
    %v995 = vunpack.c.0.s8 %v994
    %v996 = vlaneseq
    %v997 = vshrl.u32 %v996, 7
    %v998 = vsub.s32 %v995, %v997
    %v999 = vrot.slane %v992, %v998
    %v1000 = vcombine.low %v999, %v999
    %v1002 = vunpack.c.l.s4 1966171168
    %v1003 = vunpack.c.0.s8 %v1002
    %v1004 = vlaneseq
    %v1005 = vshrl.u32 %v1004, 7
    %v1006 = vsub.s32 %v1003, %v1005
    %v1007 = vrot.slane %v1000, %v1006
    %v1008 = vcombine.low %v647, %v647
    %v1009 = vcombine.low %v400, %v400
    %v1011 = vunpack.c.l.s4 1966171168
    %v1012 = vunpack.c.0.s8 %v1011
    %v1013 = vlaneseq
    %v1014 = vshrl.u32 %v1013, 7
    %v1015 = vsub.s32 %v1012, %v1014
    %v1016 = vrot.slane %v1009, %v1015
    %v1018 = vunpack.c.l.s4 1966171168
    %v1019 = vunpack.c.0.s8 %v1018
    %v1020 = vlaneseq
    %v1021 = vshrl.u32 %v1020, 7
    %v1022 = vsub.s32 %v1019, %v1021
    %v1023 = vrot.slane %v1016, %v1022
    %v1024 = vcombine.low %v1023, %v1023
    %v1027 = vunpack.c.l.s4 1966171168
    %v1028 = vunpack.c.0.s8 %v1027
    %v1029 = vlaneseq
    %v1030 = vshrl.u32 %v1029, 7
    %v1031 = vsub.s32 %v1028, %v1030
    %v1032 = vrot.slane %v885, %v1031
    %v1033 = vcombine.low %v1032, %v1032
    %v1035 = vunpack.c.l.s4 1966171168
    %v1036 = vunpack.c.0.s8 %v1035
    %v1037 = vlaneseq
    %v1038 = vshrl.u32 %v1037, 7
    %v1039 = vsub.s32 %v1036, %v1038
    %v1040 = vrot.slane %v1033, %v1039
    %v1041 = vcombine.low %v1040, %v1040
    %v1044 = vsel %vm334, %v374, %v900
    %v1046 = vsel %vm338, %v1044, %v908
    %v1048 = vsel %vm341, %v1046, %v924
    %v1050 = vsel %vm344, %v1048, %v925
    %v1052 = vsel %vm347, %v1050, %v941
    %v1054 = vsel %vm350, %v1052, %v950
    %v1056 = vsel %vm353, %v1054, %v968
    %v1060 = vsel %vm334, %v390, %v983
    %v1062 = vsel %vm338, %v1060, %v991
    %v1064 = vsel %vm341, %v1062, %v1007
    %v1066 = vsel %vm344, %v1064, %v1008
    %v1068 = vsel %vm347, %v1066, %v1024
    %v1070 = vsel %vm350, %v1068, %v1041
    %v1072 = vld [vmem:[%s1] sm:$0xf]
    %v1073 = vld [vmem:[%s1 + $0x4] sm:$0xf]
    %v1074 = vld [vmem:[%s1 + $0x8] sm:$0xf]
    %v1075 = vld [vmem:[%s1 + $0xc] sm:$0xf]
    %v1076 = vld [vmem:[%s1 + $0x10] sm:$0xf]
    %v1077 = vld [vmem:[%s1 + $0x14] sm:$0xf]
    %v1078 = vld [vmem:[%s1 + $0x18] sm:$0xf]
    %v1079 = vld [vmem:[%s1 + $0x1c] sm:$0xf]
    %v1080 = vld [vmem:[%s1 + $0x20] sm:$0xf]
    %v1081 = vld [vmem:[%s1 + $0x24] sm:$0xf]
    %v1082 = vld [vmem:[%s1 + $0x28] sm:$0xf]
    %v1083 = vld [vmem:[%s1 + $0x2c] sm:$0xf]
    %v1084 = vld [vmem:[%s1 + $0x30] sm:$0xf]
    %v1085 = vld [vmem:[%s1 + $0x34] sm:$0xf]
    %v1086 = vld [vmem:[%s1 + $0x38] sm:$0xf]
    %v1087 = vld [vmem:[%s1 + $0x3c] sm:$0xf]
    %v1088 = vld [vmem:[%s1 + $0x40] sm:$0xf]
    %v1089 = vld [vmem:[%s1 + $0x44] sm:$0xf]
    %v1090 = vld [vmem:[%s1 + $0x48] sm:$0xf]
    %v1091 = vld [vmem:[%s1 + $0x4c] sm:$0xf]
    %v1092 = vld [vmem:[%s1 + $0x50] sm:$0xf]
    %v1093 = vld [vmem:[%s1 + $0x54] sm:$0xf]
    %v1094 = vld [vmem:[%s1 + $0x58] sm:$0xf]
    %v1095 = vld [vmem:[%s1 + $0x5c] sm:$0xf]
    %v1096 = vld [vmem:[%s1 + $0x60] sm:$0xf]
    %v1097 = vld [vmem:[%s1 + $0x64] sm:$0xf]
    %v1098 = vld [vmem:[%s1 + $0x68] sm:$0xf]
    %v1099 = vld [vmem:[%s1 + $0x6c] sm:$0xf]
    %v1100 = vld [vmem:[%s1 + $0x70] sm:$0xf]
    %v1101 = vld [vmem:[%s1 + $0x74] sm:$0xf]
    %v1102 = vld [vmem:[%s1 + $0x78] sm:$0xf]
    %v1103 = vld [vmem:[%s1 + $0x7c] sm:$0xf]
    %v1104 = vld [vmem:[%s1 + $0x80] sm:$0xf]
    %v1105 = vld [vmem:[%s1 + $0x84] sm:$0xf]
    %v1106 = vld [vmem:[%s1 + $0x88] sm:$0xf]
    %v1107 = vld [vmem:[%s1 + $0x8c] sm:$0xf]
    %v1108 = vld [vmem:[%s1 + $0x90] sm:$0xf]
    %v1109 = vld [vmem:[%s1 + $0x94] sm:$0xf]
    %v1110 = vld [vmem:[%s1 + $0x98] sm:$0xf]
    %v1111 = vld [vmem:[%s1 + $0x9c] sm:$0xf]
    %v1112 = vld [vmem:[%s1 + $0xa0] sm:$0xf]
    %v1113 = vld [vmem:[%s1 + $0xa4] sm:$0xf]
    %v1114 = vld [vmem:[%s1 + $0xa8] sm:$0xf]
    %v1115 = vld [vmem:[%s1 + $0xac] sm:$0xf]
    %v1116 = vld [vmem:[%s1 + $0xb0] sm:$0xf]
    %v1117 = vld [vmem:[%s1 + $0xb4] sm:$0xf]
    %v1118 = vld [vmem:[%s1 + $0xb8] sm:$0xf]
    %v1119 = vld [vmem:[%s1 + $0xbc] sm:$0xf]
    %v1120 = vld [vmem:[%s1 + $0xc0] sm:$0xf]
    %v1121 = vld [vmem:[%s1 + $0xc4] sm:$0xf]
    %v1122 = vld [vmem:[%s1 + $0xc8] sm:$0xf]
    %v1123 = vld [vmem:[%s1 + $0xcc] sm:$0xf]
    %v1124 = vld [vmem:[%s1 + $0xd0] sm:$0xf]
    %v1125 = vld [vmem:[%s1 + $0xd4] sm:$0xf]
    %v1126 = vld [vmem:[%s1 + $0xd8] sm:$0xf]
    %v1127 = vld [vmem:[%s1 + $0xdc] sm:$0xf]
    %v1128 = vld [vmem:[%s1 + $0xe0] sm:$0xf]
    %v1129 = vld [vmem:[%s1 + $0xe4] sm:$0xf]
    %v1130 = vld [vmem:[%s1 + $0xe8] sm:$0xf]
    %v1131 = vld [vmem:[%s1 + $0xec] sm:$0xf]
    %v1132 = vld [vmem:[%s1 + $0xf0] sm:$0xf]
    %v1133 = vld [vmem:[%s1 + $0xf4] sm:$0xf]
    %v1134 = vld [vmem:[%s1 + $0xf8] sm:$0xf]
    %v1135 = vld [vmem:[%s1 + $0xfc] sm:$0xf]
    %v1136 = vld [vmem:[%s2] sm:$0x1]
    %v1137 = vld [vmem:[%s3] sm:$0x1]
    %v1138 = vld [vmem:[%s4] sm:$0x1]
    %v1140 = vlaneseq
    %v1141 = vshrl.u32 %v1140, 7
    %v1142 = vsub.s32 0, %v1141
    %v1143 = vrot.slane %v1136, %v1142
    %v1209 = vunpack.c.l.b16 %v1072
    %v1210 = vunpack.c.l.b16 %v1073
    %v1211 = vunpack.c.l.b16 %v1074
    %v1212 = vunpack.c.l.b16 %v1075
    %v1213 = vunpack.c.l.b16 %v1076
    %v1214 = vunpack.c.l.b16 %v1077
    %v1215 = vunpack.c.l.b16 %v1078
    %v1216 = vunpack.c.l.b16 %v1079
    %v1217 = vunpack.c.l.b16 %v1080
    %v1218 = vunpack.c.l.b16 %v1081
    %v1219 = vunpack.c.l.b16 %v1082
    %v1220 = vunpack.c.l.b16 %v1083
    %v1221 = vunpack.c.l.b16 %v1084
    %v1222 = vunpack.c.l.b16 %v1085
    %v1223 = vunpack.c.l.b16 %v1086
    %v1224 = vunpack.c.l.b16 %v1087
    %v1225 = vunpack.c.l.b16 %v1088
    %v1226 = vunpack.c.l.b16 %v1089
    %v1227 = vunpack.c.l.b16 %v1090
    %v1228 = vunpack.c.l.b16 %v1091
    %v1229 = vunpack.c.l.b16 %v1092
    %v1230 = vunpack.c.l.b16 %v1093
    %v1231 = vunpack.c.l.b16 %v1094
    %v1232 = vunpack.c.l.b16 %v1095
    %v1233 = vunpack.c.l.b16 %v1096
    %v1234 = vunpack.c.l.b16 %v1097
    %v1235 = vunpack.c.l.b16 %v1098
    %v1236 = vunpack.c.l.b16 %v1099
    %v1237 = vunpack.c.l.b16 %v1100
    %v1238 = vunpack.c.l.b16 %v1101
    %v1239 = vunpack.c.l.b16 %v1102
    %v1240 = vunpack.c.l.b16 %v1103
    %v1241 = vunpack.c.l.b16 %v1104
    %v1242 = vunpack.c.l.b16 %v1105
    %v1243 = vunpack.c.l.b16 %v1106
    %v1244 = vunpack.c.l.b16 %v1107
    %v1245 = vunpack.c.l.b16 %v1108
    %v1246 = vunpack.c.l.b16 %v1109
    %v1247 = vunpack.c.l.b16 %v1110
    %v1248 = vunpack.c.l.b16 %v1111
    %v1249 = vunpack.c.l.b16 %v1112
    %v1250 = vunpack.c.l.b16 %v1113
    %v1251 = vunpack.c.l.b16 %v1114
    %v1252 = vunpack.c.l.b16 %v1115
    %v1253 = vunpack.c.l.b16 %v1116
    %v1254 = vunpack.c.l.b16 %v1117
    %v1255 = vunpack.c.l.b16 %v1118
    %v1256 = vunpack.c.l.b16 %v1119
    %v1257 = vunpack.c.l.b16 %v1120
    %v1258 = vunpack.c.l.b16 %v1121
    %v1259 = vunpack.c.l.b16 %v1122
    %v1260 = vunpack.c.l.b16 %v1123
    %v1261 = vunpack.c.l.b16 %v1124
    %v1262 = vunpack.c.l.b16 %v1125
    %v1263 = vunpack.c.l.b16 %v1126
    %v1264 = vunpack.c.l.b16 %v1127
    %v1265 = vunpack.c.l.b16 %v1128
    %v1266 = vunpack.c.l.b16 %v1129
    %v1267 = vunpack.c.l.b16 %v1130
    %v1268 = vunpack.c.l.b16 %v1131
    %v1269 = vunpack.c.l.b16 %v1132
    %v1270 = vunpack.c.l.b16 %v1133
    %v1271 = vunpack.c.l.b16 %v1134
    %v1272 = vunpack.c.l.b16 %v1135
    %v1273 = vpack.c.b16 %v1210, %v1209
    %v1274 = vpack.c.b16 %v1212, %v1211
    %v1275 = vpack.c.b16 %v1214, %v1213
    %v1276 = vpack.c.b16 %v1216, %v1215
    %v1277 = vpack.c.b16 %v1218, %v1217
    %v1278 = vpack.c.b16 %v1220, %v1219
    %v1279 = vpack.c.b16 %v1222, %v1221
    %v1280 = vpack.c.b16 %v1224, %v1223
    %v1281 = vpack.c.b16 %v1226, %v1225
    %v1282 = vpack.c.b16 %v1228, %v1227
    %v1283 = vpack.c.b16 %v1230, %v1229
    %v1284 = vpack.c.b16 %v1232, %v1231
    %v1285 = vpack.c.b16 %v1234, %v1233
    %v1286 = vpack.c.b16 %v1236, %v1235
    %v1287 = vpack.c.b16 %v1238, %v1237
    %v1288 = vpack.c.b16 %v1240, %v1239
    %v1289 = vpack.c.b16 %v1242, %v1241
    %v1290 = vpack.c.b16 %v1244, %v1243
    %v1291 = vpack.c.b16 %v1246, %v1245
    %v1292 = vpack.c.b16 %v1248, %v1247
    %v1293 = vpack.c.b16 %v1250, %v1249
    %v1294 = vpack.c.b16 %v1252, %v1251
    %v1295 = vpack.c.b16 %v1254, %v1253
    %v1296 = vpack.c.b16 %v1256, %v1255
    %v1297 = vpack.c.b16 %v1258, %v1257
    %v1298 = vpack.c.b16 %v1260, %v1259
    %v1299 = vpack.c.b16 %v1262, %v1261
    %v1300 = vpack.c.b16 %v1264, %v1263
    %v1301 = vpack.c.b16 %v1266, %v1265
    %v1302 = vpack.c.b16 %v1268, %v1267
    %v1303 = vpack.c.b16 %v1270, %v1269
    %v1304 = vpack.c.b16 %v1272, %v1271
    %1337 = vmatprep.subr.bf16.mxu0 0
    %1338 = vmatpush1.bf16.msra.mxu0 %v1273
    %1339 = vmatprep.subr.bf16.mxu0 0
    %1340 = vmatpush1.bf16.msra.mxu0 %v1274
    %1341 = vmatprep.subr.bf16.mxu0 0
    %1342 = vmatpush1.bf16.msra.mxu0 %v1275
    %1343 = vmatprep.subr.bf16.mxu0 0
    %1344 = vmatpush1.bf16.msra.mxu0 %v1276
    %1345 = vmatprep.subr.bf16.mxu0 0
    %1346 = vmatpush1.bf16.msra.mxu0 %v1277
    %1347 = vmatprep.subr.bf16.mxu0 0
    %1348 = vmatpush1.bf16.msra.mxu0 %v1278
    %1349 = vmatprep.subr.bf16.mxu0 0
    %1350 = vmatpush1.bf16.msra.mxu0 %v1279
    %1351 = vmatprep.subr.bf16.mxu0 0
    %1352 = vmatpush1.bf16.msra.mxu0 %v1280
    %1353 = vmatprep.subr.bf16.mxu0 0
    %1354 = vmatpush1.bf16.msra.mxu0 %v1281
    %1355 = vmatprep.subr.bf16.mxu0 0
    %1356 = vmatpush1.bf16.msra.mxu0 %v1282
    %1357 = vmatprep.subr.bf16.mxu0 0
    %1358 = vmatpush1.bf16.msra.mxu0 %v1283
    %1359 = vmatprep.subr.bf16.mxu0 0
    %1360 = vmatpush1.bf16.msra.mxu0 %v1284
    %1361 = vmatprep.subr.bf16.mxu0 0
    %1362 = vmatpush1.bf16.msra.mxu0 %v1285
    %1363 = vmatprep.subr.bf16.mxu0 0
    %1364 = vmatpush1.bf16.msra.mxu0 %v1286
    %1365 = vmatprep.subr.bf16.mxu0 0
    %1366 = vmatpush1.bf16.msra.mxu0 %v1287
    %1367 = vmatprep.subr.bf16.mxu0 0
    %1368 = vmatpush1.bf16.msra.mxu0 %v1288
    %1369 = vmatprep.mubr.bf16.mxu0 %v680
    %1370 = vmatmul.mubr.bf16.gmra.mrb[0].mxu0 %v355
    %v1371 = vpop.f32.mrb[0].mxu0
    %v1372 = vadd.f32 %v1143, %v1371
    %v1373 = vpop.f32.mrb[0].mxu0
    %v1374 = vpop.f32.mrb[0].mxu0
    %v1375 = vadd.f32 %v1143, %v1374
    %v1376 = vpop.f32.mrb[0].mxu0
    %1377 = vmatprep.mubr.bf16.mxu0 %v694
    %1378 = vmatmul.mubr.bf16.gmra.mrb[0].mxu0 %v369
    %v1379 = vpop.f32.mrb[0].mxu0
    %v1380 = vadd.f32 %v1143, %v1379
    %v1381 = vpop.f32.mrb[0].mxu0
    %v1382 = vpop.f32.mrb[0].mxu0
    %v1383 = vadd.f32 %v1143, %v1382
    %v1384 = vpop.f32.mrb[0].mxu0
    %1385 = vdwg.mxu0
    %1386 = vmatprep.subr.bf16.mxu0 0
    %1387 = vmatpush1.bf16.msra.mxu0 %v1289
    %1388 = vmatprep.subr.bf16.mxu0 0
    %1389 = vmatpush1.bf16.msra.mxu0 %v1290
    %1390 = vmatprep.subr.bf16.mxu0 0
    %1391 = vmatpush1.bf16.msra.mxu0 %v1291
    %1392 = vmatprep.subr.bf16.mxu0 0
    %1393 = vmatpush1.bf16.msra.mxu0 %v1292
    %1394 = vmatprep.subr.bf16.mxu0 0
    %1395 = vmatpush1.bf16.msra.mxu0 %v1293
    %1396 = vmatprep.subr.bf16.mxu0 0
    %1397 = vmatpush1.bf16.msra.mxu0 %v1294
    %1398 = vmatprep.subr.bf16.mxu0 0
    %1399 = vmatpush1.bf16.msra.mxu0 %v1295
    %1400 = vmatprep.subr.bf16.mxu0 0
    %1401 = vmatpush1.bf16.msra.mxu0 %v1296
    %1402 = vmatprep.subr.bf16.mxu0 0
    %1403 = vmatpush1.bf16.msra.mxu0 %v1297
    %1404 = vmatprep.subr.bf16.mxu0 0
    %1405 = vmatpush1.bf16.msra.mxu0 %v1298
    %1406 = vmatprep.subr.bf16.mxu0 0
    %1407 = vmatpush1.bf16.msra.mxu0 %v1299
    %1408 = vmatprep.subr.bf16.mxu0 0
    %1409 = vmatpush1.bf16.msra.mxu0 %v1300
    %1410 = vmatprep.subr.bf16.mxu0 0
    %1411 = vmatpush1.bf16.msra.mxu0 %v1301
    %1412 = vmatprep.subr.bf16.mxu0 0
    %1413 = vmatpush1.bf16.msra.mxu0 %v1302
    %1414 = vmatprep.subr.bf16.mxu0 0
    %1415 = vmatpush1.bf16.msra.mxu0 %v1303
    %1416 = vmatprep.subr.bf16.mxu0 0
    %1417 = vmatpush1.bf16.msra.mxu0 %v1304
    %1418 = vmatprep.mubr.bf16.mxu0 %v1056
    %1419 = vmatmul.mubr.bf16.gmra.mrb[0].mxu0 %v868
    %v1420 = vpop.f32.mrb[0].mxu0
    %v1421 = vadd.f32 %v1372, %v1420
    %v1422 = vpop.f32.mrb[0].mxu0
    %v1423 = vpop.f32.mrb[0].mxu0
    %v1424 = vadd.f32 %v1375, %v1423
    %v1425 = vpop.f32.mrb[0].mxu0
    %1426 = vmatprep.mubr.bf16.mxu0 %v1070
    %1427 = vmatmul.mubr.bf16.gmra.mrb[0].mxu0 %v882
    %v1428 = vpop.f32.mrb[0].mxu0
    %v1429 = vadd.f32 %v1380, %v1428
    %v1430 = vpop.f32.mrb[0].mxu0
    %v1431 = vpop.f32.mrb[0].mxu0
    %v1432 = vadd.f32 %v1383, %v1431
    %v1433 = vpop.f32.mrb[0].mxu0
    %1434 = vdwg.mxu0
    %vm1435 = vcmask 982016
    %v1436 = vsel %vm1435, %v1421, 0.0
    %v1437 = vsel %vm1435, %v1424, 0.0
    %v1438 = vadd.f32 %v1436, %v1437
    %v1439 = vsel %vm1435, %v1429, 0.0
    %v1440 = vadd.f32 %v1438, %v1439
    %vm1441 = vcmask 979968
    %v1442 = vsel %vm1441, %v1432, 0.0
    %v1443 = vadd.f32 %v1440, %v1442
    %v1444 = vrot.slane %v1443, 4
    %v1445 = vadd.f32 %v1443, %v1444
    %v1446 = vrot.slane %v1445, 2
    %v1447 = vadd.f32 %v1445, %v1446
    %v1448 = vrot.slane %v1447, 1
    %v1449 = vadd.f32 %v1447, %v1448
    %v1450 = vmul.f32 %v1421, %v1421
    %v1451 = vmul.f32 %v1424, %v1424
    %v1452 = vmul.f32 %v1429, %v1429
    %v1453 = vmul.f32 %v1432, %v1432
    %v1454 = vsel %vm1435, %v1450, 0.0
    %v1455 = vsel %vm1435, %v1451, 0.0
    %v1456 = vadd.f32 %v1454, %v1455
    %v1457 = vsel %vm1435, %v1452, 0.0
    %v1458 = vadd.f32 %v1456, %v1457
    %v1459 = vsel %vm1441, %v1453, 0.0
    %v1460 = vadd.f32 %v1458, %v1459
    %v1461 = vrot.slane %v1460, 4
    %v1462 = vadd.f32 %v1460, %v1461
    %v1463 = vrot.slane %v1462, 2
    %v1464 = vadd.f32 %v1462, %v1463
    %v1465 = vrot.slane %v1464, 1
    %v1466 = vadd.f32 %v1464, %v1465
    %1468 = vrot.lane.b32.xlu0 %v1449, 120
    %v1469 = vpop.permute.xlu0 %1468
    %v1471 = vadd.f32 %v1449, %v1469
    %1473 = vrot.lane.b32.xlu0 %v1466, 120
    %v1474 = vpop.permute.xlu0 %1473
    %v1476 = vadd.f32 %v1466, %v1474
    %1477 = vrot.lane.b32.xlu0 %v1449, 112
    %v1478 = vpop.permute.xlu0 %1477
    %v1480 = vadd.f32 %v1471, %v1478
    %1481 = vrot.lane.b32.xlu0 %v1466, 112
    %v1482 = vpop.permute.xlu0 %1481
    %v1484 = vadd.f32 %v1476, %v1482
    %1485 = vrot.lane.b32.xlu0 %v1449, 104
    %v1486 = vpop.permute.xlu0 %1485
    %v1488 = vadd.f32 %v1480, %v1486
    %1489 = vrot.lane.b32.xlu0 %v1466, 104
    %v1490 = vpop.permute.xlu0 %1489
    %v1492 = vadd.f32 %v1484, %v1490
    %1493 = vrot.lane.b32.xlu0 %v1449, 96
    %v1494 = vpop.permute.xlu0 %1493
    %v1496 = vadd.f32 %v1488, %v1494
    %1497 = vrot.lane.b32.xlu0 %v1466, 96
    %v1498 = vpop.permute.xlu0 %1497
    %v1500 = vadd.f32 %v1492, %v1498
    %1501 = vrot.lane.b32.xlu0 %v1449, 88
    %v1502 = vpop.permute.xlu0 %1501
    %v1504 = vadd.f32 %v1496, %v1502
    %1505 = vrot.lane.b32.xlu0 %v1466, 88
    %v1506 = vpop.permute.xlu0 %1505
    %v1508 = vadd.f32 %v1500, %v1506
    %1509 = vrot.lane.b32.xlu0 %v1449, 80
    %v1510 = vpop.permute.xlu0 %1509
    %v1512 = vadd.f32 %v1504, %v1510
    %1513 = vrot.lane.b32.xlu0 %v1466, 80
    %v1514 = vpop.permute.xlu0 %1513
    %v1516 = vadd.f32 %v1508, %v1514
    %1517 = vrot.lane.b32.xlu0 %v1449, 72
    %v1518 = vpop.permute.xlu0 %1517
    %v1520 = vadd.f32 %v1512, %v1518
    %1521 = vrot.lane.b32.xlu0 %v1466, 72
    %v1522 = vpop.permute.xlu0 %1521
    %v1524 = vadd.f32 %v1516, %v1522
    %1525 = vrot.lane.b32.xlu0 %v1449, 64
    %v1526 = vpop.permute.xlu0 %1525
    %v1528 = vadd.f32 %v1520, %v1526
    %1529 = vrot.lane.b32.xlu0 %v1466, 64
    %v1530 = vpop.permute.xlu0 %1529
    %v1532 = vadd.f32 %v1524, %v1530
    %1533 = vrot.lane.b32.xlu0 %v1449, 56
    %v1534 = vpop.permute.xlu0 %1533
    %v1536 = vadd.f32 %v1528, %v1534
    %1537 = vrot.lane.b32.xlu0 %v1466, 56
    %v1538 = vpop.permute.xlu0 %1537
    %v1540 = vadd.f32 %v1532, %v1538
    %1541 = vrot.lane.b32.xlu0 %v1449, 48
    %v1542 = vpop.permute.xlu0 %1541
    %v1544 = vadd.f32 %v1536, %v1542
    %1545 = vrot.lane.b32.xlu0 %v1466, 48
    %v1546 = vpop.permute.xlu0 %1545
    %v1548 = vadd.f32 %v1540, %v1546
    %1549 = vrot.lane.b32.xlu0 %v1449, 40
    %v1550 = vpop.permute.xlu0 %1549
    %v1552 = vadd.f32 %v1544, %v1550
    %1553 = vrot.lane.b32.xlu0 %v1466, 40
    %v1554 = vpop.permute.xlu0 %1553
    %v1556 = vadd.f32 %v1548, %v1554
    %1557 = vrot.lane.b32.xlu0 %v1449, 32
    %v1558 = vpop.permute.xlu0 %1557
    %v1560 = vadd.f32 %v1552, %v1558
    %1561 = vrot.lane.b32.xlu0 %v1466, 32
    %v1562 = vpop.permute.xlu0 %1561
    %v1564 = vadd.f32 %v1556, %v1562
    %1565 = vrot.lane.b32.xlu0 %v1449, 24
    %v1566 = vpop.permute.xlu0 %1565
    %v1568 = vadd.f32 %v1560, %v1566
    %1569 = vrot.lane.b32.xlu0 %v1466, 24
    %v1570 = vpop.permute.xlu0 %1569
    %v1572 = vadd.f32 %v1564, %v1570
    %1573 = vrot.lane.b32.xlu0 %v1449, 16
    %v1574 = vpop.permute.xlu0 %1573
    %v1576 = vadd.f32 %v1568, %v1574
    %1577 = vrot.lane.b32.xlu0 %v1466, 16
    %v1578 = vpop.permute.xlu0 %1577
    %v1580 = vadd.f32 %v1572, %v1578
    %v1581 = vrcp.pop 450.0
    %v1582 = vmul.f32 %v1576, %v1581
    %v1583 = vmul.f32 %v1580, %v1581
    %v1584 = vmul.f32 %v1582, %v1582
    %v1585 = vsub.f32 %v1583, %v1584
    %v1586 = vadd.f32 %v1585, 1e-05
    %v1587 = vrsqrt.pop %v1586
    %v1588 = vmul.f32 %v1137, %v1587
    %v1589 = vmul.f32 %v1582, %v1588
    %v1590 = vsub.f32 %v1138, %v1589
    %v1592 = vlaneseq
    %v1593 = vshrl.u32 %v1592, 7
    %v1594 = vsub.s32 0, %v1593
    %v1595 = vrot.slane %v1588, %v1594
    %1596 = vrot.lane.b32.xlu0 %v1595, 8
    %v1597 = vpop.permute.xlu0 %1596
    %1599 = vrot.lane.b32.xlu0 %v1595, 16
    %v1600 = vpop.permute.xlu0 %1599
    %1602 = vrot.lane.b32.xlu0 %v1595, 24
    %v1603 = vpop.permute.xlu0 %1602
    %1605 = vrot.lane.b32.xlu0 %v1595, 32
    %v1606 = vpop.permute.xlu0 %1605
    %1608 = vrot.lane.b32.xlu0 %v1595, 40
    %v1609 = vpop.permute.xlu0 %1608
    %1611 = vrot.lane.b32.xlu0 %v1595, 48
    %v1612 = vpop.permute.xlu0 %1611
    %1614 = vrot.lane.b32.xlu0 %v1595, 56
    %v1615 = vpop.permute.xlu0 %1614
    %1617 = vrot.lane.b32.xlu0 %v1595, 64
    %v1618 = vpop.permute.xlu0 %1617
    %1620 = vrot.lane.b32.xlu0 %v1595, 72
    %v1621 = vpop.permute.xlu0 %1620
    %1623 = vrot.lane.b32.xlu0 %v1595, 80
    %v1624 = vpop.permute.xlu0 %1623
    %1626 = vrot.lane.b32.xlu0 %v1595, 88
    %v1627 = vpop.permute.xlu0 %1626
    %1629 = vrot.lane.b32.xlu0 %v1595, 96
    %v1630 = vpop.permute.xlu0 %1629
    %1632 = vrot.lane.b32.xlu0 %v1595, 104
    %v1633 = vpop.permute.xlu0 %1632
    %1635 = vrot.lane.b32.xlu0 %v1595, 112
    %v1636 = vpop.permute.xlu0 %1635
    %vm1638 = vcmask 64512
    %v1639 = vsel %vm1638, %v1588, %v1597
    %vm1640 = vcmask 130048
    %v1641 = vsel %vm1640, %v1639, %v1600
    %vm1642 = vcmask 195584
    %v1643 = vsel %vm1642, %v1641, %v1603
    %vm1644 = vcmask 261120
    %v1645 = vsel %vm1644, %v1643, %v1606
    %vm1646 = vcmask 326656
    %v1647 = vsel %vm1646, %v1645, %v1609
    %vm1648 = vcmask 392192
    %v1649 = vsel %vm1648, %v1647, %v1612
    %vm1650 = vcmask 457728
    %v1651 = vsel %vm1650, %v1649, %v1615
    %vm1652 = vcmask 523264
    %v1653 = vsel %vm1652, %v1651, %v1618
    %vm1654 = vcmask 588800
    %v1655 = vsel %vm1654, %v1653, %v1621
    %vm1656 = vcmask 654336
    %v1657 = vsel %vm1656, %v1655, %v1624
    %vm1658 = vcmask 719872
    %v1659 = vsel %vm1658, %v1657, %v1627
    %vm1660 = vcmask 785408
    %v1661 = vsel %vm1660, %v1659, %v1630
    %vm1662 = vcmask 850944
    %v1663 = vsel %vm1662, %v1661, %v1633
    %vm1664 = vcmask 916480
    %v1665 = vsel %vm1664, %v1663, %v1636
    %v1667 = vlaneseq
    %v1668 = vshrl.u32 %v1667, 7
    %v1669 = vsub.s32 0, %v1668
    %v1670 = vrot.slane %v1590, %v1669
    %1671 = vrot.lane.b32.xlu0 %v1670, 8
    %v1672 = vpop.permute.xlu0 %1671
    %1674 = vrot.lane.b32.xlu0 %v1670, 16
    %v1675 = vpop.permute.xlu0 %1674
    %1677 = vrot.lane.b32.xlu0 %v1670, 24
    %v1678 = vpop.permute.xlu0 %1677
    %1680 = vrot.lane.b32.xlu0 %v1670, 32
    %v1681 = vpop.permute.xlu0 %1680
    %1683 = vrot.lane.b32.xlu0 %v1670, 40
    %v1684 = vpop.permute.xlu0 %1683
    %1686 = vrot.lane.b32.xlu0 %v1670, 48
    %v1687 = vpop.permute.xlu0 %1686
    %1689 = vrot.lane.b32.xlu0 %v1670, 56
    %v1690 = vpop.permute.xlu0 %1689
    %1692 = vrot.lane.b32.xlu0 %v1670, 64
    %v1693 = vpop.permute.xlu0 %1692
    %1695 = vrot.lane.b32.xlu0 %v1670, 72
    %v1696 = vpop.permute.xlu0 %1695
    %1698 = vrot.lane.b32.xlu0 %v1670, 80
    %v1699 = vpop.permute.xlu0 %1698
    %1701 = vrot.lane.b32.xlu0 %v1670, 88
    %v1702 = vpop.permute.xlu0 %1701
    %1704 = vrot.lane.b32.xlu0 %v1670, 96
    %v1705 = vpop.permute.xlu0 %1704
    %1707 = vrot.lane.b32.xlu0 %v1670, 104
    %v1708 = vpop.permute.xlu0 %1707
    %1710 = vrot.lane.b32.xlu0 %v1670, 112
    %v1711 = vpop.permute.xlu0 %1710
    %v1713 = vsel %vm1638, %v1590, %v1672
    %v1714 = vsel %vm1640, %v1713, %v1675
    %v1715 = vsel %vm1642, %v1714, %v1678
    %v1716 = vsel %vm1644, %v1715, %v1681
    %v1717 = vsel %vm1646, %v1716, %v1684
    %v1718 = vsel %vm1648, %v1717, %v1687
    %v1719 = vsel %vm1650, %v1718, %v1690
    %v1720 = vsel %vm1652, %v1719, %v1693
    %v1721 = vsel %vm1654, %v1720, %v1696
    %v1722 = vsel %vm1656, %v1721, %v1699
    %v1723 = vsel %vm1658, %v1722, %v1702
    %v1724 = vsel %vm1660, %v1723, %v1705
    %v1725 = vsel %vm1662, %v1724, %v1708
    %v1726 = vsel %vm1664, %v1725, %v1711
    %v1727 = vlaneseq
    %v1728 = vshrl.u32 %v1727, 7
    %v1729 = vsub.s32 0, %v1728
    %v1730 = vrot.slane %v1665, %v1729
    %v1731 = vmul.f32 %v1421, %v1730
    %v1732 = vmul.f32 %v1424, %v1730
    %v1733 = vmul.f32 %v1429, %v1730
    %v1734 = vmul.f32 %v1432, %v1730
    %v1735 = vlaneseq
    %v1736 = vshrl.u32 %v1735, 7
    %v1737 = vsub.s32 0, %v1736
    %v1738 = vrot.slane %v1726, %v1737
    %v1739 = vadd.f32 %v1731, %v1738
    %v1740 = vadd.f32 %v1732, %v1738
    %v1741 = vadd.f32 %v1733, %v1738
    %v1742 = vadd.f32 %v1734, %v1738
    %vm1743 = vcmp.ge.f32.partialorder %v1739, 0.0
    %vm1744 = vcmp.ge.f32.partialorder %v1740, 0.0
    %vm1745 = vcmp.ge.f32.partialorder %v1741, 0.0
    %vm1746 = vcmp.ge.f32.partialorder %v1742, 0.0
    %v1747 = vmul.f32 %v1739, 0.2
    %v1748 = vmul.f32 %v1740, 0.2
    %v1749 = vmul.f32 %v1741, 0.2
    %v1750 = vmul.f32 %v1742, 0.2
    %v1751 = vsel %vm1743, %v1739, %v1747
    %v1752 = vsel %vm1744, %v1740, %v1748
    %v1753 = vsel %vm1745, %v1741, %v1749
    %v1754 = vsel %vm1746, %v1742, %v1750
    %v1755 = vpack.c.bf16 %v1751, %v1751
    %vm1756 = vcmask 974848
    %1757 = vst.msk [vmem:[#allocation2] sm:$0x1] %vm1756, %v1755
    %v1760 = vunpack.c.l.s4 1966171168
    %v1761 = vunpack.c.0.s8 %v1760
    %v1762 = vlaneseq
    %v1763 = vshrl.u32 %v1762, 7
    %v1764 = vsub.s32 %v1761, %v1763
    %v1765 = vrot.slane %v1755, %v1764
    %v1766 = vcombine.high %v1765, %v1765
    %v1768 = vunpack.c.l.s4 1966171168
    %v1769 = vunpack.c.0.s8 %v1768
    %v1770 = vlaneseq
    %v1771 = vshrl.u32 %v1770, 7
    %v1772 = vsub.s32 %v1769, %v1771
    %v1773 = vrot.slane %v1765, %v1772
    %v1775 = vunpack.c.l.s4 1966171168
    %v1776 = vunpack.c.0.s8 %v1775
    %v1777 = vlaneseq
    %v1778 = vshrl.u32 %v1777, 7
    %v1779 = vsub.s32 %v1776, %v1778
    %v1780 = vrot.slane %v1766, %v1779
    %s1782 = scalar_lea.vmem [#allocation2], 1
    %1783 = vst.msk [vmem:[%s1782] sm:$0x1] %vm1756, %v1780
    %v1784 = vcombine.high %v1773, %v1773
    %s1786 = scalar_lea.vmem [#allocation2], 2
    %1787 = vst.msk [vmem:[%s1786] sm:$0x1] %vm1756, %v1784
    %v1788 = vcombine.high %v1780, %v1780
    %s1790 = scalar_lea.vmem [#allocation2], 3
    %1791 = vst.msk [vmem:[%s1790] sm:$0x1] %vm1756, %v1788
    %v1792 = vpack.c.bf16 %v1752, %v1752
    %s1793 = scalar_lea.vmem [#allocation2], 4
    %1794 = vst.msk [vmem:[%s1793] sm:$0x1] %vm1756, %v1792
    %v1797 = vunpack.c.l.s4 1966171168
    %v1798 = vunpack.c.0.s8 %v1797
    %v1799 = vlaneseq
    %v1800 = vshrl.u32 %v1799, 7
    %v1801 = vsub.s32 %v1798, %v1800
    %v1802 = vrot.slane %v1792, %v1801
    %v1803 = vcombine.high %v1802, %v1802
    %v1805 = vunpack.c.l.s4 1966171168
    %v1806 = vunpack.c.0.s8 %v1805
    %v1807 = vlaneseq
    %v1808 = vshrl.u32 %v1807, 7
    %v1809 = vsub.s32 %v1806, %v1808
    %v1810 = vrot.slane %v1802, %v1809
    %v1812 = vunpack.c.l.s4 1966171168
    %v1813 = vunpack.c.0.s8 %v1812
    %v1814 = vlaneseq
    %v1815 = vshrl.u32 %v1814, 7
    %v1816 = vsub.s32 %v1813, %v1815
    %v1817 = vrot.slane %v1803, %v1816
    %s1819 = scalar_lea.vmem [#allocation2], 5
    %1820 = vst.msk [vmem:[%s1819] sm:$0x1] %vm1756, %v1817
    %v1821 = vcombine.high %v1810, %v1810
    %s1823 = scalar_lea.vmem [#allocation2], 6
    %1824 = vst.msk [vmem:[%s1823] sm:$0x1] %vm1756, %v1821
    %v1825 = vcombine.high %v1817, %v1817
    %s1827 = scalar_lea.vmem [#allocation2], 7
    %1828 = vst.msk [vmem:[%s1827] sm:$0x1] %vm1756, %v1825
    %v1829 = vpack.c.bf16 %v1753, %v1753
    %s1830 = scalar_lea.vmem [#allocation2], 8
    %1831 = vst.msk [vmem:[%s1830] sm:$0x1] %vm1756, %v1829
    %v1834 = vunpack.c.l.s4 1966171168
    %v1835 = vunpack.c.0.s8 %v1834
    %v1836 = vlaneseq
    %v1837 = vshrl.u32 %v1836, 7
    %v1838 = vsub.s32 %v1835, %v1837
    %v1839 = vrot.slane %v1829, %v1838
    %v1840 = vcombine.high %v1839, %v1839
    %v1842 = vunpack.c.l.s4 1966171168
    %v1843 = vunpack.c.0.s8 %v1842
    %v1844 = vlaneseq
    %v1845 = vshrl.u32 %v1844, 7
    %v1846 = vsub.s32 %v1843, %v1845
    %v1847 = vrot.slane %v1839, %v1846
    %v1849 = vunpack.c.l.s4 1966171168
    %v1850 = vunpack.c.0.s8 %v1849
    %v1851 = vlaneseq
    %v1852 = vshrl.u32 %v1851, 7
    %v1853 = vsub.s32 %v1850, %v1852
    %v1854 = vrot.slane %v1840, %v1853
    %s1856 = scalar_lea.vmem [#allocation2], 9
    %1857 = vst.msk [vmem:[%s1856] sm:$0x1] %vm1756, %v1854
    %v1858 = vcombine.high %v1847, %v1847
    %s1860 = scalar_lea.vmem [#allocation2], 10
    %1861 = vst.msk [vmem:[%s1860] sm:$0x1] %vm1756, %v1858
    %v1862 = vcombine.high %v1854, %v1854
    %s1864 = scalar_lea.vmem [#allocation2], 11
    %1865 = vst.msk [vmem:[%s1864] sm:$0x1] %vm1756, %v1862
    %v1866 = vpack.c.bf16 %v1754, %v1754
    %s1867 = scalar_lea.vmem [#allocation2], 12
    %1868 = vst.msk [vmem:[%s1867] sm:$0x1] %vm1756, %v1866
    %v1871 = vunpack.c.l.s4 1966171168
    %v1872 = vunpack.c.0.s8 %v1871
    %v1873 = vlaneseq
    %v1874 = vshrl.u32 %v1873, 7
    %v1875 = vsub.s32 %v1872, %v1874
    %v1876 = vrot.slane %v1866, %v1875
    %v1877 = vcombine.high %v1876, %v1876
    %v1879 = vunpack.c.l.s4 1966171168
    %v1880 = vunpack.c.0.s8 %v1879
    %v1881 = vlaneseq
    %v1882 = vshrl.u32 %v1881, 7
    %v1883 = vsub.s32 %v1880, %v1882
    %v1884 = vrot.slane %v1876, %v1883
    %v1886 = vunpack.c.l.s4 1966171168
    %v1887 = vunpack.c.0.s8 %v1886
    %v1888 = vlaneseq
    %v1889 = vshrl.u32 %v1888, 7
    %v1890 = vsub.s32 %v1887, %v1889
    %v1891 = vrot.slane %v1877, %v1890
    %s1893 = scalar_lea.vmem [#allocation2], 13
    %1894 = vst.msk [vmem:[%s1893] sm:$0x1] %vm1756, %v1891
    %v1895 = vcombine.high %v1884, %v1884
    %s1897 = scalar_lea.vmem [#allocation2], 14
    %1898 = vst.msk [vmem:[%s1897] sm:$0x1] %vm1756, %v1895
    %v1899 = vld [vmem:[#allocation2] sm:$0x1]
    %v1900 = vld [vmem:[%s1786] sm:$0x1]
    %v1901 = vld [vmem:[%s1793] sm:$0x1]
    %v1902 = vld [vmem:[%s1823] sm:$0x1]
    %v1903 = vld [vmem:[%s1830] sm:$0x1]
    %v1904 = vld [vmem:[%s1860] sm:$0x1]
    %v1906 = vcombine.low %v1900, %v1900
    %v1908 = vunpack.c.l.s4 1966171168
    %v1909 = vunpack.c.0.s8 %v1908
    %v1910 = vlaneseq
    %v1911 = vshrl.u32 %v1910, 7
    %v1912 = vsub.s32 %v1909, %v1911
    %v1913 = vrot.slane %v1906, %v1912
    %v1915 = vunpack.c.l.s4 1966171168
    %v1916 = vunpack.c.0.s8 %v1915
    %v1917 = vlaneseq
    %v1918 = vshrl.u32 %v1917, 7
    %v1919 = vsub.s32 %v1916, %v1918
    %v1920 = vrot.slane %v1913, %v1919
    %v1923 = vunpack.c.l.s4 1966171168
    %v1924 = vunpack.c.0.s8 %v1923
    %v1925 = vlaneseq
    %v1926 = vshrl.u32 %v1925, 7
    %v1927 = vsub.s32 %v1924, %v1926
    %v1928 = vrot.slane %v1901, %v1927
    %v1929 = vcombine.low %v1928, %v1928
    %v1931 = vunpack.c.l.s4 1966171168
    %v1932 = vunpack.c.0.s8 %v1931
    %v1933 = vlaneseq
    %v1934 = vshrl.u32 %v1933, 7
    %v1935 = vsub.s32 %v1932, %v1934
    %v1936 = vrot.slane %v1929, %v1935
    %v1938 = vcombine.low %v1902, %v1902
    %v1940 = vunpack.c.l.s4 1966171168
    %v1941 = vunpack.c.0.s8 %v1940
    %v1942 = vlaneseq
    %v1943 = vshrl.u32 %v1942, 7
    %v1944 = vsub.s32 %v1941, %v1943
    %v1945 = vrot.slane %v1938, %v1944
    %v1947 = vunpack.c.l.s4 1966171168
    %v1948 = vunpack.c.0.s8 %v1947
    %v1949 = vlaneseq
    %v1950 = vshrl.u32 %v1949, 7
    %v1951 = vsub.s32 %v1948, %v1950
    %v1952 = vrot.slane %v1902, %v1951
    %v1953 = vcombine.low %v1945, %v1945
    %v1955 = vunpack.c.l.s4 1966171168
    %v1956 = vunpack.c.0.s8 %v1955
    %v1957 = vlaneseq
    %v1958 = vshrl.u32 %v1957, 7
    %v1959 = vsub.s32 %v1956, %v1958
    %v1960 = vrot.slane %v1953, %v1959
    %v1963 = vunpack.c.l.s4 1966171168
    %v1964 = vunpack.c.0.s8 %v1963
    %v1965 = vlaneseq
    %v1966 = vshrl.u32 %v1965, 7
    %v1967 = vsub.s32 %v1964, %v1966
    %v1968 = vrot.slane %v1903, %v1967
    %v1970 = vunpack.c.l.s4 1966171168
    %v1971 = vunpack.c.0.s8 %v1970
    %v1972 = vlaneseq
    %v1973 = vshrl.u32 %v1972, 7
    %v1974 = vsub.s32 %v1971, %v1973
    %v1975 = vrot.slane %v1968, %v1974
    %v1976 = vcombine.low %v1975, %v1975
    %v1978 = vcombine.low %v1904, %v1904
    %v1980 = vunpack.c.l.s4 1966171168
    %v1981 = vunpack.c.0.s8 %v1980
    %v1982 = vlaneseq
    %v1983 = vshrl.u32 %v1982, 7
    %v1984 = vsub.s32 %v1981, %v1983
    %v1985 = vrot.slane %v1978, %v1984
    %v1987 = vunpack.c.l.s4 1966171168
    %v1988 = vunpack.c.0.s8 %v1987
    %v1989 = vlaneseq
    %v1990 = vshrl.u32 %v1989, 7
    %v1991 = vsub.s32 %v1988, %v1990
    %v1992 = vrot.slane %v1904, %v1991
    %v1994 = vunpack.c.l.s4 1966171168
    %v1995 = vunpack.c.0.s8 %v1994
    %v1996 = vlaneseq
    %v1997 = vshrl.u32 %v1996, 7
    %v1998 = vsub.s32 %v1995, %v1997
    %v1999 = vrot.slane %v1985, %v1998
    %v2001 = vunpack.c.l.s4 1966171168
    %v2002 = vunpack.c.0.s8 %v2001
    %v2003 = vlaneseq
    %v2004 = vshrl.u32 %v2003, 7
    %v2005 = vsub.s32 %v2002, %v2004
    %v2006 = vrot.slane %v1992, %v2005
    %v2007 = vcombine.low %v1999, %v1999
    %v2010 = vsel %vm334, %v1899, %v1920
    %v2012 = vsel %vm338, %v2010, %v1936
    %v2014 = vsel %vm341, %v2012, %v1960
    %v2016 = vsel %vm344, %v2014, %v1976
    %v2018 = vsel %vm347, %v2016, %v2007
    %v2019 = vld [vmem:[%s1782] sm:$0x1]
    %v2020 = vld [vmem:[%s1790] sm:$0x1]
    %v2021 = vld [vmem:[%s1819] sm:$0x1]
    %v2022 = vld [vmem:[%s1827] sm:$0x1]
    %v2023 = vld [vmem:[%s1856] sm:$0x1]
    %v2024 = vld [vmem:[%s1864] sm:$0x1]
    %v2026 = vcombine.low %v2020, %v2020
    %v2028 = vunpack.c.l.s4 1966171168
    %v2029 = vunpack.c.0.s8 %v2028
    %v2030 = vlaneseq
    %v2031 = vshrl.u32 %v2030, 7
    %v2032 = vsub.s32 %v2029, %v2031
    %v2033 = vrot.slane %v2026, %v2032
    %v2035 = vunpack.c.l.s4 1966171168
    %v2036 = vunpack.c.0.s8 %v2035
    %v2037 = vlaneseq
    %v2038 = vshrl.u32 %v2037, 7
    %v2039 = vsub.s32 %v2036, %v2038
    %v2040 = vrot.slane %v2033, %v2039
    %v2043 = vunpack.c.l.s4 1966171168
    %v2044 = vunpack.c.0.s8 %v2043
    %v2045 = vlaneseq
    %v2046 = vshrl.u32 %v2045, 7
    %v2047 = vsub.s32 %v2044, %v2046
    %v2048 = vrot.slane %v2021, %v2047
    %v2049 = vcombine.low %v2048, %v2048
    %v2051 = vunpack.c.l.s4 1966171168
    %v2052 = vunpack.c.0.s8 %v2051
    %v2053 = vlaneseq
    %v2054 = vshrl.u32 %v2053, 7
    %v2055 = vsub.s32 %v2052, %v2054
    %v2056 = vrot.slane %v2049, %v2055
    %v2058 = vcombine.low %v2022, %v2022
    %v2060 = vunpack.c.l.s4 1966171168
    %v2061 = vunpack.c.0.s8 %v2060
    %v2062 = vlaneseq
    %v2063 = vshrl.u32 %v2062, 7
    %v2064 = vsub.s32 %v2061, %v2063
    %v2065 = vrot.slane %v2058, %v2064
    %v2067 = vunpack.c.l.s4 1966171168
    %v2068 = vunpack.c.0.s8 %v2067
    %v2069 = vlaneseq
    %v2070 = vshrl.u32 %v2069, 7
    %v2071 = vsub.s32 %v2068, %v2070
    %v2072 = vrot.slane %v2022, %v2071
    %v2073 = vcombine.low %v2065, %v2065
    %v2075 = vunpack.c.l.s4 1966171168
    %v2076 = vunpack.c.0.s8 %v2075
    %v2077 = vlaneseq
    %v2078 = vshrl.u32 %v2077, 7
    %v2079 = vsub.s32 %v2076, %v2078
    %v2080 = vrot.slane %v2073, %v2079
    %v2083 = vunpack.c.l.s4 1966171168
    %v2084 = vunpack.c.0.s8 %v2083
    %v2085 = vlaneseq
    %v2086 = vshrl.u32 %v2085, 7
    %v2087 = vsub.s32 %v2084, %v2086
    %v2088 = vrot.slane %v2023, %v2087
    %v2090 = vunpack.c.l.s4 1966171168
    %v2091 = vunpack.c.0.s8 %v2090
    %v2092 = vlaneseq
    %v2093 = vshrl.u32 %v2092, 7
    %v2094 = vsub.s32 %v2091, %v2093
    %v2095 = vrot.slane %v2088, %v2094
    %v2096 = vcombine.low %v2095, %v2095
    %v2098 = vcombine.low %v2024, %v2024
    %v2100 = vunpack.c.l.s4 1966171168
    %v2101 = vunpack.c.0.s8 %v2100
    %v2102 = vlaneseq
    %v2103 = vshrl.u32 %v2102, 7
    %v2104 = vsub.s32 %v2101, %v2103
    %v2105 = vrot.slane %v2098, %v2104
    %v2107 = vunpack.c.l.s4 1966171168
    %v2108 = vunpack.c.0.s8 %v2107
    %v2109 = vlaneseq
    %v2110 = vshrl.u32 %v2109, 7
    %v2111 = vsub.s32 %v2108, %v2110
    %v2112 = vrot.slane %v2024, %v2111
    %v2114 = vunpack.c.l.s4 1966171168
    %v2115 = vunpack.c.0.s8 %v2114
    %v2116 = vlaneseq
    %v2117 = vshrl.u32 %v2116, 7
    %v2118 = vsub.s32 %v2115, %v2117
    %v2119 = vrot.slane %v2105, %v2118
    %v2121 = vunpack.c.l.s4 1966171168
    %v2122 = vunpack.c.0.s8 %v2121
    %v2123 = vlaneseq
    %v2124 = vshrl.u32 %v2123, 7
    %v2125 = vsub.s32 %v2122, %v2124
    %v2126 = vrot.slane %v2112, %v2125
    %v2127 = vcombine.low %v2119, %v2119
    %v2130 = vsel %vm334, %v2019, %v2040
    %v2132 = vsel %vm338, %v2130, %v2056
    %v2134 = vsel %vm341, %v2132, %v2080
    %v2136 = vsel %vm344, %v2134, %v2096
    %v2138 = vsel %vm347, %v2136, %v2127
    %v2139 = vld [vmem:[%s1867] sm:$0x1]
    %v2140 = vcombine.low %v1901, %v1901
    %v2142 = vunpack.c.l.s4 1966171168
    %v2143 = vunpack.c.0.s8 %v2142
    %v2144 = vlaneseq
    %v2145 = vshrl.u32 %v2144, 7
    %v2146 = vsub.s32 %v2143, %v2145
    %v2147 = vrot.slane %v2140, %v2146
    %v2149 = vunpack.c.l.s4 1966171168
    %v2150 = vunpack.c.0.s8 %v2149
    %v2151 = vlaneseq
    %v2152 = vshrl.u32 %v2151, 7
    %v2153 = vsub.s32 %v2150, %v2152
    %v2154 = vrot.slane %v2147, %v2153
    %v2155 = vcombine.low %v1952, %v1952
    %v2157 = vunpack.c.l.s4 1966171168
    %v2158 = vunpack.c.0.s8 %v2157
    %v2159 = vlaneseq
    %v2160 = vshrl.u32 %v2159, 7
    %v2161 = vsub.s32 %v2158, %v2160
    %v2162 = vrot.slane %v2155, %v2161
    %v2163 = vcombine.low %v1903, %v1903
    %v2165 = vunpack.c.l.s4 1966171168
    %v2166 = vunpack.c.0.s8 %v2165
    %v2167 = vlaneseq
    %v2168 = vshrl.u32 %v2167, 7
    %v2169 = vsub.s32 %v2166, %v2168
    %v2170 = vrot.slane %v2163, %v2169
    %v2171 = vcombine.low %v2170, %v2170
    %v2173 = vunpack.c.l.s4 1966171168
    %v2174 = vunpack.c.0.s8 %v2173
    %v2175 = vlaneseq
    %v2176 = vshrl.u32 %v2175, 7
    %v2177 = vsub.s32 %v2174, %v2176
    %v2178 = vrot.slane %v2171, %v2177
    %v2179 = vcombine.low %v2006, %v2006
    %v2181 = vcombine.low %v2139, %v2139
    %v2183 = vunpack.c.l.s4 1966171168
    %v2184 = vunpack.c.0.s8 %v2183
    %v2185 = vlaneseq
    %v2186 = vshrl.u32 %v2185, 7
    %v2187 = vsub.s32 %v2184, %v2186
    %v2188 = vrot.slane %v2181, %v2187
    %v2190 = vunpack.c.l.s4 1966171168
    %v2191 = vunpack.c.0.s8 %v2190
    %v2192 = vlaneseq
    %v2193 = vshrl.u32 %v2192, 7
    %v2194 = vsub.s32 %v2191, %v2193
    %v2195 = vrot.slane %v2188, %v2194
    %v2196 = vcombine.low %v2195, %v2195
    %v2199 = vsel %vm334, %v1900, %v2154
    %v2201 = vsel %vm338, %v2199, %v2162
    %v2203 = vsel %vm341, %v2201, %v2178
    %v2205 = vsel %vm344, %v2203, %v2179
    %v2207 = vsel %vm347, %v2205, %v2196
    %v2208 = vld [vmem:[%s1893] sm:$0x1]
    %v2209 = vcombine.low %v2021, %v2021
    %v2211 = vunpack.c.l.s4 1966171168
    %v2212 = vunpack.c.0.s8 %v2211
    %v2213 = vlaneseq
    %v2214 = vshrl.u32 %v2213, 7
    %v2215 = vsub.s32 %v2212, %v2214
    %v2216 = vrot.slane %v2209, %v2215
    %v2218 = vunpack.c.l.s4 1966171168
    %v2219 = vunpack.c.0.s8 %v2218
    %v2220 = vlaneseq
    %v2221 = vshrl.u32 %v2220, 7
    %v2222 = vsub.s32 %v2219, %v2221
    %v2223 = vrot.slane %v2216, %v2222
    %v2224 = vcombine.low %v2072, %v2072
    %v2226 = vunpack.c.l.s4 1966171168
    %v2227 = vunpack.c.0.s8 %v2226
    %v2228 = vlaneseq
    %v2229 = vshrl.u32 %v2228, 7
    %v2230 = vsub.s32 %v2227, %v2229
    %v2231 = vrot.slane %v2224, %v2230
    %v2232 = vcombine.low %v2023, %v2023
    %v2234 = vunpack.c.l.s4 1966171168
    %v2235 = vunpack.c.0.s8 %v2234
    %v2236 = vlaneseq
    %v2237 = vshrl.u32 %v2236, 7
    %v2238 = vsub.s32 %v2235, %v2237
    %v2239 = vrot.slane %v2232, %v2238
    %v2240 = vcombine.low %v2239, %v2239
    %v2242 = vunpack.c.l.s4 1966171168
    %v2243 = vunpack.c.0.s8 %v2242
    %v2244 = vlaneseq
    %v2245 = vshrl.u32 %v2244, 7
    %v2246 = vsub.s32 %v2243, %v2245
    %v2247 = vrot.slane %v2240, %v2246
    %v2248 = vcombine.low %v2126, %v2126
    %v2250 = vcombine.low %v2208, %v2208
    %v2252 = vunpack.c.l.s4 1966171168
    %v2253 = vunpack.c.0.s8 %v2252
    %v2254 = vlaneseq
    %v2255 = vshrl.u32 %v2254, 7
    %v2256 = vsub.s32 %v2253, %v2255
    %v2257 = vrot.slane %v2250, %v2256
    %v2259 = vunpack.c.l.s4 1966171168
    %v2260 = vunpack.c.0.s8 %v2259
    %v2261 = vlaneseq
    %v2262 = vshrl.u32 %v2261, 7
    %v2263 = vsub.s32 %v2260, %v2262
    %v2264 = vrot.slane %v2257, %v2263
    %v2265 = vcombine.low %v2264, %v2264
    %v2268 = vsel %vm334, %v2020, %v2223
    %v2270 = vsel %vm338, %v2268, %v2231
    %v2272 = vsel %vm341, %v2270, %v2247
    %v2274 = vsel %vm344, %v2272, %v2248
    %v2276 = vsel %vm347, %v2274, %v2265
    %2278 = vrot.lane.b32.xlu0 %v2138, 120
    %v2279 = vpop.permute.xlu0 %2278
    %2281 = vrot.lane.b32.xlu0 %v2207, 112
    %v2282 = vpop.permute.xlu0 %2281
    %2284 = vrot.lane.b32.xlu0 %v2276, 104
    %v2285 = vpop.permute.xlu0 %2284
    %v2287 = vsel %vm1435, %v2018, %v2279
    %v2290 = vsel %vm1664, %v2279, %v2282
    %v2293 = vsel %vm1662, %v2282, %v2285
    %v2295 = vld [vmem:[%s5] sm:$0xf]
    %v2296 = vld [vmem:[%s5 + $0x4] sm:$0xf]
    %v2297 = vld [vmem:[%s5 + $0x8] sm:$0xf]
    %v2298 = vld [vmem:[%s5 + $0xc] sm:$0xf]
    %v2299 = vld [vmem:[%s5 + $0x10] sm:$0xf]
    %v2300 = vld [vmem:[%s5 + $0x14] sm:$0xf]
    %v2301 = vld [vmem:[%s5 + $0x18] sm:$0xf]
    %v2302 = vld [vmem:[%s5 + $0x1c] sm:$0xf]
    %v2303 = vld [vmem:[%s5 + $0x20] sm:$0xf]
    %v2304 = vld [vmem:[%s5 + $0x24] sm:$0xf]
    %v2305 = vld [vmem:[%s5 + $0x28] sm:$0xf]
    %v2306 = vld [vmem:[%s5 + $0x2c] sm:$0xf]
    %v2307 = vld [vmem:[%s5 + $0x30] sm:$0xf]
    %v2308 = vld [vmem:[%s5 + $0x34] sm:$0xf]
    %v2309 = vld [vmem:[%s5 + $0x38] sm:$0xf]
    %v2310 = vld [vmem:[%s5 + $0x3c] sm:$0xf]
    %v2311 = vld [vmem:[%s5 + $0x40] sm:$0xf]
    %v2312 = vld [vmem:[%s5 + $0x44] sm:$0xf]
    %v2313 = vld [vmem:[%s5 + $0x48] sm:$0xf]
    %v2314 = vld [vmem:[%s5 + $0x4c] sm:$0xf]
    %v2315 = vld [vmem:[%s5 + $0x50] sm:$0xf]
    %v2316 = vld [vmem:[%s5 + $0x54] sm:$0xf]
    %v2317 = vld [vmem:[%s5 + $0x58] sm:$0xf]
    %v2318 = vld [vmem:[%s5 + $0x5c] sm:$0xf]
    %v2319 = vld [vmem:[%s5 + $0x60] sm:$0xf]
    %v2320 = vld [vmem:[%s5 + $0x64] sm:$0xf]
    %v2321 = vld [vmem:[%s5 + $0x68] sm:$0xf]
    %v2322 = vld [vmem:[%s5 + $0x6c] sm:$0xf]
    %v2323 = vld [vmem:[%s5 + $0x70] sm:$0xf]
    %v2324 = vld [vmem:[%s5 + $0x74] sm:$0xf]
    %v2325 = vld [vmem:[%s5 + $0x78] sm:$0xf]
    %v2326 = vld [vmem:[%s5 + $0x7c] sm:$0xf]
    %v2327 = vld [vmem:[%s5 + $0x80] sm:$0xf]
    %v2328 = vld [vmem:[%s5 + $0x84] sm:$0xf]
    %v2329 = vld [vmem:[%s5 + $0x88] sm:$0xf]
    %v2330 = vld [vmem:[%s5 + $0x8c] sm:$0xf]
    %v2331 = vld [vmem:[%s5 + $0x90] sm:$0xf]
    %v2332 = vld [vmem:[%s5 + $0x94] sm:$0xf]
    %v2333 = vld [vmem:[%s5 + $0x98] sm:$0xf]
    %v2334 = vld [vmem:[%s5 + $0x9c] sm:$0xf]
    %v2335 = vld [vmem:[%s5 + $0xa0] sm:$0xf]
    %v2336 = vld [vmem:[%s5 + $0xa4] sm:$0xf]
    %v2337 = vld [vmem:[%s5 + $0xa8] sm:$0xf]
    %v2338 = vld [vmem:[%s5 + $0xac] sm:$0xf]
    %v2339 = vld [vmem:[%s5 + $0xb0] sm:$0xf]
    %v2340 = vld [vmem:[%s5 + $0xb4] sm:$0xf]
    %v2341 = vld [vmem:[%s5 + $0xb8] sm:$0xf]
    %v2342 = vld [vmem:[%s5 + $0xbc] sm:$0xf]
    %v2343 = vld [vmem:[%s5 + $0xc0] sm:$0xf]
    %v2344 = vld [vmem:[%s5 + $0xc4] sm:$0xf]
    %v2345 = vld [vmem:[%s5 + $0xc8] sm:$0xf]
    %v2346 = vld [vmem:[%s5 + $0xcc] sm:$0xf]
    %v2347 = vld [vmem:[%s5 + $0xd0] sm:$0xf]
    %v2348 = vld [vmem:[%s5 + $0xd4] sm:$0xf]
    %v2349 = vld [vmem:[%s5 + $0xd8] sm:$0xf]
    %v2350 = vld [vmem:[%s5 + $0xdc] sm:$0xf]
    %v2351 = vld [vmem:[%s5 + $0xe0] sm:$0xf]
    %v2352 = vld [vmem:[%s5 + $0xe4] sm:$0xf]
    %v2353 = vld [vmem:[%s5 + $0xe8] sm:$0xf]
    %v2354 = vld [vmem:[%s5 + $0xec] sm:$0xf]
    %v2355 = vld [vmem:[%s6] sm:$0x1]
    %v2356 = vld [vmem:[%s7] sm:$0x1]
    %v2357 = vld [vmem:[%s8] sm:$0x1]
    %v2359 = vlaneseq
    %v2360 = vshrl.u32 %v2359, 7
    %v2361 = vsub.s32 0, %v2360
    %v2362 = vrot.slane %v2355, %v2361
    %v2424 = vunpack.c.l.b16 %v2295
    %v2425 = vunpack.c.l.b16 %v2296
    %v2426 = vunpack.c.l.b16 %v2297
    %v2427 = vunpack.c.l.b16 %v2298
    %v2428 = vunpack.c.l.b16 %v2299
    %v2429 = vunpack.c.l.b16 %v2300
    %v2430 = vunpack.c.l.b16 %v2301
    %v2431 = vunpack.c.l.b16 %v2302
    %v2432 = vunpack.c.l.b16 %v2303
    %v2433 = vunpack.c.l.b16 %v2304
    %v2434 = vunpack.c.l.b16 %v2305
    %v2435 = vunpack.c.l.b16 %v2306
    %v2436 = vunpack.c.l.b16 %v2307
    %v2437 = vunpack.c.l.b16 %v2308
    %v2438 = vunpack.c.l.b16 %v2309
    %v2439 = vunpack.c.l.b16 %v2310
    %v2440 = vunpack.c.l.b16 %v2311
    %v2441 = vunpack.c.l.b16 %v2312
    %v2442 = vunpack.c.l.b16 %v2313
    %v2443 = vunpack.c.l.b16 %v2314
    %v2444 = vunpack.c.l.b16 %v2315
    %v2445 = vunpack.c.l.b16 %v2316
    %v2446 = vunpack.c.l.b16 %v2317
    %v2447 = vunpack.c.l.b16 %v2318
    %v2448 = vunpack.c.l.b16 %v2319
    %v2449 = vunpack.c.l.b16 %v2320
    %v2450 = vunpack.c.l.b16 %v2321
    %v2451 = vunpack.c.l.b16 %v2322
    %v2452 = vunpack.c.l.b16 %v2323
    %v2453 = vunpack.c.l.b16 %v2324
    %v2454 = vunpack.c.l.b16 %v2325
    %v2455 = vunpack.c.l.b16 %v2326
    %v2456 = vunpack.c.l.b16 %v2327
    %v2457 = vunpack.c.l.b16 %v2328
    %v2458 = vunpack.c.l.b16 %v2329
    %v2459 = vunpack.c.l.b16 %v2330
    %v2460 = vunpack.c.l.b16 %v2331
    %v2461 = vunpack.c.l.b16 %v2332
    %v2462 = vunpack.c.l.b16 %v2333
    %v2463 = vunpack.c.l.b16 %v2334
    %v2464 = vunpack.c.l.b16 %v2335
    %v2465 = vunpack.c.l.b16 %v2336
    %v2466 = vunpack.c.l.b16 %v2337
    %v2467 = vunpack.c.l.b16 %v2338
    %v2468 = vunpack.c.l.b16 %v2339
    %v2469 = vunpack.c.l.b16 %v2340
    %v2470 = vunpack.c.l.b16 %v2341
    %v2471 = vunpack.c.l.b16 %v2342
    %v2472 = vunpack.c.l.b16 %v2343
    %v2473 = vunpack.c.l.b16 %v2344
    %v2474 = vunpack.c.l.b16 %v2345
    %v2475 = vunpack.c.l.b16 %v2346
    %v2476 = vunpack.c.l.b16 %v2347
    %v2477 = vunpack.c.l.b16 %v2348
    %v2478 = vunpack.c.l.b16 %v2349
    %v2479 = vunpack.c.l.b16 %v2350
    %v2480 = vunpack.c.l.b16 %v2351
    %v2481 = vunpack.c.l.b16 %v2352
    %v2482 = vunpack.c.l.b16 %v2353
    %v2483 = vunpack.c.l.b16 %v2354
    %v2484 = vpack.c.b16 %v2425, %v2424
    %v2485 = vpack.c.b16 %v2427, %v2426
    %v2486 = vpack.c.b16 %v2429, %v2428
    %v2487 = vpack.c.b16 %v2431, %v2430
    %v2488 = vpack.c.b16 %v2433, %v2432
    %v2489 = vpack.c.b16 %v2435, %v2434
    %v2490 = vpack.c.b16 %v2437, %v2436
    %v2491 = vpack.c.b16 %v2439, %v2438
    %v2492 = vpack.c.b16 %v2441, %v2440
    %v2493 = vpack.c.b16 %v2443, %v2442
    %v2494 = vpack.c.b16 %v2445, %v2444
    %v2495 = vpack.c.b16 %v2447, %v2446
    %v2496 = vpack.c.b16 %v2449, %v2448
    %v2497 = vpack.c.b16 %v2451, %v2450
    %v2498 = vpack.c.b16 %v2453, %v2452
    %v2499 = vpack.c.b16 %v2455, %v2454
    %v2500 = vpack.c.b16 %v2457, %v2456
    %v2501 = vpack.c.b16 %v2459, %v2458
    %v2502 = vpack.c.b16 %v2461, %v2460
    %v2503 = vpack.c.b16 %v2463, %v2462
    %v2504 = vpack.c.b16 %v2465, %v2464
    %v2505 = vpack.c.b16 %v2467, %v2466
    %v2506 = vpack.c.b16 %v2469, %v2468
    %v2507 = vpack.c.b16 %v2471, %v2470
    %v2508 = vpack.c.b16 %v2473, %v2472
    %v2509 = vpack.c.b16 %v2475, %v2474
    %v2510 = vpack.c.b16 %v2477, %v2476
    %v2511 = vpack.c.b16 %v2479, %v2478
    %v2512 = vpack.c.b16 %v2481, %v2480
    %v2513 = vpack.c.b16 %v2483, %v2482
    %v2544 = vsel %vm1660, %v2285, 0
    %2546 = vmatprep.subr.bf16.mxu0 0
    %2547 = vmatpush1.bf16.msra.mxu0 %v2484
    %2548 = vmatprep.subr.bf16.mxu0 0
    %2549 = vmatpush1.bf16.msra.mxu0 %v2485
    %2550 = vmatprep.subr.bf16.mxu0 0
    %2551 = vmatpush1.bf16.msra.mxu0 %v2486
    %2552 = vmatprep.subr.bf16.mxu0 0
    %2553 = vmatpush1.bf16.msra.mxu0 %v2487
    %2554 = vmatprep.subr.bf16.mxu0 0
    %2555 = vmatpush1.bf16.msra.mxu0 %v2488
    %2556 = vmatprep.subr.bf16.mxu0 0
    %2557 = vmatpush1.bf16.msra.mxu0 %v2489
    %2558 = vmatprep.subr.bf16.mxu0 0
    %2559 = vmatpush1.bf16.msra.mxu0 %v2490
    %2560 = vmatprep.subr.bf16.mxu0 0
    %2561 = vmatpush1.bf16.msra.mxu0 %v2491
    %2562 = vmatprep.subr.bf16.mxu0 0
    %2563 = vmatpush1.bf16.msra.mxu0 %v2492
    %2564 = vmatprep.subr.bf16.mxu0 0
    %2565 = vmatpush1.bf16.msra.mxu0 %v2493
    %2566 = vmatprep.subr.bf16.mxu0 0
    %2567 = vmatpush1.bf16.msra.mxu0 %v2494
    %2568 = vmatprep.subr.bf16.mxu0 0
    %2569 = vmatpush1.bf16.msra.mxu0 %v2495
    %2570 = vmatprep.subr.bf16.mxu0 0
    %2571 = vmatpush1.bf16.msra.mxu0 %v2496
    %2572 = vmatprep.subr.bf16.mxu0 0
    %2573 = vmatpush1.bf16.msra.mxu0 %v2497
    %2574 = vmatprep.subr.bf16.mxu0 0
    %2575 = vmatpush1.bf16.msra.mxu0 %v2498
    %2576 = vmatprep.subr.bf16.mxu0 0
    %2577 = vmatpush1.bf16.msra.mxu0 %v2499
    %2578 = vmatprep.mubr.bf16.mxu0 %v2290
    %2579 = vmatmul.mubr.bf16.gmra.mrb[0].mxu0 %v2287
    %v2580 = vpop.f32.mrb[0].mxu0
    %v2581 = vadd.f32 %v2362, %v2580
    %v2582 = vpop.f32.mrb[0].mxu0
    %v2583 = vpop.f32.mrb[0].mxu0
    %v2584 = vadd.f32 %v2362, %v2583
    %v2585 = vpop.f32.mrb[0].mxu0
    %2586 = vdwg.mxu0
    %2587 = vmatprep.subr.bf16.mxu0 0
    %2588 = vmatpush1.bf16.msra.mxu0 %v2500
    %2589 = vmatprep.subr.bf16.mxu0 0
    %2590 = vmatpush1.bf16.msra.mxu0 %v2501
    %2591 = vmatprep.subr.bf16.mxu0 0
    %2592 = vmatpush1.bf16.msra.mxu0 %v2502
    %2593 = vmatprep.subr.bf16.mxu0 0
    %2594 = vmatpush1.bf16.msra.mxu0 %v2503
    %2595 = vmatprep.subr.bf16.mxu0 0
    %2596 = vmatpush1.bf16.msra.mxu0 %v2504
    %2597 = vmatprep.subr.bf16.mxu0 0
    %2598 = vmatpush1.bf16.msra.mxu0 %v2505
    %2599 = vmatprep.subr.bf16.mxu0 0
    %2600 = vmatpush1.bf16.msra.mxu0 %v2506
    %2601 = vmatprep.subr.bf16.mxu0 0
    %2602 = vmatpush1.bf16.msra.mxu0 %v2507
    %2603 = vmatprep.subr.bf16.mxu0 0
    %2604 = vmatpush1.bf16.msra.mxu0 %v2508
    %2605 = vmatprep.subr.bf16.mxu0 0
    %2606 = vmatpush1.bf16.msra.mxu0 %v2509
    %2607 = vmatprep.subr.bf16.mxu0 0
    %2608 = vmatpush1.bf16.msra.mxu0 %v2510
    %2609 = vmatprep.subr.bf16.mxu0 0
    %2610 = vmatpush1.bf16.msra.mxu0 %v2511
    %2611 = vmatprep.subr.bf16.mxu0 0
    %2612 = vmatpush1.bf16.msra.mxu0 %v2512
    %2613 = vmatprep.subr.bf16.mxu0 0
    %2614 = vmatpush1.bf16.msra.mxu0 %v2513
    %2615 = vmatprep.subr.bf16.mxu0 0
    %2616 = vmatpush1.bf16.msra.mxu0 0
    %2617 = vmatprep.subr.bf16.mxu0 0
    %2618 = vmatpush1.bf16.msra.mxu0 0
    %2619 = vmatprep.mubr.bf16.mxu0 %v2544
    %2620 = vmatmul.mubr.bf16.gmra.mrb[0].mxu0 %v2293
    %v2621 = vpop.f32.mrb[0].mxu0
    %v2622 = vadd.f32 %v2581, %v2621
    %v2623 = vpop.f32.mrb[0].mxu0
    %v2624 = vpop.f32.mrb[0].mxu0
    %v2625 = vadd.f32 %v2584, %v2624
    %v2626 = vpop.f32.mrb[0].mxu0
    %2627 = vdwg.mxu0
    %v2628 = vsel %vm1660, %v2622, 0.0
    %vm2629 = vcmask 781312
    %v2630 = vsel %vm2629, %v2625, 0.0
    %v2631 = vadd.f32 %v2628, %v2630
    %v2632 = vrot.slane %v2631, 4
    %v2633 = vadd.f32 %v2631, %v2632
    %v2634 = vrot.slane %v2633, 2
    %v2635 = vadd.f32 %v2633, %v2634
    %v2636 = vrot.slane %v2635, 1
    %v2637 = vadd.f32 %v2635, %v2636
    %v2638 = vmul.f32 %v2622, %v2622
    %v2639 = vmul.f32 %v2625, %v2625
    %v2640 = vsel %vm1660, %v2638, 0.0
    %v2641 = vsel %vm2629, %v2639, 0.0
    %v2642 = vadd.f32 %v2640, %v2641
    %v2643 = vrot.slane %v2642, 4
    %v2644 = vadd.f32 %v2642, %v2643
    %v2645 = vrot.slane %v2644, 2
    %v2646 = vadd.f32 %v2644, %v2645
    %v2647 = vrot.slane %v2646, 1
    %v2648 = vadd.f32 %v2646, %v2647
    %2650 = vrot.lane.b32.xlu0 %v2637, 112
    %v2651 = vpop.permute.xlu0 %2650
    %v2653 = vadd.f32 %v2637, %v2651
    %2655 = vrot.lane.b32.xlu0 %v2648, 112
    %v2656 = vpop.permute.xlu0 %2655
    %v2658 = vadd.f32 %v2648, %v2656
    %2659 = vrot.lane.b32.xlu0 %v2637, 96
    %v2660 = vpop.permute.xlu0 %2659
    %v2662 = vadd.f32 %v2653, %v2660
    %2663 = vrot.lane.b32.xlu0 %v2648, 96
    %v2664 = vpop.permute.xlu0 %2663
    %v2666 = vadd.f32 %v2658, %v2664
    %2667 = vrot.lane.b32.xlu0 %v2637, 80
    %v2668 = vpop.permute.xlu0 %2667
    %v2670 = vadd.f32 %v2662, %v2668
    %2671 = vrot.lane.b32.xlu0 %v2648, 80
    %v2672 = vpop.permute.xlu0 %2671
    %v2674 = vadd.f32 %v2666, %v2672
    %2675 = vrot.lane.b32.xlu0 %v2637, 64
    %v2676 = vpop.permute.xlu0 %2675
    %v2678 = vadd.f32 %v2670, %v2676
    %2679 = vrot.lane.b32.xlu0 %v2648, 64
    %v2680 = vpop.permute.xlu0 %2679
    %v2682 = vadd.f32 %v2674, %v2680
    %2683 = vrot.lane.b32.xlu0 %v2637, 48
    %v2684 = vpop.permute.xlu0 %2683
    %v2686 = vadd.f32 %v2678, %v2684
    %2687 = vrot.lane.b32.xlu0 %v2648, 48
    %v2688 = vpop.permute.xlu0 %2687
    %v2690 = vadd.f32 %v2682, %v2688
    %v2691 = vrcp.pop 72.0
    %v2692 = vmul.f32 %v2686, %v2691
    %v2693 = vmul.f32 %v2690, %v2691
    %v2694 = vmul.f32 %v2692, %v2692
    %v2695 = vsub.f32 %v2693, %v2694
    %v2696 = vadd.f32 %v2695, 1e-05
    %v2697 = vrsqrt.pop %v2696
    %v2698 = vmul.f32 %v2356, %v2697
    %v2699 = vmul.f32 %v2692, %v2698
    %v2700 = vsub.f32 %v2357, %v2699
    %v2702 = vlaneseq
    %v2703 = vshrl.u32 %v2702, 7
    %v2704 = vsub.s32 0, %v2703
    %v2705 = vrot.slane %v2698, %v2704
    %2706 = vrot.lane.b32.xlu0 %v2705, 16
    %v2707 = vpop.permute.xlu0 %2706
    %2709 = vrot.lane.b32.xlu0 %v2705, 32
    %v2710 = vpop.permute.xlu0 %2709
    %2712 = vrot.lane.b32.xlu0 %v2705, 48
    %v2713 = vpop.permute.xlu0 %2712
    %2715 = vrot.lane.b32.xlu0 %v2705, 64
    %v2716 = vpop.permute.xlu0 %2715
    %2718 = vrot.lane.b32.xlu0 %v2705, 80
    %v2719 = vpop.permute.xlu0 %2718
    %v2721 = vsel %vm1640, %v2698, %v2707
    %v2722 = vsel %vm1644, %v2721, %v2710
    %v2723 = vsel %vm1648, %v2722, %v2713
    %v2724 = vsel %vm1652, %v2723, %v2716
    %v2725 = vsel %vm1656, %v2724, %v2719
    %v2727 = vlaneseq
    %v2728 = vshrl.u32 %v2727, 7
    %v2729 = vsub.s32 0, %v2728
    %v2730 = vrot.slane %v2700, %v2729
    %2731 = vrot.lane.b32.xlu0 %v2730, 16
    %v2732 = vpop.permute.xlu0 %2731
    %2734 = vrot.lane.b32.xlu0 %v2730, 32
    %v2735 = vpop.permute.xlu0 %2734
    %2737 = vrot.lane.b32.xlu0 %v2730, 48
    %v2738 = vpop.permute.xlu0 %2737
    %2740 = vrot.lane.b32.xlu0 %v2730, 64
    %v2741 = vpop.permute.xlu0 %2740
    %2743 = vrot.lane.b32.xlu0 %v2730, 80
    %v2744 = vpop.permute.xlu0 %2743
    %v2746 = vsel %vm1640, %v2700, %v2732
    %v2747 = vsel %vm1644, %v2746, %v2735
    %v2748 = vsel %vm1648, %v2747, %v2738
    %v2749 = vsel %vm1652, %v2748, %v2741
    %v2750 = vsel %vm1656, %v2749, %v2744
    %v2751 = vlaneseq
    %v2752 = vshrl.u32 %v2751, 7
    %v2753 = vsub.s32 0, %v2752
    %v2754 = vrot.slane %v2725, %v2753
    %v2755 = vmul.f32 %v2622, %v2754
    %v2756 = vmul.f32 %v2625, %v2754
    %v2757 = vlaneseq
    %v2758 = vshrl.u32 %v2757, 7
    %v2759 = vsub.s32 0, %v2758
    %v2760 = vrot.slane %v2750, %v2759
    %v2761 = vadd.f32 %v2755, %v2760
    %v2762 = vadd.f32 %v2756, %v2760
    %vm2763 = vcmp.ge.f32.partialorder %v2761, 0.0
    %vm2764 = vcmp.ge.f32.partialorder %v2762, 0.0
    %v2765 = vmul.f32 %v2761, 0.2
    %v2766 = vmul.f32 %v2762, 0.2
    %v2767 = vsel %vm2763, %v2761, %v2765
    %v2768 = vsel %vm2764, %v2762, %v2766
    %v2769 = vpack.c.bf16 %v2767, %v2767
    %vm2770 = vcmask 778240
    %2771 = vst.msk [vmem:[#allocation3] sm:$0x1] %vm2770, %v2769
    %v2774 = vunpack.c.l.s4 1966171168
    %v2775 = vunpack.c.0.s8 %v2774
    %v2776 = vlaneseq
    %v2777 = vshrl.u32 %v2776, 7
    %v2778 = vsub.s32 %v2775, %v2777
    %v2779 = vrot.slane %v2769, %v2778
    %v2780 = vcombine.high %v2779, %v2779
    %v2782 = vunpack.c.l.s4 1966171168
    %v2783 = vunpack.c.0.s8 %v2782
    %v2784 = vlaneseq
    %v2785 = vshrl.u32 %v2784, 7
    %v2786 = vsub.s32 %v2783, %v2785
    %v2787 = vrot.slane %v2779, %v2786
    %v2789 = vunpack.c.l.s4 1966171168
    %v2790 = vunpack.c.0.s8 %v2789
    %v2791 = vlaneseq
    %v2792 = vshrl.u32 %v2791, 7
    %v2793 = vsub.s32 %v2790, %v2792
    %v2794 = vrot.slane %v2780, %v2793
    %s2796 = scalar_lea.vmem [#allocation3], 1
    %2797 = vst.msk [vmem:[%s2796] sm:$0x1] %vm2770, %v2794
    %v2798 = vcombine.high %v2787, %v2787
    %s2800 = scalar_lea.vmem [#allocation3], 2
    %2801 = vst.msk [vmem:[%s2800] sm:$0x1] %vm2770, %v2798
    %v2802 = vcombine.high %v2794, %v2794
    %s2804 = scalar_lea.vmem [#allocation3], 3
    %2805 = vst.msk [vmem:[%s2804] sm:$0x1] %vm2770, %v2802
    %v2806 = vpack.c.bf16 %v2768, %v2768
    %s2807 = scalar_lea.vmem [#allocation3], 4
    %2808 = vst.msk [vmem:[%s2807] sm:$0x1] %vm2770, %v2806
    %v2811 = vunpack.c.l.s4 1966171168
    %v2812 = vunpack.c.0.s8 %v2811
    %v2813 = vlaneseq
    %v2814 = vshrl.u32 %v2813, 7
    %v2815 = vsub.s32 %v2812, %v2814
    %v2816 = vrot.slane %v2806, %v2815
    %v2817 = vcombine.high %v2816, %v2816
    %v2819 = vunpack.c.l.s4 1966171168
    %v2820 = vunpack.c.0.s8 %v2819
    %v2821 = vlaneseq
    %v2822 = vshrl.u32 %v2821, 7
    %v2823 = vsub.s32 %v2820, %v2822
    %v2824 = vrot.slane %v2817, %v2823
    %s2826 = scalar_lea.vmem [#allocation3], 5
    %2827 = vst.msk [vmem:[%s2826] sm:$0x1] %vm2770, %v2824
    %v2828 = vld [vmem:[#allocation3] sm:$0x1]
    %v2829 = vld [vmem:[%s2800] sm:$0x1]
    %v2831 = vcombine.low %v2829, %v2829
    %v2833 = vunpack.c.l.s4 1966171168
    %v2834 = vunpack.c.0.s8 %v2833
    %v2835 = vlaneseq
    %v2836 = vshrl.u32 %v2835, 7
    %v2837 = vsub.s32 %v2834, %v2836
    %v2838 = vrot.slane %v2831, %v2837
    %v2840 = vunpack.c.l.s4 1966171168
    %v2841 = vunpack.c.0.s8 %v2840
    %v2842 = vlaneseq
    %v2843 = vshrl.u32 %v2842, 7
    %v2844 = vsub.s32 %v2841, %v2843
    %v2845 = vrot.slane %v2838, %v2844
    %v2848 = vsel %vm334, %v2828, %v2845
    %v2849 = vld [vmem:[%s2796] sm:$0x1]
    %v2850 = vld [vmem:[%s2804] sm:$0x1]
    %v2852 = vcombine.low %v2850, %v2850
    %v2854 = vunpack.c.l.s4 1966171168
    %v2855 = vunpack.c.0.s8 %v2854
    %v2856 = vlaneseq
    %v2857 = vshrl.u32 %v2856, 7
    %v2858 = vsub.s32 %v2855, %v2857
    %v2859 = vrot.slane %v2852, %v2858
    %v2861 = vunpack.c.l.s4 1966171168
    %v2862 = vunpack.c.0.s8 %v2861
    %v2863 = vlaneseq
    %v2864 = vshrl.u32 %v2863, 7
    %v2865 = vsub.s32 %v2862, %v2864
    %v2866 = vrot.slane %v2859, %v2865
    %v2869 = vsel %vm334, %v2849, %v2866
    %v2870 = vld [vmem:[%s2807] sm:$0x1]
    %v2872 = vcombine.low %v2870, %v2870
    %v2874 = vunpack.c.l.s4 1966171168
    %v2875 = vunpack.c.0.s8 %v2874
    %v2876 = vlaneseq
    %v2877 = vshrl.u32 %v2876, 7
    %v2878 = vsub.s32 %v2875, %v2877
    %v2879 = vrot.slane %v2872, %v2878
    %v2881 = vunpack.c.l.s4 1966171168
    %v2882 = vunpack.c.0.s8 %v2881
    %v2883 = vlaneseq
    %v2884 = vshrl.u32 %v2883, 7
    %v2885 = vsub.s32 %v2882, %v2884
    %v2886 = vrot.slane %v2879, %v2885
    %v2889 = vsel %vm334, %v2829, %v2886
    %v2890 = vld [vmem:[%s2826] sm:$0x1]
    %v2892 = vcombine.low %v2890, %v2890
    %v2894 = vunpack.c.l.s4 1966171168
    %v2895 = vunpack.c.0.s8 %v2894
    %v2896 = vlaneseq
    %v2897 = vshrl.u32 %v2896, 7
    %v2898 = vsub.s32 %v2895, %v2897
    %v2899 = vrot.slane %v2892, %v2898
    %v2901 = vunpack.c.l.s4 1966171168
    %v2902 = vunpack.c.0.s8 %v2901
    %v2903 = vlaneseq
    %v2904 = vshrl.u32 %v2903, 7
    %v2905 = vsub.s32 %v2902, %v2904
    %v2906 = vrot.slane %v2899, %v2905
    %v2909 = vsel %vm334, %v2850, %v2906
    %2911 = vrot.lane.b32.xlu0 %v2869, 96
    %v2912 = vpop.permute.xlu0 %2911
    %2914 = vrot.lane.b32.xlu0 %v2889, 64
    %v2915 = vpop.permute.xlu0 %2914
    %2917 = vrot.lane.b32.xlu0 %v2909, 32
    %v2918 = vpop.permute.xlu0 %2917
    %v2920 = vsel %vm1660, %v2848, %v2912
    %v2923 = vsel %vm1652, %v2912, %v2915
    %v2926 = vsel %vm1644, %v2915, %v2918
    %v2928 = vld [vmem:[%s9] sm:$0xf]
    %v2929 = vld [vmem:[%s9 + $0x4] sm:$0xf]
    %v2930 = vld [vmem:[%s9 + $0x8] sm:$0xf]
    %v2931 = vld [vmem:[%s9 + $0xc] sm:$0xf]
    %v2932 = vld [vmem:[%s9 + $0x10] sm:$0xf]
    %v2933 = vld [vmem:[%s9 + $0x14] sm:$0xf]
    %v2934 = vld [vmem:[%s9 + $0x18] sm:$0xf]
    %v2935 = vld [vmem:[%s9 + $0x1c] sm:$0xf]
    %v2936 = vld [vmem:[%s9 + $0x20] sm:$0xf]
    %v2937 = vld [vmem:[%s9 + $0x24] sm:$0xf]
    %v2938 = vld [vmem:[%s9 + $0x28] sm:$0xf]
    %v2939 = vld [vmem:[%s9 + $0x2c] sm:$0xf]
    %v2940 = vld [vmem:[%s9 + $0x30] sm:$0xf]
    %v2941 = vld [vmem:[%s9 + $0x34] sm:$0xf]
    %v2942 = vld [vmem:[%s9 + $0x38] sm:$0xf]
    %v2943 = vld [vmem:[%s9 + $0x3c] sm:$0xf]
    %v2944 = vld [vmem:[%s9 + $0x40] sm:$0xf]
    %v2945 = vld [vmem:[%s9 + $0x44] sm:$0xf]
    %v2946 = vld [vmem:[%s9 + $0x48] sm:$0xf]
    %v2947 = vld [vmem:[%s9 + $0x4c] sm:$0xf]
    %v2948 = vld [vmem:[%s9 + $0x50] sm:$0xf]
    %v2949 = vld [vmem:[%s9 + $0x54] sm:$0xf]
    %v2950 = vld [vmem:[%s9 + $0x58] sm:$0xf]
    %v2951 = vld [vmem:[%s9 + $0x5c] sm:$0xf]
    %v2952 = vld [vmem:[%s9 + $0x60] sm:$0xf]
    %v2953 = vld [vmem:[%s9 + $0x64] sm:$0xf]
    %v2954 = vld [vmem:[%s9 + $0x68] sm:$0xf]
    %v2955 = vld [vmem:[%s9 + $0x6c] sm:$0xf]
    %v2956 = vld [vmem:[%s9 + $0x70] sm:$0xf]
    %v2957 = vld [vmem:[%s9 + $0x74] sm:$0xf]
    %v2958 = vld [vmem:[%s9 + $0x78] sm:$0xf]
    %v2959 = vld [vmem:[%s9 + $0x7c] sm:$0xf]
    %v2960 = vld [vmem:[%s9 + $0x80] sm:$0xf]
    %v2961 = vld [vmem:[%s9 + $0x84] sm:$0xf]
    %v2962 = vld [vmem:[%s9 + $0x88] sm:$0xf]
    %v2963 = vld [vmem:[%s9 + $0x8c] sm:$0xf]
    %v2964 = vld [vmem:[%s9 + $0x90] sm:$0xf]
    %v2965 = vld [vmem:[%s9 + $0x94] sm:$0xf]
    %v2966 = vld [vmem:[%s9 + $0x98] sm:$0xf]
    %v2967 = vld [vmem:[%s9 + $0x9c] sm:$0xf]
    %v2968 = vld [vmem:[%s9 + $0xa0] sm:$0xf]
    %v2969 = vld [vmem:[%s9 + $0xa4] sm:$0xf]
    %v2970 = vld [vmem:[%s9 + $0xa8] sm:$0xf]
    %v2971 = vld [vmem:[%s9 + $0xac] sm:$0xf]
    %v2972 = vld [vmem:[%s9 + $0xb0] sm:$0xf]
    %v2973 = vld [vmem:[%s9 + $0xb4] sm:$0xf]
    %v2974 = vld [vmem:[%s9 + $0xb8] sm:$0xf]
    %v2975 = vld [vmem:[%s9 + $0xbc] sm:$0xf]
    %v2976 = vld [vmem:[%s10] sm:$0x1]
    %v2978 = vlaneseq
    %v2979 = vshrl.u32 %v2978, 7
    %v2980 = vsub.s32 0, %v2979
    %v2981 = vrot.slane %v2976, %v2980
    %v3031 = vunpack.c.l.b16 %v2928
    %v3032 = vunpack.c.l.b16 %v2929
    %v3033 = vunpack.c.l.b16 %v2930
    %v3034 = vunpack.c.l.b16 %v2931
    %v3035 = vunpack.c.l.b16 %v2932
    %v3036 = vunpack.c.l.b16 %v2933
    %v3037 = vunpack.c.l.b16 %v2934
    %v3038 = vunpack.c.l.b16 %v2935
    %v3039 = vunpack.c.l.b16 %v2936
    %v3040 = vunpack.c.l.b16 %v2937
    %v3041 = vunpack.c.l.b16 %v2938
    %v3042 = vunpack.c.l.b16 %v2939
    %v3043 = vunpack.c.l.b16 %v2940
    %v3044 = vunpack.c.l.b16 %v2941
    %v3045 = vunpack.c.l.b16 %v2942
    %v3046 = vunpack.c.l.b16 %v2943
    %v3047 = vunpack.c.l.b16 %v2944
    %v3048 = vunpack.c.l.b16 %v2945
    %v3049 = vunpack.c.l.b16 %v2946
    %v3050 = vunpack.c.l.b16 %v2947
    %v3051 = vunpack.c.l.b16 %v2948
    %v3052 = vunpack.c.l.b16 %v2949
    %v3053 = vunpack.c.l.b16 %v2950
    %v3054 = vunpack.c.l.b16 %v2951
    %v3055 = vunpack.c.l.b16 %v2952
    %v3056 = vunpack.c.l.b16 %v2953
    %v3057 = vunpack.c.l.b16 %v2954
    %v3058 = vunpack.c.l.b16 %v2955
    %v3059 = vunpack.c.l.b16 %v2956
    %v3060 = vunpack.c.l.b16 %v2957
    %v3061 = vunpack.c.l.b16 %v2958
    %v3062 = vunpack.c.l.b16 %v2959
    %v3063 = vunpack.c.l.b16 %v2960
    %v3064 = vunpack.c.l.b16 %v2961
    %v3065 = vunpack.c.l.b16 %v2962
    %v3066 = vunpack.c.l.b16 %v2963
    %v3067 = vunpack.c.l.b16 %v2964
    %v3068 = vunpack.c.l.b16 %v2965
    %v3069 = vunpack.c.l.b16 %v2966
    %v3070 = vunpack.c.l.b16 %v2967
    %v3071 = vunpack.c.l.b16 %v2968
    %v3072 = vunpack.c.l.b16 %v2969
    %v3073 = vunpack.c.l.b16 %v2970
    %v3074 = vunpack.c.l.b16 %v2971
    %v3075 = vunpack.c.l.b16 %v2972
    %v3076 = vunpack.c.l.b16 %v2973
    %v3077 = vunpack.c.l.b16 %v2974
    %v3078 = vunpack.c.l.b16 %v2975
    %v3079 = vpack.c.b16 %v3032, %v3031
    %v3080 = vpack.c.b16 %v3034, %v3033
    %v3081 = vpack.c.b16 %v3036, %v3035
    %v3082 = vpack.c.b16 %v3038, %v3037
    %v3083 = vpack.c.b16 %v3040, %v3039
    %v3084 = vpack.c.b16 %v3042, %v3041
    %v3085 = vpack.c.b16 %v3044, %v3043
    %v3086 = vpack.c.b16 %v3046, %v3045
    %v3087 = vpack.c.b16 %v3048, %v3047
    %v3088 = vpack.c.b16 %v3050, %v3049
    %v3089 = vpack.c.b16 %v3052, %v3051
    %v3090 = vpack.c.b16 %v3054, %v3053
    %v3091 = vpack.c.b16 %v3056, %v3055
    %v3092 = vpack.c.b16 %v3058, %v3057
    %v3093 = vpack.c.b16 %v3060, %v3059
    %v3094 = vpack.c.b16 %v3062, %v3061
    %v3095 = vpack.c.b16 %v3064, %v3063
    %v3096 = vpack.c.b16 %v3066, %v3065
    %v3097 = vpack.c.b16 %v3068, %v3067
    %v3098 = vpack.c.b16 %v3070, %v3069
    %v3099 = vpack.c.b16 %v3072, %v3071
    %v3100 = vpack.c.b16 %v3074, %v3073
    %v3101 = vpack.c.b16 %v3076, %v3075
    %v3102 = vpack.c.b16 %v3078, %v3077
    %3127 = vmatprep.subr.bf16.mxu0 0
    %3128 = vmatpush1.bf16.msra.mxu0 %v3079
    %3129 = vmatprep.subr.bf16.mxu0 0
    %3130 = vmatpush1.bf16.msra.mxu0 %v3080
    %3131 = vmatprep.subr.bf16.mxu0 0
    %3132 = vmatpush1.bf16.msra.mxu0 %v3081
    %3133 = vmatprep.subr.bf16.mxu0 0
    %3134 = vmatpush1.bf16.msra.mxu0 %v3082
    %3135 = vmatprep.subr.bf16.mxu0 0
    %3136 = vmatpush1.bf16.msra.mxu0 %v3083
    %3137 = vmatprep.subr.bf16.mxu0 0
    %3138 = vmatpush1.bf16.msra.mxu0 %v3084
    %3139 = vmatprep.subr.bf16.mxu0 0
    %3140 = vmatpush1.bf16.msra.mxu0 %v3085
    %3141 = vmatprep.subr.bf16.mxu0 0
    %3142 = vmatpush1.bf16.msra.mxu0 %v3086
    %3143 = vmatprep.subr.bf16.mxu0 0
    %3144 = vmatpush1.bf16.msra.mxu0 %v3087
    %3145 = vmatprep.subr.bf16.mxu0 0
    %3146 = vmatpush1.bf16.msra.mxu0 %v3088
    %3147 = vmatprep.subr.bf16.mxu0 0
    %3148 = vmatpush1.bf16.msra.mxu0 %v3089
    %3149 = vmatprep.subr.bf16.mxu0 0
    %3150 = vmatpush1.bf16.msra.mxu0 %v3090
    %3151 = vmatprep.subr.bf16.mxu0 0
    %3152 = vmatpush1.bf16.msra.mxu0 %v3091
    %3153 = vmatprep.subr.bf16.mxu0 0
    %3154 = vmatpush1.bf16.msra.mxu0 %v3092
    %3155 = vmatprep.subr.bf16.mxu0 0
    %3156 = vmatpush1.bf16.msra.mxu0 %v3093
    %3157 = vmatprep.subr.bf16.mxu0 0
    %3158 = vmatpush1.bf16.msra.mxu0 %v3094
    %3159 = vmatprep.mubr.bf16.mxu0 %v2923
    %3160 = vmatmul.mubr.bf16.gmra.mrb[0].mxu0 %v2920
    %v3161 = vpop.f32.mrb[0].mxu0
    %v3162 = vadd.f32 %v2981, %v3161
    %v3163 = vpop.f32.mrb[0].mxu0
    %v3164 = vpop.f32.mrb[0].mxu0
    %v3165 = vpop.f32.mrb[0].mxu0
    %3166 = vdwg.mxu0
    %3167 = vmatprep.subr.bf16.mxu0 0
    %3168 = vmatpush1.bf16.msra.mxu0 %v3095
    %3169 = vmatprep.subr.bf16.mxu0 0
    %3170 = vmatpush1.bf16.msra.mxu0 %v3096
    %3171 = vmatprep.subr.bf16.mxu0 0
    %3172 = vmatpush1.bf16.msra.mxu0 %v3097
    %3173 = vmatprep.subr.bf16.mxu0 0
    %3174 = vmatpush1.bf16.msra.mxu0 %v3098
    %3175 = vmatprep.subr.bf16.mxu0 0
    %3176 = vmatpush1.bf16.msra.mxu0 %v3099
    %3177 = vmatprep.subr.bf16.mxu0 0
    %3178 = vmatpush1.bf16.msra.mxu0 %v3100
    %3179 = vmatprep.subr.bf16.mxu0 0
    %3180 = vmatpush1.bf16.msra.mxu0 %v3101
    %3181 = vmatprep.subr.bf16.mxu0 0
    %3182 = vmatpush1.bf16.msra.mxu0 %v3102
    %3183 = vmatprep.subr.bf16.mxu0 0
    %3184 = vmatpush1.bf16.msra.mxu0 0
    %3185 = vmatprep.subr.bf16.mxu0 0
    %3186 = vmatpush1.bf16.msra.mxu0 0
    %3187 = vmatprep.subr.bf16.mxu0 0
    %3188 = vmatpush1.bf16.msra.mxu0 0
    %3189 = vmatprep.subr.bf16.mxu0 0
    %3190 = vmatpush1.bf16.msra.mxu0 0
    %3191 = vmatprep.subr.bf16.mxu0 0
    %3192 = vmatpush1.bf16.msra.mxu0 0
    %3193 = vmatprep.subr.bf16.mxu0 0
    %3194 = vmatpush1.bf16.msra.mxu0 0
    %3195 = vmatprep.subr.bf16.mxu0 0
    %3196 = vmatpush1.bf16.msra.mxu0 0
    %3197 = vmatprep.subr.bf16.mxu0 0
    %3198 = vmatpush1.bf16.msra.mxu0 0
    %3199 = vmatprep.mubr.bf16.mxu0 0
    %3200 = vmatmul.mubr.bf16.gmra.mrb[0].mxu0 %v2926
    %v3201 = vpop.f32.mrb[0].mxu0
    %v3202 = vadd.f32 %v3162, %v3201
    %v3203 = vpop.f32.mrb[0].mxu0
    %v3204 = vpop.f32.mrb[0].mxu0
    %v3205 = vpop.f32.mrb[0].mxu0
    %3206 = vdwg.mxu0
    %vm3207 = vcmask 9216
    %3208 = vst.msk [vmem:[#allocation4] sm:$0x3] %vm3207, %v3202
    %3210 = vrot.lane.b32.xlu0 %v3202, 2
    %v3211 = vpop.permute.xlu0 %3210
    %vm3213 = vcmask 27666
    %3214 = vst.msk [vmem:[#allocation4 - $0x2] sm:$0xc] %vm3213, %v3211
    // Predicated region
    $region46: #{critic_forward.1} parent=1 // pred_check
      _
    $region47: #{critic_forward.1} parent=1 // pred_check_branch
      %3216 = sbr.rel (0) target = $region49
    $region48: #{critic_forward.1} parent=1 // pred_region
      %s3218 = ssub.s32 32, 32
      %3219 = vsyncadd [#allocation5], %s3218
      %s3221 = sshll.u32 [#allocation4], 4
      %s3222 = int_to_ptr.vmem [resolvable:$true] %s3221
      %3224 = dma.vmem_to_hbm [thread:$0]  %s3222, 32, %s11, [#allocation5]
    $region49: #{critic_forward.1} parent=1 // pred_fallthru
      _
    // Predicated region
    $region50: #{critic_forward.1} parent=1 // pred_check
      _
    $region51: #{critic_forward.1} parent=1 // pred_check_branch
      %3226 = sbr.rel (0) target = $region53
    $region52: #{critic_forward.1} parent=1 // pred_region
      %3227 = dma.done [#allocation5], 32
    $region53: #{critic_forward.1} parent=1 // pred_fallthru
      _
    %3228 = vsyncpa [#allocation5], 1

</llo_original>
